<compile_context>
chip_gen: v6e
topology: v6e:2x2x1
jax: 0.10.0
libtpu: 0.0.40
codegen_flags: <defaults>
</compile_context>

<pallas_src>
import functools

import jax
import jax.numpy as jnp
from jax import lax
from jax.experimental import pallas as pl
from jax.experimental.pallas import tpu as pltpu

EPS = 1e-5
LANE = 128
VMEM_LIMIT = 64 * 1024 * 1024  # within physical VMEM on v5e/v6e/v7x


def _round_up(x, m):
    return (x + m - 1) // m * m


# ----------------------------------------------------------------- kernels ---
def _conv_kernel(*refs, taps, compute_rows, y_pad, proj_tap, in_affine,
                 compute_dtype):
    """Fused 3x3 conv (+ optional input BN-affine+ReLU, + optional fused 1x1
    shortcut conv) with masked single-pass BN statistics, one image per grid step.

    Ref order:
      inputs : xf, w_taps, mask_out, [a_in, b_in, mask_in], [w_sc]
      outputs: y, stats, [y_sc, stats_sc]
      scratch: [h_buf]
    """
    it = iter(refs)
    xf_ref = next(it)
    w_ref = next(it)
    mout_ref = next(it)
    if in_affine:
        a_ref = next(it)
        b_ref = next(it)
        min_ref = next(it)
    if proj_tap is not None:
        wsc_ref = next(it)
    y_ref = next(it)
    st_ref = next(it)
    if proj_tap is not None:
        ysc_ref = next(it)
        stsc_ref = next(it)
    if in_affine:
        h_ref = next(it)

    if in_affine:
        # Fold the previous layer's BN (per-channel affine) + ReLU into this
        # kernel; mask_in zeroes the padding border / relocated garbage columns
        # so the zero-padding semantics of the conv are preserved (f32 math).
        xin = xf_ref[0, 0].astype(jnp.float32)
        h = jnp.maximum(xin * a_ref[...] + b_ref[...], 0.0) * min_ref[...]
        h_ref[...] = h.astype(compute_dtype)

        def slab(ph, off):
            return h_ref[pl.ds(off, compute_rows), :]
    else:
        def slab(ph, off):
            return xf_ref[0, ph, pl.ds(off, compute_rows), :]

    # 9-tap shift-and-accumulate conv on the MXU.  Chained local-value adds keep
    # the accumulation in the MXU result path / registers (no VMEM RMW) and
    # there is a single store of the result below.
    ph0, off0 = taps[0]
    acc = jnp.dot(slab(ph0, off0), w_ref[0], preferred_element_type=jnp.float32)
    for t in range(1, len(taps)):
        ph, off = taps[t]
        acc = acc + jnp.dot(slab(ph, off), w_ref[t],
                            preferred_element_type=jnp.float32)

    mask = mout_ref[...]                     # (compute_rows, 1), 1.0 = valid col

    def _emit(accv, y_r, st_r, pad):
        ym = accv * mask
        st_r[0, 0:1, :] = jnp.sum(ym, axis=0, keepdims=True)         # sum
        st_r[0, 1:2, :] = jnp.sum(ym * accv, axis=0, keepdims=True)  # sum of sq
        top, bot = pad
        if top == 0 and bot == 0:
            y_r[0] = accv.astype(y_r.dtype)
        else:
            cw = accv.shape[-1]
            # Zero-fill the border rows so no uninitialized NaN/Inf can survive
            # the downstream mask multiply, then write the computed rows at the
            # slab offset (direct conv1 -> conv2 layout, no XLA repack).
            if top > 0:
                y_r[0, pl.ds(0, top), :] = jnp.zeros((top, cw), y_r.dtype)
            if bot > 0:
                y_r[0, pl.ds(top + compute_rows, bot), :] = jnp.zeros(
                    (bot, cw), y_r.dtype)
            y_r[0, pl.ds(top, compute_rows), :] = accv.astype(y_r.dtype)

    _emit(acc, y_ref, st_ref, y_pad)

    if proj_tap is not None:
        ph_sc, off_sc = proj_tap
        accsc = jnp.dot(slab(ph_sc, off_sc), wsc_ref[...],
                        preferred_element_type=jnp.float32)
        _emit(accsc, ysc_ref, stsc_ref, (0, 0))


def _bn_add_relu_kernel(y2_ref, sc_ref, a2_ref, b2_ref, asc_ref, bsc_ref, o_ref):
    """out = relu(a2*y2 + b2 + asc*sc + bsc), tiled over M rows (lane-dense C)."""
    y2 = y2_ref[...].astype(jnp.float32)
    sc = sc_ref[...].astype(jnp.float32)
    o = jnp.maximum(y2 * a2_ref[...] + b2_ref[...] + sc * asc_ref[...] + bsc_ref[...],
                    0.0)
    o_ref[...] = o.astype(o_ref.dtype)


# -------------------------------------------------------------- pallas glue --
def _conv_stats(xf, w_taps, taps, mask_out, *, compute_rows, y_pad, cout_p,
                in_affine=None, mask_in=None, proj=None, compute_dtype):
    """One fused conv(+stats)(+shortcut conv) pallas_call, grid over the batch."""
    n, n_phase, flat, cin = xf.shape
    y_rows = y_pad[0] + compute_rows + y_pad[1]

    inputs = [xf, w_taps, mask_out]
    in_specs = [
        pl.BlockSpec((1, n_phase, flat, cin), lambda b: (b, 0, 0, 0)),
        pl.BlockSpec(w_taps.shape, lambda b: (0, 0, 0)),      # resident weights
        pl.BlockSpec(mask_out.shape, lambda b: (0, 0)),       # resident mask
    ]
    if in_affine is not None:
        a_in, b_in = in_affine
        inputs += [a_in, b_in, mask_in]
        in_specs += [pl.BlockSpec(a_in.shape, lambda b: (0, 0)),
                     pl.BlockSpec(b_in.shape, lambda b: (0, 0)),
                     pl.BlockSpec(mask_in.shape, lambda b: (0, 0))]
    proj_tap = None
    if proj is not None:
        w_sc, proj_tap = proj
        inputs += [w_sc]
        in_specs += [pl.BlockSpec(w_sc.shape, lambda b: (0, 0))]

    out_shapes = [jax.ShapeDtypeStruct((n, y_rows, cout_p), compute_dtype),
                  jax.ShapeDtypeStruct((n, 2, cout_p), jnp.float32)]
    out_specs = [pl.BlockSpec((1, y_rows, cout_p), lambda b: (b, 0, 0)),
                 pl.BlockSpec((1, 2, cout_p), lambda b: (b, 0, 0))]
    if proj is not None:
        out_shapes += [jax.ShapeDtypeStruct((n, compute_rows, cout_p), compute_dtype),
                       jax.ShapeDtypeStruct((n, 2, cout_p), jnp.float32)]
        out_specs += [pl.BlockSpec((1, compute_rows, cout_p), lambda b: (b, 0, 0)),
                      pl.BlockSpec((1, 2, cout_p), lambda b: (b, 0, 0))]

    scratch = []
    if in_affine is not None:
        scratch.append(pltpu.VMEM((flat, cin), compute_dtype))   # h buffer

    kernel = functools.partial(
        _conv_kernel, taps=tuple(taps), compute_rows=compute_rows, y_pad=y_pad,
        proj_tap=proj_tap, in_affine=(in_affine is not None),
        compute_dtype=compute_dtype)

    return pl.pallas_call(
        kernel,
        out_shape=tuple(out_shapes),
        grid=(n,),
        in_specs=in_specs,
        out_specs=tuple(out_specs),
        scratch_shapes=scratch,
        compiler_params=pltpu.CompilerParams(
            dimension_semantics=("parallel",),
            vmem_limit_bytes=VMEM_LIMIT),
    )(*inputs)


# --------------------------------------------------------- layout helpers ----
def _conv_taps(stride, wpad):
    """Static (phase, flat_row_offset) per 3x3 tap, in (di major, dj minor) order."""
    taps = []
    if stride == 1:
        n_phase, max_oi = 1, 2
        for di in range(3):
            for dj in range(3):
                taps.append((0, di * wpad + dj))
    else:  # stride 2 via 2x2 phase decomposition
        n_phase, max_oi = 4, 1
        for di in range(3):
            for dj in range(3):
                ph = (di % 2) * 2 + (dj % 2)
                taps.append((ph, (di // 2) * wpad + (dj // 2)))
    return n_phase, max_oi, taps


def _shortcut_tap(stride, wpad):
    """(phase, flat offset) that reads the 1x1/stride-s shortcut conv input."""
    if stride == 1:
        return (0, wpad + 1)
    return (3, 0)            # phase (1,1), offset (0,0)


def _phase_flat_input(x, stride, wpad, hph, cin_p, dtype):
    """x: (N,H,W,C) -> (N, n_phase, hph*wpad, cin_p) zero-padded phase-flat layout."""
    n, h, w, c = x.shape
    xp = jnp.pad(x, ((0, 0), (1, 1), (1, 1), (0, cin_p - c)))
    if stride == 1:
        phases = [xp]
    else:
        phases = [xp[:, a::2, b::2, :] for a in range(2) for b in range(2)]
    out = []
    for p in phases:
        out.append(jnp.pad(p, ((0, 0), (0, hph - p.shape[1]),
                               (0, wpad - p.shape[2]), (0, 0))))
    xph = jnp.stack(out, axis=1)                    # (N, n_phase, hph, wpad, Cp)
    return xph.reshape(n, len(phases), hph * wpad, cin_p).astype(dtype)


def _col_valid_mask(n_rows, wpad, wo):
    c = jnp.arange(n_rows, dtype=jnp.int32) % wpad
    return (c < wo).astype(jnp.float32).reshape(n_rows, 1)


def _interior_mask(hph, wpad, ho, wo):
    r = jnp.arange(hph * wpad, dtype=jnp.int32)
    q, c = r // wpad, r % wpad
    valid = (q >= 1) & (q <= ho) & (c >= 1) & (c <= wo)
    return valid.astype(jnp.float32).reshape(hph * wpad, 1)


def _prep_w3x3(w, cin_pad, cout_p, dtype):
    """(Cout, Cin, 3, 3) -> (9, cin_pad, cout_p), tap order (di major, dj minor)."""
    co, ci, kh, kw = w.shape
    wt = jnp.transpose(w, (2, 3, 1, 0)).reshape(kh * kw, ci, co)
    wt = jnp.pad(wt, ((0, 0), (0, cin_pad - ci), (0, cout_p - co)))
    return wt.astype(dtype)


def _pad1d(v, cout_p):
    return jnp.pad(v.astype(jnp.float32), (0, cout_p - v.shape[0]))


def _bn_affine(stats, gamma_p, beta_p, count):
    """Global batch-norm stats -> per-channel (scale, shift), single-pass form."""
    s = jnp.sum(stats, axis=0)                              # (2, C)
    mean = s[0] / count
    var = jnp.maximum(s[1] / count - mean * mean, 0.0)      # guard cancellation
    scale = gamma_p * lax.rsqrt(var + EPS)
    shift = beta_p - mean * scale
    return (scale.reshape(1, -1).astype(jnp.float32),
            shift.reshape(1, -1).astype(jnp.float32))


# ------------------------------------------------------------ BasicBlock -----
def basic_block_forward(x_nchw, params, stride, compute_dtype=jnp.bfloat16):
    if stride not in (1, 2):
        raise NotImplementedError("BasicBlock supports stride 1 or 2")
    x = jnp.transpose(x_nchw, (0, 2, 3, 1)).astype(jnp.float32)   # NHWC
    n, h, w, cin = x.shape
    w1, w2 = params["conv1_w"], params["conv2_w"]
    cout = w1.shape[0]
    cin_p = _round_up(cin, LANE)                 # lane-dense K for the MXU
    cout_p = _round_up(cout, LANE)
    projection = (stride != 1) or (cin != cout)

    ho = (h + 2 - 3) // stride + 1
    wo = (w + 2 - 3) // stride + 1
    wpad = wo + 2                       # "garbage column" padded width
    mrows = ho * wpad                   # flat output rows per image
    count = float(n * ho * wo)          # valid positions for BN stats

    # conv2's zero-padded flat input slab: conv1 writes straight into it at
    # offset wpad+1 and zero-fills the border rows in-kernel.
    hph2 = ho + 3
    slab2 = hph2 * wpad
    top1 = wpad + 1
    bot1 = slab2 - mrows - top1          # = 2*wpad - 1

    # ---- conv1 (+ fused 1x1 shortcut conv) + partial BN stats (grid over N) --
    _, max_oi1, taps1 = _conv_taps(stride, wpad)
    hph1 = ho + max_oi1 + 1
    xf1 = _phase_flat_input(x, stride, wpad, hph1, cin_p, compute_dtype)
    w1t = _prep_w3x3(w1, cin_p, cout_p, compute_dtype)
    mask_out = _col_valid_mask(mrows, wpad, wo)

    proj = None
    if projection:
        wsc = params["convs_w"].reshape(cout, cin).T                 # (Cin, Cout)
        wsc = jnp.pad(wsc, ((0, cin_p - cin), (0, cout_p - cout))).astype(compute_dtype)
        proj = (wsc, _shortcut_tap(stride, wpad))

    outs = _conv_stats(xf1, w1t, taps1, mask_out, compute_rows=mrows,
                       y_pad=(top1, bot1), cout_p=cout_p, proj=proj,
                       compute_dtype=compute_dtype)
    if projection:
        y1s, st1, ysc, stsc = outs
    else:
        y1s, st1 = outs

    a1, c1 = _bn_affine(st1, _pad1d(params["bn1_g"], cout_p),
                        _pad1d(params["bn1_b"], cout_p), count)

    # ---- conv2 (BN1 + ReLU of y1 fused into the kernel) + partial BN stats ---
    _, _, taps2 = _conv_taps(1, wpad)
    xf2 = y1s.reshape(n, 1, slab2, cout_p)       # free reshape: unit phase axis
    w2t = _prep_w3x3(w2, cout_p, cout_p, compute_dtype)
    mask_in = _interior_mask(hph2, wpad, ho, wo)

    y2, st2 = _conv_stats(xf2, w2t, taps2, mask_out, compute_rows=mrows,
                          y_pad=(0, 0), cout_p=cout_p,
                          in_affine=(a1, c1), mask_in=mask_in,
                          compute_dtype=compute_dtype)

    a2, c2 = _bn_affine(st2, _pad1d(params["bn2_g"], cout_p),
                        _pad1d(params["bn2_b"], cout_p), count)

    # ---- BN2 + shortcut + ReLU, tiled over M rows (lane-dense, parallel) -----
    if projection:
        asc, csc = _bn_affine(stsc, _pad1d(params["bns_g"], cout_p),
                              _pad1d(params["bns_b"], cout_p), count)
        sc = ysc.reshape(n * mrows, cout_p)
    else:
        # Identity shortcut: align x to the (wpad, cout_p) layout in the compute
        # dtype (bf16 by default) so the pad pass moves half the bytes.
        xres = jnp.pad(x.astype(compute_dtype),
                       ((0, 0), (0, 0), (0, wpad - wo), (0, cout_p - cin)))
        sc = xres.reshape(n * mrows, cout_p)
        asc = jnp.ones((1, cout_p), jnp.float32)
        csc = jnp.zeros((1, cout_p), jnp.float32)

    y2f = y2.reshape(n * mrows, cout_p)
    mtot = n * mrows
    tm = min(512, _round_up(mtot, 8))            # keep tiles large & lane-dense
    mpad = _round_up(mtot, tm)
    if mpad != mtot:
        y2f = jnp.pad(y2f, ((0, mpad - mtot), (0, 0)))
        sc = jnp.pad(sc, ((0, mpad - mtot), (0, 0)))

    out_flat = pl.pallas_call(
        _bn_add_relu_kernel,
        out_shape=jax.ShapeDtypeStruct((mpad, cout_p), compute_dtype),
        grid=(mpad // tm,),
        in_specs=[pl.BlockSpec((tm, cout_p), lambda i: (i, 0)),
                  pl.BlockSpec((tm, cout_p), lambda i: (i, 0)),
                  pl.BlockSpec((1, cout_p), lambda i: (0, 0)),
                  pl.BlockSpec((1, cout_p), lambda i: (0, 0)),
                  pl.BlockSpec((1, cout_p), lambda i: (0, 0)),
                  pl.BlockSpec((1, cout_p), lambda i: (0, 0))],
        out_specs=pl.BlockSpec((tm, cout_p), lambda i: (i, 0)),
        compiler_params=pltpu.CompilerParams(
            dimension_semantics=("parallel",),
            vmem_limit_bytes=VMEM_LIMIT),
    )(y2f, sc, a2, c2, asc, csc)

    out = out_flat[:mtot].reshape(n, ho, wpad, cout_p)[:, :, :wo, :cout]
    return jnp.transpose(out, (0, 3, 1, 2))                 # back to NCHW


# --------------------------------------------------------------- reference ---
def _ref_conv(x_nhwc, w_oihw, stride, pad):
    w = jnp.transpose(w_oihw, (2, 3, 1, 0))                 # HWIO
    return lax.conv_general_dilated(
        x_nhwc, w, (stride, stride), [(pad, pad), (pad, pad)],
        dimension_numbers=("NHWC", "HWIO", "NHWC"))


def _ref_bn(y, g, b):
    mean = y.mean(axis=(0, 1, 2))
    var = ((y - mean) ** 2).mean(axis=(0, 1, 2))
    return (y - mean) / jnp.sqrt(var + EPS) * g + b


def basic_block_reference(x_nchw, params, stride):
    x = jnp.transpose(x_nchw, (0, 2, 3, 1)).astype(jnp.float32)
    cin = x.shape[-1]
    cout = params["conv1_w"].shape[0]
    h1 = jnp.maximum(_ref_bn(_ref_conv(x, params["conv1_w"], stride, 1),
                             params["bn1_g"], params["bn1_b"]), 0.0)
    y2 = _ref_bn(_ref_conv(h1, params["conv2_w"], 1, 1),
                 params["bn2_g"], params["bn2_b"])
    if stride != 1 or cin != cout:
        sc = _ref_bn(_ref_conv(x, params["convs_w"], stride, 0),
                     params["bns_g"], params["bns_b"])
    else:
        sc = x
    out = jnp.maximum(y2 + sc, 0.0)
    return jnp.transpose(out, (0, 3, 1, 2))


# --------------------------------------------------------------------- main --
def make_params(key, in_channels, out_channels):
    k1, k2, k3 = jax.random.split(key, 3)

    def kaiming(k, shape):
        fan_in = shape[1] * shape[2] * shape[3]
        return jax.random.normal(k, shape, jnp.float32) * (2.0 / fan_in) ** 0.5

    return {
        "conv1_w": kaiming(k1, (out_channels, in_channels, 3, 3)),
        "conv2_w": kaiming(k2, (out_channels, out_channels, 3, 3)),
        "convs_w": kaiming(k3, (out_channels, in_channels, 1, 1)),
        # PyTorch BatchNorm2d default init: weight=1, bias=0
        "bn1_g": jnp.ones((out_channels,), jnp.float32),
        "bn1_b": jnp.zeros((out_channels,), jnp.float32),
        "bn2_g": jnp.ones((out_channels,), jnp.float32),
        "bn2_b": jnp.zeros((out_channels,), jnp.float32),
        "bns_g": jnp.ones((out_channels,), jnp.float32),
        "bns_b": jnp.zeros((out_channels,), jnp.float32),
    }


if __name__ == "__main__":
    key = jax.random.PRNGKey(0)
    kx, kp = jax.random.split(key)

    # projection-shortcut path (stride=2, in != out)
    batch, in_ch, out_ch, hw, stride = 2, 4, 8, 16, 2
    x = jax.random.normal(kx, (batch, in_ch, hw, hw), jnp.float32)
    params = make_params(kp, in_ch, out_ch)
    ref = basic_block_reference(x, params, stride)

    # default bf16 MXU-operand path (f32 accumulation / epilogue)
    fwd_bf = jax.jit(functools.partial(basic_block_forward, stride=stride))
    out_bf = jax.block_until_ready(fwd_bf(x, params))
    assert out_bf.shape == (batch, out_ch, hw // stride, hw // stride), out_bf.shape
    err_bf = float(jnp.max(jnp.abs(out_bf.astype(jnp.float32) - ref)))
    assert err_bf < 0.25, err_bf

    # f32 compute path: tight numerical check of the kernel math
    fwd_f32 = jax.jit(functools.partial(basic_block_forward, stride=stride,
                                        compute_dtype=jnp.float32))
    out_f32 = jax.block_until_ready(fwd_f32(x, params))
    err_f32 = float(jnp.max(jnp.abs(out_f32 - ref)))
    assert err_f32 < 5e-4, err_f32

    # identity-shortcut path (stride=1, in == out): f32 tight + default bf16
    params_id = make_params(kp, out_ch, out_ch)
    x_id = jax.random.normal(kx, (batch, out_ch, hw, hw), jnp.float32)
    ref_id = basic_block_reference(x_id, params_id, 1)

    out_id = jax.block_until_ready(
        jax.jit(functools.partial(basic_block_forward, stride=1,
                                  compute_dtype=jnp.float32))(x_id, params_id))
    err_id = float(jnp.max(jnp.abs(out_id - ref_id)))
    assert err_id < 5e-4, err_id

    out_id_bf = jax.block_until_ready(
        jax.jit(functools.partial(basic_block_forward, stride=1))(x_id, params_id))
    err_id_bf = float(jnp.max(jnp.abs(out_id_bf.astype(jnp.float32) - ref_id)))
    assert err_id_bf < 0.25, err_id_bf

    print("KERNEL_OK")
</pallas_src>

<mosaic_0001>
module attributes {stable_mosaic.version = 11 : i64} {
  func.func @_conv_kernel(%arg0: i32, %arg1: memref<1x4x100x128xbf16, #tpu.memory_space<vmem>>, %arg2: memref<9x128x128xbf16, #tpu.memory_space<vmem>>, %arg3: memref<80x1xf32, #tpu.memory_space<vmem>>, %arg4: memref<128x128xbf16, #tpu.memory_space<vmem>>, %arg5: memref<1x110x128xbf16, #tpu.memory_space<vmem>>, %arg6: memref<1x2x128xf32, #tpu.memory_space<vmem>>, %arg7: memref<1x80x128xbf16, #tpu.memory_space<vmem>>, %arg8: memref<1x2x128xf32, #tpu.memory_space<vmem>>) attributes {dimension_semantics = [#tpu.dimension_semantics<parallel>], iteration_bounds = array<i64: 2>, scalar_prefetch = 0 : i64, scratch_operands = 0 : i64, tpu.core_type = #tpu.core_type<tc>, window_params = [{transform_indices = @transform_0, window_bounds = array<i64: 1, 4, 100, 128>}, {pipeline_mode = #tpu.pipeline_mode<synchronous>, transform_indices = @transform_1, window_bounds = array<i64: 9, 128, 128>}, {pipeline_mode = #tpu.pipeline_mode<synchronous>, transform_indices = @transform_2, window_bounds = array<i64: 80, 1>}, {pipeline_mode = #tpu.pipeline_mode<synchronous>, transform_indices = @transform_3, window_bounds = array<i64: 128, 128>}, {transform_indices = @transform_4, window_bounds = array<i64: 1, 110, 128>}, {transform_indices = @transform_5, window_bounds = array<i64: 1, 2, 128>}, {transform_indices = @transform_6, window_bounds = array<i64: 1, 80, 128>}, {transform_indices = @transform_7, window_bounds = array<i64: 1, 2, 128>}]} {
    %c0 = arith.constant 0 : index
    %c0_0 = arith.constant 0 : index
    %c0_1 = arith.constant 0 : index
    %c0_2 = arith.constant 0 : index
    %0 = vector.load %arg1[%c0, %c0_0, %c0_1, %c0_2] : memref<1x4x100x128xbf16, #tpu.memory_space<vmem>>, vector<1x1x80x128xbf16>
    %1 = vector.shape_cast %0 : vector<1x1x80x128xbf16> to vector<80x128xbf16>
    %c0_3 = arith.constant 0 : index
    %c0_4 = arith.constant 0 : index
    %c0_5 = arith.constant 0 : index
    %2 = vector.load %arg2[%c0_3, %c0_4, %c0_5] : memref<9x128x128xbf16, #tpu.memory_space<vmem>>, vector<1x128x128xbf16>
    %3 = vector.shape_cast %2 : vector<1x128x128xbf16> to vector<128x128xbf16>
    %cst = arith.constant dense<0.000000e+00> : vector<80x128xf32>
    %4 = tpu.matmul %1, %3, %cst {dimension_numbers = #tpu.dot_dimension_numbers<[1], [0], [0], [1], [0, 0, 1, 1], [], []>} : vector<80x128xbf16>, vector<128x128xbf16>, vector<80x128xf32> -> vector<80x128xf32>
    %c0_6 = arith.constant 0 : index
    %c1 = arith.constant 1 : index
    %c0_7 = arith.constant 0 : index
    %c0_8 = arith.constant 0 : index
    %5 = vector.load %arg1[%c0_6, %c1, %c0_7, %c0_8] : memref<1x4x100x128xbf16, #tpu.memory_space<vmem>>, vector<1x1x80x128xbf16>
    %6 = vector.shape_cast %5 : vector<1x1x80x128xbf16> to vector<80x128xbf16>
    %c1_9 = arith.constant 1 : index
    %c0_10 = arith.constant 0 : index
    %c0_11 = arith.constant 0 : index
    %7 = vector.load %arg2[%c1_9, %c0_10, %c0_11] : memref<9x128x128xbf16, #tpu.memory_space<vmem>>, vector<1x128x128xbf16>
    %8 = vector.shape_cast %7 : vector<1x128x128xbf16> to vector<128x128xbf16>
    %cst_12 = arith.constant dense<0.000000e+00> : vector<80x128xf32>
    %9 = tpu.matmul %6, %8, %cst_12 {dimension_numbers = #tpu.dot_dimension_numbers<[1], [0], [0], [1], [0, 0, 1, 1], [], []>} : vector<80x128xbf16>, vector<128x128xbf16>, vector<80x128xf32> -> vector<80x128xf32>
    %10 = arith.addf %4, %9 : vector<80x128xf32>
    %c0_13 = arith.constant 0 : index
    %c0_14 = arith.constant 0 : index
    %c1_15 = arith.constant 1 : index
    %c0_16 = arith.constant 0 : index
    %11 = vector.load %arg1[%c0_13, %c0_14, %c1_15, %c0_16] : memref<1x4x100x128xbf16, #tpu.memory_space<vmem>>, vector<1x1x80x128xbf16>
    %12 = vector.shape_cast %11 : vector<1x1x80x128xbf16> to vector<80x128xbf16>
    %c2 = arith.constant 2 : index
    %c0_17 = arith.constant 0 : index
    %c0_18 = arith.constant 0 : index
    %13 = vector.load %arg2[%c2, %c0_17, %c0_18] : memref<9x128x128xbf16, #tpu.memory_space<vmem>>, vector<1x128x128xbf16>
    %14 = vector.shape_cast %13 : vector<1x128x128xbf16> to vector<128x128xbf16>
    %cst_19 = arith.constant dense<0.000000e+00> : vector<80x128xf32>
    %15 = tpu.matmul %12, %14, %cst_19 {dimension_numbers = #tpu.dot_dimension_numbers<[1], [0], [0], [1], [0, 0, 1, 1], [], []>} : vector<80x128xbf16>, vector<128x128xbf16>, vector<80x128xf32> -> vector<80x128xf32>
    %16 = arith.addf %10, %15 : vector<80x128xf32>
    %c0_20 = arith.constant 0 : index
    %c2_21 = arith.constant 2 : index
    %c0_22 = arith.constant 0 : index
    %c0_23 = arith.constant 0 : index
    %17 = vector.load %arg1[%c0_20, %c2_21, %c0_22, %c0_23] : memref<1x4x100x128xbf16, #tpu.memory_space<vmem>>, vector<1x1x80x128xbf16>
    %18 = vector.shape_cast %17 : vector<1x1x80x128xbf16> to vector<80x128xbf16>
    %c3 = arith.constant 3 : index
    %c0_24 = arith.constant 0 : index
    %c0_25 = arith.constant 0 : index
    %19 = vector.load %arg2[%c3, %c0_24, %c0_25] : memref<9x128x128xbf16, #tpu.memory_space<vmem>>, vector<1x128x128xbf16>
    %20 = vector.shape_cast %19 : vector<1x128x128xbf16> to vector<128x128xbf16>
    %cst_26 = arith.constant dense<0.000000e+00> : vector<80x128xf32>
    %21 = tpu.matmul %18, %20, %cst_26 {dimension_numbers = #tpu.dot_dimension_numbers<[1], [0], [0], [1], [0, 0, 1, 1], [], []>} : vector<80x128xbf16>, vector<128x128xbf16>, vector<80x128xf32> -> vector<80x128xf32>
    %22 = arith.addf %16, %21 : vector<80x128xf32>
    %c0_27 = arith.constant 0 : index
    %c3_28 = arith.constant 3 : index
    %c0_29 = arith.constant 0 : index
    %c0_30 = arith.constant 0 : index
    %23 = vector.load %arg1[%c0_27, %c3_28, %c0_29, %c0_30] : memref<1x4x100x128xbf16, #tpu.memory_space<vmem>>, vector<1x1x80x128xbf16>
    %24 = vector.shape_cast %23 : vector<1x1x80x128xbf16> to vector<80x128xbf16>
    %c4 = arith.constant 4 : index
    %c0_31 = arith.constant 0 : index
    %c0_32 = arith.constant 0 : index
    %25 = vector.load %arg2[%c4, %c0_31, %c0_32] : memref<9x128x128xbf16, #tpu.memory_space<vmem>>, vector<1x128x128xbf16>
    %26 = vector.shape_cast %25 : vector<1x128x128xbf16> to vector<128x128xbf16>
    %cst_33 = arith.constant dense<0.000000e+00> : vector<80x128xf32>
    %27 = tpu.matmul %24, %26, %cst_33 {dimension_numbers = #tpu.dot_dimension_numbers<[1], [0], [0], [1], [0, 0, 1, 1], [], []>} : vector<80x128xbf16>, vector<128x128xbf16>, vector<80x128xf32> -> vector<80x128xf32>
    %28 = arith.addf %22, %27 : vector<80x128xf32>
    %c0_34 = arith.constant 0 : index
    %c2_35 = arith.constant 2 : index
    %c1_36 = arith.constant 1 : index
    %c0_37 = arith.constant 0 : index
    %29 = vector.load %arg1[%c0_34, %c2_35, %c1_36, %c0_37] : memref<1x4x100x128xbf16, #tpu.memory_space<vmem>>, vector<1x1x80x128xbf16>
    %30 = vector.shape_cast %29 : vector<1x1x80x128xbf16> to vector<80x128xbf16>
    %c5 = arith.constant 5 : index
    %c0_38 = arith.constant 0 : index
    %c0_39 = arith.constant 0 : index
    %31 = vector.load %arg2[%c5, %c0_38, %c0_39] : memref<9x128x128xbf16, #tpu.memory_space<vmem>>, vector<1x128x128xbf16>
    %32 = vector.shape_cast %31 : vector<1x128x128xbf16> to vector<128x128xbf16>
    %cst_40 = arith.constant dense<0.000000e+00> : vector<80x128xf32>
    %33 = tpu.matmul %30, %32, %cst_40 {dimension_numbers = #tpu.dot_dimension_numbers<[1], [0], [0], [1], [0, 0, 1, 1], [], []>} : vector<80x128xbf16>, vector<128x128xbf16>, vector<80x128xf32> -> vector<80x128xf32>
    %34 = arith.addf %28, %33 : vector<80x128xf32>
    %c0_41 = arith.constant 0 : index
    %c0_42 = arith.constant 0 : index
    %c10 = arith.constant 10 : index
    %c0_43 = arith.constant 0 : index
    %35 = vector.load %arg1[%c0_41, %c0_42, %c10, %c0_43] : memref<1x4x100x128xbf16, #tpu.memory_space<vmem>>, vector<1x1x80x128xbf16>
    %36 = vector.shape_cast %35 : vector<1x1x80x128xbf16> to vector<80x128xbf16>
    %c6 = arith.constant 6 : index
    %c0_44 = arith.constant 0 : index
    %c0_45 = arith.constant 0 : index
    %37 = vector.load %arg2[%c6, %c0_44, %c0_45] : memref<9x128x128xbf16, #tpu.memory_space<vmem>>, vector<1x128x128xbf16>
    %38 = vector.shape_cast %37 : vector<1x128x128xbf16> to vector<128x128xbf16>
    %cst_46 = arith.constant dense<0.000000e+00> : vector<80x128xf32>
    %39 = tpu.matmul %36, %38, %cst_46 {dimension_numbers = #tpu.dot_dimension_numbers<[1], [0], [0], [1], [0, 0, 1, 1], [], []>} : vector<80x128xbf16>, vector<128x128xbf16>, vector<80x128xf32> -> vector<80x128xf32>
    %40 = arith.addf %34, %39 : vector<80x128xf32>
    %c0_47 = arith.constant 0 : index
    %c1_48 = arith.constant 1 : index
    %c10_49 = arith.constant 10 : index
    %c0_50 = arith.constant 0 : index
    %41 = vector.load %arg1[%c0_47, %c1_48, %c10_49, %c0_50] : memref<1x4x100x128xbf16, #tpu.memory_space<vmem>>, vector<1x1x80x128xbf16>
    %42 = vector.shape_cast %41 : vector<1x1x80x128xbf16> to vector<80x128xbf16>
    %c7 = arith.constant 7 : index
    %c0_51 = arith.constant 0 : index
    %c0_52 = arith.constant 0 : index
    %43 = vector.load %arg2[%c7, %c0_51, %c0_52] : memref<9x128x128xbf16, #tpu.memory_space<vmem>>, vector<1x128x128xbf16>
    %44 = vector.shape_cast %43 : vector<1x128x128xbf16> to vector<128x128xbf16>
    %cst_53 = arith.constant dense<0.000000e+00> : vector<80x128xf32>
    %45 = tpu.matmul %42, %44, %cst_53 {dimension_numbers = #tpu.dot_dimension_numbers<[1], [0], [0], [1], [0, 0, 1, 1], [], []>} : vector<80x128xbf16>, vector<128x128xbf16>, vector<80x128xf32> -> vector<80x128xf32>
    %46 = arith.addf %40, %45 : vector<80x128xf32>
    %c0_54 = arith.constant 0 : index
    %c0_55 = arith.constant 0 : index
    %c11 = arith.constant 11 : index
    %c0_56 = arith.constant 0 : index
    %47 = vector.load %arg1[%c0_54, %c0_55, %c11, %c0_56] : memref<1x4x100x128xbf16, #tpu.memory_space<vmem>>, vector<1x1x80x128xbf16>
    %48 = vector.shape_cast %47 : vector<1x1x80x128xbf16> to vector<80x128xbf16>
    %c8 = arith.constant 8 : index
    %c0_57 = arith.constant 0 : index
    %c0_58 = arith.constant 0 : index
    %49 = vector.load %arg2[%c8, %c0_57, %c0_58] : memref<9x128x128xbf16, #tpu.memory_space<vmem>>, vector<1x128x128xbf16>
    %50 = vector.shape_cast %49 : vector<1x128x128xbf16> to vector<128x128xbf16>
    %cst_59 = arith.constant dense<0.000000e+00> : vector<80x128xf32>
    %51 = tpu.matmul %48, %50, %cst_59 {dimension_numbers = #tpu.dot_dimension_numbers<[1], [0], [0], [1], [0, 0, 1, 1], [], []>} : vector<80x128xbf16>, vector<128x128xbf16>, vector<80x128xf32> -> vector<80x128xf32>
    %52 = arith.addf %46, %51 : vector<80x128xf32>
    %c0_60 = arith.constant 0 : index
    %c0_61 = arith.constant 0 : index
    %53 = vector.load %arg3[%c0_60, %c0_61] : memref<80x1xf32, #tpu.memory_space<vmem>>, vector<80x1xf32>
    %54 = vector.broadcast %53 : vector<80x1xf32> to vector<80x128xf32>
    %55 = arith.mulf %52, %54 : vector<80x128xf32>
    %cst_62 = arith.constant dense<0.000000e+00> : vector<128xf32>
    %56 = vector.multi_reduction <add>, %55, %cst_62 [0] : vector<80x128xf32> to vector<128xf32>
    %57 = vector.shape_cast %56 : vector<128xf32> to vector<1x128xf32>
    %c0_63 = arith.constant 0 : index
    %c0_64 = arith.constant 0 : index
    %c0_65 = arith.constant 0 : index
    %58 = vector.load %arg6[%c0_63, %c0_64, %c0_65] : memref<1x2x128xf32, #tpu.memory_space<vmem>>, vector<1x1x128xf32>
    %59 = vector.shape_cast %58 : vector<1x1x128xf32> to vector<1x128xf32>
    %60 = vector.shape_cast %57 : vector<1x128xf32> to vector<1x1x128xf32>
    tpu.vector_store %arg6[%c0_63, %c0_64, %c0_65], %60 {strides = array<i32>} : memref<1x2x128xf32, #tpu.memory_space<vmem>>, vector<1x1x128xf32>,
    %61 = arith.mulf %55, %52 : vector<80x128xf32>
    %cst_66 = arith.constant dense<0.000000e+00> : vector<128xf32>
    %62 = vector.multi_reduction <add>, %61, %cst_66 [0] : vector<80x128xf32> to vector<128xf32>
    %63 = vector.shape_cast %62 : vector<128xf32> to vector<1x128xf32>
    %c0_67 = arith.constant 0 : index
    %c1_68 = arith.constant 1 : index
    %c0_69 = arith.constant 0 : index
    %64 = vector.load %arg6[%c0_67, %c1_68, %c0_69] : memref<1x2x128xf32, #tpu.memory_space<vmem>>, vector<1x1x128xf32>
    %65 = vector.shape_cast %64 : vector<1x1x128xf32> to vector<1x128xf32>
    %66 = vector.shape_cast %63 : vector<1x128xf32> to vector<1x1x128xf32>
    tpu.vector_store %arg6[%c0_67, %c1_68, %c0_69], %66 {strides = array<i32>} : memref<1x2x128xf32, #tpu.memory_space<vmem>>, vector<1x1x128xf32>,
    %cst_70 = arith.constant 0.000000e+00 : bf16
    %67 = vector.broadcast %cst_70 : bf16 to vector<11x128xbf16>
    %c0_71 = arith.constant 0 : index
    %c0_72 = arith.constant 0 : index
    %c0_73 = arith.constant 0 : index
    %68 = vector.load %arg5[%c0_71, %c0_72, %c0_73] : memref<1x110x128xbf16, #tpu.memory_space<vmem>>, vector<1x11x128xbf16>
    %69 = vector.shape_cast %68 : vector<1x11x128xbf16> to vector<11x128xbf16>
    %70 = vector.shape_cast %67 : vector<11x128xbf16> to vector<1x11x128xbf16>
    tpu.vector_store %arg5[%c0_71, %c0_72, %c0_73], %70 {strides = array<i32>} : memref<1x110x128xbf16, #tpu.memory_space<vmem>>, vector<1x11x128xbf16>,
    %cst_74 = arith.constant 0.000000e+00 : bf16
    %71 = vector.broadcast %cst_74 : bf16 to vector<19x128xbf16>
    %c0_75 = arith.constant 0 : index
    %c91 = arith.constant 91 : index
    %c0_76 = arith.constant 0 : index
    %72 = vector.load %arg5[%c0_75, %c91, %c0_76] : memref<1x110x128xbf16, #tpu.memory_space<vmem>>, vector<1x19x128xbf16>
    %73 = vector.shape_cast %72 : vector<1x19x128xbf16> to vector<19x128xbf16>
    %74 = vector.shape_cast %71 : vector<19x128xbf16> to vector<1x19x128xbf16>
    tpu.vector_store %arg5[%c0_75, %c91, %c0_76], %74 {strides = array<i32>} : memref<1x110x128xbf16, #tpu.memory_space<vmem>>, vector<1x19x128xbf16>,
    %75 = arith.truncf %52 : vector<80x128xf32> to vector<80x128xbf16>
    %c0_77 = arith.constant 0 : index
    %c11_78 = arith.constant 11 : index
    %c0_79 = arith.constant 0 : index
    %76 = vector.load %arg5[%c0_77, %c11_78, %c0_79] : memref<1x110x128xbf16, #tpu.memory_space<vmem>>, vector<1x80x128xbf16>
    %77 = vector.shape_cast %76 : vector<1x80x128xbf16> to vector<80x128xbf16>
    %78 = vector.shape_cast %75 : vector<80x128xbf16> to vector<1x80x128xbf16>
    tpu.vector_store %arg5[%c0_77, %c11_78, %c0_79], %78 {strides = array<i32>} : memref<1x110x128xbf16, #tpu.memory_space<vmem>>, vector<1x80x128xbf16>,
    %c0_80 = arith.constant 0 : index
    %c3_81 = arith.constant 3 : index
    %c0_82 = arith.constant 0 : index
    %c0_83 = arith.constant 0 : index
    %79 = vector.load %arg1[%c0_80, %c3_81, %c0_82, %c0_83] : memref<1x4x100x128xbf16, #tpu.memory_space<vmem>>, vector<1x1x80x128xbf16>
    %80 = vector.shape_cast %79 : vector<1x1x80x128xbf16> to vector<80x128xbf16>
    %c0_84 = arith.constant 0 : index
    %c0_85 = arith.constant 0 : index
    %81 = vector.load %arg4[%c0_84, %c0_85] : memref<128x128xbf16, #tpu.memory_space<vmem>>, vector<128x128xbf16>
    %cst_86 = arith.constant dense<0.000000e+00> : vector<80x128xf32>
    %82 = tpu.matmul %80, %81, %cst_86 {dimension_numbers = #tpu.dot_dimension_numbers<[1], [0], [0], [1], [0, 0, 1, 1], [], []>} : vector<80x128xbf16>, vector<128x128xbf16>, vector<80x128xf32> -> vector<80x128xf32>
    %83 = vector.broadcast %53 : vector<80x1xf32> to vector<80x128xf32>
    %84 = arith.mulf %82, %83 : vector<80x128xf32>
    %cst_87 = arith.constant dense<0.000000e+00> : vector<128xf32>
    %85 = vector.multi_reduction <add>, %84, %cst_87 [0] : vector<80x128xf32> to vector<128xf32>
    %86 = vector.shape_cast %85 : vector<128xf32> to vector<1x128xf32>
    %c0_88 = arith.constant 0 : index
    %c0_89 = arith.constant 0 : index
    %c0_90 = arith.constant 0 : index
    %87 = vector.load %arg8[%c0_88, %c0_89, %c0_90] : memref<1x2x128xf32, #tpu.memory_space<vmem>>, vector<1x1x128xf32>
    %88 = vector.shape_cast %87 : vector<1x1x128xf32> to vector<1x128xf32>
    %89 = vector.shape_cast %86 : vector<1x128xf32> to vector<1x1x128xf32>
    tpu.vector_store %arg8[%c0_88, %c0_89, %c0_90], %89 {strides = array<i32>} : memref<1x2x128xf32, #tpu.memory_space<vmem>>, vector<1x1x128xf32>,
    %90 = arith.mulf %84, %82 : vector<80x128xf32>
    %cst_91 = arith.constant dense<0.000000e+00> : vector<128xf32>
    %91 = vector.multi_reduction <add>, %90, %cst_91 [0] : vector<80x128xf32> to vector<128xf32>
    %92 = vector.shape_cast %91 : vector<128xf32> to vector<1x128xf32>
    %c0_92 = arith.constant 0 : index
    %c1_93 = arith.constant 1 : index
    %c0_94 = arith.constant 0 : index
    %93 = vector.load %arg8[%c0_92, %c1_93, %c0_94] : memref<1x2x128xf32, #tpu.memory_space<vmem>>, vector<1x1x128xf32>
    %94 = vector.shape_cast %93 : vector<1x1x128xf32> to vector<1x128xf32>
    %95 = vector.shape_cast %92 : vector<1x128xf32> to vector<1x1x128xf32>
    tpu.vector_store %arg8[%c0_92, %c1_93, %c0_94], %95 {strides = array<i32>} : memref<1x2x128xf32, #tpu.memory_space<vmem>>, vector<1x1x128xf32>,
    %96 = arith.truncf %82 : vector<80x128xf32> to vector<80x128xbf16>
    %c0_95 = arith.constant 0 : index
    %c0_96 = arith.constant 0 : index
    %c0_97 = arith.constant 0 : index
    %97 = vector.load %arg7[%c0_95, %c0_96, %c0_97] : memref<1x80x128xbf16, #tpu.memory_space<vmem>>, vector<1x80x128xbf16>
    %98 = vector.shape_cast %97 : vector<1x80x128xbf16> to vector<80x128xbf16>
    %99 = vector.shape_cast %96 : vector<80x128xbf16> to vector<1x80x128xbf16>
    tpu.vector_store %arg7[%c0_95, %c0_96, %c0_97], %99 {strides = array<i32>} : memref<1x80x128xbf16, #tpu.memory_space<vmem>>, vector<1x80x128xbf16>,
    return
  }
  func.func @transform_0(%arg0: i32) -> (i32, i32, i32, i32) {
    %c0_i32 = arith.constant 0 : i32
    %c0_i32_0 = arith.constant 0 : i32
    %c0_i32_1 = arith.constant 0 : i32
    %c0_i32_2 = arith.constant 0 : i32
    return %arg0, %c0_i32, %c0_i32_0, %c0_i32_1 : i32, i32, i32, i32
  }
  func.func @transform_1(%arg0: i32) -> (i32, i32, i32) {
    %c0_i32 = arith.constant 0 : i32
    %c0_i32_0 = arith.constant 0 : i32
    %c0_i32_1 = arith.constant 0 : i32
    %c0_i32_2 = arith.constant 0 : i32
    return %c0_i32, %c0_i32_0, %c0_i32_1 : i32, i32, i32
  }
  func.func @transform_2(%arg0: i32) -> (i32, i32) {
    %c0_i32 = arith.constant 0 : i32
    %c0_i32_0 = arith.constant 0 : i32
    %c0_i32_1 = arith.constant 0 : i32
    return %c0_i32, %c0_i32_0 : i32, i32
  }
  func.func @transform_3(%arg0: i32) -> (i32, i32) {
    %c0_i32 = arith.constant 0 : i32
    %c0_i32_0 = arith.constant 0 : i32
    %c0_i32_1 = arith.constant 0 : i32
    return %c0_i32, %c0_i32_0 : i32, i32
  }
  func.func @transform_4(%arg0: i32) -> (i32, i32, i32) {
    %c0_i32 = arith.constant 0 : i32
    %c0_i32_0 = arith.constant 0 : i32
    %c0_i32_1 = arith.constant 0 : i32
    return %arg0, %c0_i32, %c0_i32_0 : i32, i32, i32
  }
  func.func @transform_5(%arg0: i32) -> (i32, i32, i32) {
    %c0_i32 = arith.constant 0 : i32
    %c0_i32_0 = arith.constant 0 : i32
    %c0_i32_1 = arith.constant 0 : i32
    return %arg0, %c0_i32, %c0_i32_0 : i32, i32, i32
  }
  func.func @transform_6(%arg0: i32) -> (i32, i32, i32) {
    %c0_i32 = arith.constant 0 : i32
    %c0_i32_0 = arith.constant 0 : i32
    %c0_i32_1 = arith.constant 0 : i32
    return %arg0, %c0_i32, %c0_i32_0 : i32, i32, i32
  }
  func.func @transform_7(%arg0: i32) -> (i32, i32, i32) {
    %c0_i32 = arith.constant 0 : i32
    %c0_i32_0 = arith.constant 0 : i32
    %c0_i32_1 = arith.constant 0 : i32
    return %arg0, %c0_i32, %c0_i32_0 : i32, i32, i32
  }
}

module attributes {stable_mosaic.version = 11 : i64} {
  func.func @_conv_kernel(%arg0: i32, %arg1: memref<1x1x110x128xbf16, #tpu.memory_space<vmem>>, %arg2: memref<9x128x128xbf16, #tpu.memory_space<vmem>>, %arg3: memref<80x1xf32, #tpu.memory_space<vmem>>, %arg4: memref<1x128xf32, #tpu.memory_space<vmem>>, %arg5: memref<1x128xf32, #tpu.memory_space<vmem>>, %arg6: memref<110x1xf32, #tpu.memory_space<vmem>>, %arg7: memref<1x80x128xbf16, #tpu.memory_space<vmem>>, %arg8: memref<1x2x128xf32, #tpu.memory_space<vmem>>, %arg9: memref<110x128xbf16, #tpu.memory_space<vmem>>) attributes {dimension_semantics = [#tpu.dimension_semantics<parallel>], iteration_bounds = array<i64: 2>, scalar_prefetch = 0 : i64, scratch_operands = 1 : i64, tpu.core_type = #tpu.core_type<tc>, window_params = [{transform_indices = @transform_0, window_bounds = array<i64: 1, 1, 110, 128>}, {pipeline_mode = #tpu.pipeline_mode<synchronous>, transform_indices = @transform_1, window_bounds = array<i64: 9, 128, 128>}, {pipeline_mode = #tpu.pipeline_mode<synchronous>, transform_indices = @transform_2, window_bounds = array<i64: 80, 1>}, {pipeline_mode = #tpu.pipeline_mode<synchronous>, transform_indices = @transform_3, window_bounds = array<i64: 1, 128>}, {pipeline_mode = #tpu.pipeline_mode<synchronous>, transform_indices = @transform_4, window_bounds = array<i64: 1, 128>}, {pipeline_mode = #tpu.pipeline_mode<synchronous>, transform_indices = @transform_5, window_bounds = array<i64: 110, 1>}, {transform_indices = @transform_6, window_bounds = array<i64: 1, 80, 128>}, {transform_indices = @transform_7, window_bounds = array<i64: 1, 2, 128>}]} {
    %c0 = arith.constant 0 : index
    %c0_0 = arith.constant 0 : index
    %c0_1 = arith.constant 0 : index
    %c0_2 = arith.constant 0 : index
    %0 = vector.load %arg1[%c0, %c0_0, %c0_1, %c0_2] : memref<1x1x110x128xbf16, #tpu.memory_space<vmem>>, vector<1x1x110x128xbf16>
    %1 = vector.shape_cast %0 : vector<1x1x110x128xbf16> to vector<110x128xbf16>
    %2 = arith.extf %1 : vector<110x128xbf16> to vector<110x128xf32>
    %c0_3 = arith.constant 0 : index
    %c0_4 = arith.constant 0 : index
    %3 = vector.load %arg4[%c0_3, %c0_4] : memref<1x128xf32, #tpu.memory_space<vmem>>, vector<1x128xf32>
    %4 = vector.broadcast %3 : vector<1x128xf32> to vector<110x128xf32>
    %5 = arith.mulf %2, %4 : vector<110x128xf32>
    %c0_5 = arith.constant 0 : index
    %c0_6 = arith.constant 0 : index
    %6 = vector.load %arg5[%c0_5, %c0_6] : memref<1x128xf32, #tpu.memory_space<vmem>>, vector<1x128xf32>
    %7 = vector.broadcast %6 : vector<1x128xf32> to vector<110x128xf32>
    %8 = arith.addf %5, %7 : vector<110x128xf32>
    %cst = arith.constant 0.000000e+00 : f32
    %9 = vector.broadcast %cst : f32 to vector<110x128xf32>
    %10 = arith.maximumf %8, %9 : vector<110x128xf32>
    %c0_7 = arith.constant 0 : index
    %c0_8 = arith.constant 0 : index
    %11 = vector.load %arg6[%c0_7, %c0_8] : memref<110x1xf32, #tpu.memory_space<vmem>>, vector<110x1xf32>
    %12 = vector.broadcast %11 : vector<110x1xf32> to vector<110x128xf32>
    %13 = arith.mulf %10, %12 : vector<110x128xf32>
    %14 = arith.truncf %13 : vector<110x128xf32> to vector<110x128xbf16>
    %c0_9 = arith.constant 0 : index
    %c0_10 = arith.constant 0 : index
    %15 = vector.load %arg9[%c0_9, %c0_10] : memref<110x128xbf16, #tpu.memory_space<vmem>>, vector<110x128xbf16>
    tpu.vector_store %arg9[%c0_9, %c0_10], %14 {strides = array<i32>} : memref<110x128xbf16, #tpu.memory_space<vmem>>, vector<110x128xbf16>,
    %c0_11 = arith.constant 0 : index
    %c0_12 = arith.constant 0 : index
    %16 = vector.load %arg9[%c0_11, %c0_12] : memref<110x128xbf16, #tpu.memory_space<vmem>>, vector<80x128xbf16>
    %c0_13 = arith.constant 0 : index
    %c0_14 = arith.constant 0 : index
    %c0_15 = arith.constant 0 : index
    %17 = vector.load %arg2[%c0_13, %c0_14, %c0_15] : memref<9x128x128xbf16, #tpu.memory_space<vmem>>, vector<1x128x128xbf16>
    %18 = vector.shape_cast %17 : vector<1x128x128xbf16> to vector<128x128xbf16>
    %cst_16 = arith.constant dense<0.000000e+00> : vector<80x128xf32>
    %19 = tpu.matmul %16, %18, %cst_16 {dimension_numbers = #tpu.dot_dimension_numbers<[1], [0], [0], [1], [0, 0, 1, 1], [], []>} : vector<80x128xbf16>, vector<128x128xbf16>, vector<80x128xf32> -> vector<80x128xf32>
    %c1 = arith.constant 1 : index
    %c0_17 = arith.constant 0 : index
    %20 = vector.load %arg9[%c1, %c0_17] : memref<110x128xbf16, #tpu.memory_space<vmem>>, vector<80x128xbf16>
    %c1_18 = arith.constant 1 : index
    %c0_19 = arith.constant 0 : index
    %c0_20 = arith.constant 0 : index
    %21 = vector.load %arg2[%c1_18, %c0_19, %c0_20] : memref<9x128x128xbf16, #tpu.memory_space<vmem>>, vector<1x128x128xbf16>
    %22 = vector.shape_cast %21 : vector<1x128x128xbf16> to vector<128x128xbf16>
    %cst_21 = arith.constant dense<0.000000e+00> : vector<80x128xf32>
    %23 = tpu.matmul %20, %22, %cst_21 {dimension_numbers = #tpu.dot_dimension_numbers<[1], [0], [0], [1], [0, 0, 1, 1], [], []>} : vector<80x128xbf16>, vector<128x128xbf16>, vector<80x128xf32> -> vector<80x128xf32>
    %24 = arith.addf %19, %23 : vector<80x128xf32>
    %c2 = arith.constant 2 : index
    %c0_22 = arith.constant 0 : index
    %25 = vector.load %arg9[%c2, %c0_22] : memref<110x128xbf16, #tpu.memory_space<vmem>>, vector<80x128xbf16>
    %c2_23 = arith.constant 2 : index
    %c0_24 = arith.constant 0 : index
    %c0_25 = arith.constant 0 : index
    %26 = vector.load %arg2[%c2_23, %c0_24, %c0_25] : memref<9x128x128xbf16, #tpu.memory_space<vmem>>, vector<1x128x128xbf16>
    %27 = vector.shape_cast %26 : vector<1x128x128xbf16> to vector<128x128xbf16>
    %cst_26 = arith.constant dense<0.000000e+00> : vector<80x128xf32>
    %28 = tpu.matmul %25, %27, %cst_26 {dimension_numbers = #tpu.dot_dimension_numbers<[1], [0], [0], [1], [0, 0, 1, 1], [], []>} : vector<80x128xbf16>, vector<128x128xbf16>, vector<80x128xf32> -> vector<80x128xf32>
    %29 = arith.addf %24, %28 : vector<80x128xf32>
    %c10 = arith.constant 10 : index
    %c0_27 = arith.constant 0 : index
    %30 = vector.load %arg9[%c10, %c0_27] : memref<110x128xbf16, #tpu.memory_space<vmem>>, vector<80x128xbf16>
    %c3 = arith.constant 3 : index
    %c0_28 = arith.constant 0 : index
    %c0_29 = arith.constant 0 : index
    %31 = vector.load %arg2[%c3, %c0_28, %c0_29] : memref<9x128x128xbf16, #tpu.memory_space<vmem>>, vector<1x128x128xbf16>
    %32 = vector.shape_cast %31 : vector<1x128x128xbf16> to vector<128x128xbf16>
    %cst_30 = arith.constant dense<0.000000e+00> : vector<80x128xf32>
    %33 = tpu.matmul %30, %32, %cst_30 {dimension_numbers = #tpu.dot_dimension_numbers<[1], [0], [0], [1], [0, 0, 1, 1], [], []>} : vector<80x128xbf16>, vector<128x128xbf16>, vector<80x128xf32> -> vector<80x128xf32>
    %34 = arith.addf %29, %33 : vector<80x128xf32>
    %c11 = arith.constant 11 : index
    %c0_31 = arith.constant 0 : index
    %35 = vector.load %arg9[%c11, %c0_31] : memref<110x128xbf16, #tpu.memory_space<vmem>>, vector<80x128xbf16>
    %c4 = arith.constant 4 : index
    %c0_32 = arith.constant 0 : index
    %c0_33 = arith.constant 0 : index
    %36 = vector.load %arg2[%c4, %c0_32, %c0_33] : memref<9x128x128xbf16, #tpu.memory_space<vmem>>, vector<1x128x128xbf16>
    %37 = vector.shape_cast %36 : vector<1x128x128xbf16> to vector<128x128xbf16>
    %cst_34 = arith.constant dense<0.000000e+00> : vector<80x128xf32>
    %38 = tpu.matmul %35, %37, %cst_34 {dimension_numbers = #tpu.dot_dimension_numbers<[1], [0], [0], [1], [0, 0, 1, 1], [], []>} : vector<80x128xbf16>, vector<128x128xbf16>, vector<80x128xf32> -> vector<80x128xf32>
    %39 = arith.addf %34, %38 : vector<80x128xf32>
    %c12 = arith.constant 12 : index
    %c0_35 = arith.constant 0 : index
    %40 = vector.load %arg9[%c12, %c0_35] : memref<110x128xbf16, #tpu.memory_space<vmem>>, vector<80x128xbf16>
    %c5 = arith.constant 5 : index
    %c0_36 = arith.constant 0 : index
    %c0_37 = arith.constant 0 : index
    %41 = vector.load %arg2[%c5, %c0_36, %c0_37] : memref<9x128x128xbf16, #tpu.memory_space<vmem>>, vector<1x128x128xbf16>
    %42 = vector.shape_cast %41 : vector<1x128x128xbf16> to vector<128x128xbf16>
    %cst_38 = arith.constant dense<0.000000e+00> : vector<80x128xf32>
    %43 = tpu.matmul %40, %42, %cst_38 {dimension_numbers = #tpu.dot_dimension_numbers<[1], [0], [0], [1], [0, 0, 1, 1], [], []>} : vector<80x128xbf16>, vector<128x128xbf16>, vector<80x128xf32> -> vector<80x128xf32>
    %44 = arith.addf %39, %43 : vector<80x128xf32>
    %c20 = arith.constant 20 : index
    %c0_39 = arith.constant 0 : index
    %45 = vector.load %arg9[%c20, %c0_39] : memref<110x128xbf16, #tpu.memory_space<vmem>>, vector<80x128xbf16>
    %c6 = arith.constant 6 : index
    %c0_40 = arith.constant 0 : index
    %c0_41 = arith.constant 0 : index
    %46 = vector.load %arg2[%c6, %c0_40, %c0_41] : memref<9x128x128xbf16, #tpu.memory_space<vmem>>, vector<1x128x128xbf16>
    %47 = vector.shape_cast %46 : vector<1x128x128xbf16> to vector<128x128xbf16>
    %cst_42 = arith.constant dense<0.000000e+00> : vector<80x128xf32>
    %48 = tpu.matmul %45, %47, %cst_42 {dimension_numbers = #tpu.dot_dimension_numbers<[1], [0], [0], [1], [0, 0, 1, 1], [], []>} : vector<80x128xbf16>, vector<128x128xbf16>, vector<80x128xf32> -> vector<80x128xf32>
    %49 = arith.addf %44, %48 : vector<80x128xf32>
    %c21 = arith.constant 21 : index
    %c0_43 = arith.constant 0 : index
    %50 = vector.load %arg9[%c21, %c0_43] : memref<110x128xbf16, #tpu.memory_space<vmem>>, vector<80x128xbf16>
    %c7 = arith.constant 7 : index
    %c0_44 = arith.constant 0 : index
    %c0_45 = arith.constant 0 : index
    %51 = vector.load %arg2[%c7, %c0_44, %c0_45] : memref<9x128x128xbf16, #tpu.memory_space<vmem>>, vector<1x128x128xbf16>
    %52 = vector.shape_cast %51 : vector<1x128x128xbf16> to vector<128x128xbf16>
    %cst_46 = arith.constant dense<0.000000e+00> : vector<80x128xf32>
    %53 = tpu.matmul %50, %52, %cst_46 {dimension_numbers = #tpu.dot_dimension_numbers<[1], [0], [0], [1], [0, 0, 1, 1], [], []>} : vector<80x128xbf16>, vector<128x128xbf16>, vector<80x128xf32> -> vector<80x128xf32>
    %54 = arith.addf %49, %53 : vector<80x128xf32>
    %c22 = arith.constant 22 : index
    %c0_47 = arith.constant 0 : index
    %55 = vector.load %arg9[%c22, %c0_47] : memref<110x128xbf16, #tpu.memory_space<vmem>>, vector<80x128xbf16>
    %c8 = arith.constant 8 : index
    %c0_48 = arith.constant 0 : index
    %c0_49 = arith.constant 0 : index
    %56 = vector.load %arg2[%c8, %c0_48, %c0_49] : memref<9x128x128xbf16, #tpu.memory_space<vmem>>, vector<1x128x128xbf16>
    %57 = vector.shape_cast %56 : vector<1x128x128xbf16> to vector<128x128xbf16>
    %cst_50 = arith.constant dense<0.000000e+00> : vector<80x128xf32>
    %58 = tpu.matmul %55, %57, %cst_50 {dimension_numbers = #tpu.dot_dimension_numbers<[1], [0], [0], [1], [0, 0, 1, 1], [], []>} : vector<80x128xbf16>, vector<128x128xbf16>, vector<80x128xf32> -> vector<80x128xf32>
    %59 = arith.addf %54, %58 : vector<80x128xf32>
    %c0_51 = arith.constant 0 : index
    %c0_52 = arith.constant 0 : index
    %60 = vector.load %arg3[%c0_51, %c0_52] : memref<80x1xf32, #tpu.memory_space<vmem>>, vector<80x1xf32>
    %61 = vector.broadcast %60 : vector<80x1xf32> to vector<80x128xf32>
    %62 = arith.mulf %59, %61 : vector<80x128xf32>
    %cst_53 = arith.constant dense<0.000000e+00> : vector<128xf32>
    %63 = vector.multi_reduction <add>, %62, %cst_53 [0] : vector<80x128xf32> to vector<128xf32>
    %64 = vector.shape_cast %63 : vector<128xf32> to vector<1x128xf32>
    %c0_54 = arith.constant 0 : index
    %c0_55 = arith.constant 0 : index
    %c0_56 = arith.constant 0 : index
    %65 = vector.load %arg8[%c0_54, %c0_55, %c0_56] : memref<1x2x128xf32, #tpu.memory_space<vmem>>, vector<1x1x128xf32>
    %66 = vector.shape_cast %65 : vector<1x1x128xf32> to vector<1x128xf32>
    %67 = vector.shape_cast %64 : vector<1x128xf32> to vector<1x1x128xf32>
    tpu.vector_store %arg8[%c0_54, %c0_55, %c0_56], %67 {strides = array<i32>} : memref<1x2x128xf32, #tpu.memory_space<vmem>>, vector<1x1x128xf32>,
    %68 = arith.mulf %62, %59 : vector<80x128xf32>
    %cst_57 = arith.constant dense<0.000000e+00> : vector<128xf32>
    %69 = vector.multi_reduction <add>, %68, %cst_57 [0] : vector<80x128xf32> to vector<128xf32>
    %70 = vector.shape_cast %69 : vector<128xf32> to vector<1x128xf32>
    %c0_58 = arith.constant 0 : index
    %c1_59 = arith.constant 1 : index
    %c0_60 = arith.constant 0 : index
    %71 = vector.load %arg8[%c0_58, %c1_59, %c0_60] : memref<1x2x128xf32, #tpu.memory_space<vmem>>, vector<1x1x128xf32>
    %72 = vector.shape_cast %71 : vector<1x1x128xf32> to vector<1x128xf32>
    %73 = vector.shape_cast %70 : vector<1x128xf32> to vector<1x1x128xf32>
    tpu.vector_store %arg8[%c0_58, %c1_59, %c0_60], %73 {strides = array<i32>} : memref<1x2x128xf32, #tpu.memory_space<vmem>>, vector<1x1x128xf32>,
    %74 = arith.truncf %59 : vector<80x128xf32> to vector<80x128xbf16>
    %c0_61 = arith.constant 0 : index
    %c0_62 = arith.constant 0 : index
    %c0_63 = arith.constant 0 : index
    %75 = vector.load %arg7[%c0_61, %c0_62, %c0_63] : memref<1x80x128xbf16, #tpu.memory_space<vmem>>, vector<1x80x128xbf16>
    %76 = vector.shape_cast %75 : vector<1x80x128xbf16> to vector<80x128xbf16>
    %77 = vector.shape_cast %74 : vector<80x128xbf16> to vector<1x80x128xbf16>
    tpu.vector_store %arg7[%c0_61, %c0_62, %c0_63], %77 {strides = array<i32>} : memref<1x80x128xbf16, #tpu.memory_space<vmem>>, vector<1x80x128xbf16>,
    return
  }
  func.func @transform_0(%arg0: i32) -> (i32, i32, i32, i32) {
    %c0_i32 = arith.constant 0 : i32
    %c0_i32_0 = arith.constant 0 : i32
    %c0_i32_1 = arith.constant 0 : i32
    %c0_i32_2 = arith.constant 0 : i32
    return %arg0, %c0_i32, %c0_i32_0, %c0_i32_1 : i32, i32, i32, i32
  }
  func.func @transform_1(%arg0: i32) -> (i32, i32, i32) {
    %c0_i32 = arith.constant 0 : i32
    %c0_i32_0 = arith.constant 0 : i32
    %c0_i32_1 = arith.constant 0 : i32
    %c0_i32_2 = arith.constant 0 : i32
    return %c0_i32, %c0_i32_0, %c0_i32_1 : i32, i32, i32
  }
  func.func @transform_2(%arg0: i32) -> (i32, i32) {
    %c0_i32 = arith.constant 0 : i32
    %c0_i32_0 = arith.constant 0 : i32
    %c0_i32_1 = arith.constant 0 : i32
    return %c0_i32, %c0_i32_0 : i32, i32
  }
  func.func @transform_3(%arg0: i32) -> (i32, i32) {
    %c0_i32 = arith.constant 0 : i32
    %c0_i32_0 = arith.constant 0 : i32
    %c0_i32_1 = arith.constant 0 : i32
    return %c0_i32, %c0_i32_0 : i32, i32
  }
  func.func @transform_4(%arg0: i32) -> (i32, i32) {
    %c0_i32 = arith.constant 0 : i32
    %c0_i32_0 = arith.constant 0 : i32
    %c0_i32_1 = arith.constant 0 : i32
    return %c0_i32, %c0_i32_0 : i32, i32
  }
  func.func @transform_5(%arg0: i32) -> (i32, i32) {
    %c0_i32 = arith.constant 0 : i32
    %c0_i32_0 = arith.constant 0 : i32
    %c0_i32_1 = arith.constant 0 : i32
    return %c0_i32, %c0_i32_0 : i32, i32
  }
  func.func @transform_6(%arg0: i32) -> (i32, i32, i32) {
    %c0_i32 = arith.constant 0 : i32
    %c0_i32_0 = arith.constant 0 : i32
    %c0_i32_1 = arith.constant 0 : i32
    return %arg0, %c0_i32, %c0_i32_0 : i32, i32, i32
  }
  func.func @transform_7(%arg0: i32) -> (i32, i32, i32) {
    %c0_i32 = arith.constant 0 : i32
    %c0_i32_0 = arith.constant 0 : i32
    %c0_i32_1 = arith.constant 0 : i32
    return %arg0, %c0_i32, %c0_i32_0 : i32, i32, i32
  }
}

module attributes {stable_mosaic.version = 11 : i64} {
  func.func @_bn_add_relu_kernel(%arg0: i32, %arg1: memref<160x128xbf16, #tpu.memory_space<vmem>>, %arg2: memref<160x128xbf16, #tpu.memory_space<vmem>>, %arg3: memref<1x128xf32, #tpu.memory_space<vmem>>, %arg4: memref<1x128xf32, #tpu.memory_space<vmem>>, %arg5: memref<1x128xf32, #tpu.memory_space<vmem>>, %arg6: memref<1x128xf32, #tpu.memory_space<vmem>>, %arg7: memref<160x128xbf16, #tpu.memory_space<vmem>>) attributes {dimension_semantics = [#tpu.dimension_semantics<parallel>], iteration_bounds = array<i64: 1>, scalar_prefetch = 0 : i64, scratch_operands = 0 : i64, tpu.core_type = #tpu.core_type<tc>, window_params = [{transform_indices = @transform_0, window_bounds = array<i64: 160, 128>}, {transform_indices = @transform_1, window_bounds = array<i64: 160, 128>}, {pipeline_mode = #tpu.pipeline_mode<synchronous>, transform_indices = @transform_2, window_bounds = array<i64: 1, 128>}, {pipeline_mode = #tpu.pipeline_mode<synchronous>, transform_indices = @transform_3, window_bounds = array<i64: 1, 128>}, {pipeline_mode = #tpu.pipeline_mode<synchronous>, transform_indices = @transform_4, window_bounds = array<i64: 1, 128>}, {pipeline_mode = #tpu.pipeline_mode<synchronous>, transform_indices = @transform_5, window_bounds = array<i64: 1, 128>}, {transform_indices = @transform_6, window_bounds = array<i64: 160, 128>}]} {
    %c0 = arith.constant 0 : index
    %c0_0 = arith.constant 0 : index
    %0 = vector.load %arg1[%c0, %c0_0] : memref<160x128xbf16, #tpu.memory_space<vmem>>, vector<160x128xbf16>
    %1 = arith.extf %0 : vector<160x128xbf16> to vector<160x128xf32>
    %c0_1 = arith.constant 0 : index
    %c0_2 = arith.constant 0 : index
    %2 = vector.load %arg2[%c0_1, %c0_2] : memref<160x128xbf16, #tpu.memory_space<vmem>>, vector<160x128xbf16>
    %3 = arith.extf %2 : vector<160x128xbf16> to vector<160x128xf32>
    %c0_3 = arith.constant 0 : index
    %c0_4 = arith.constant 0 : index
    %4 = vector.load %arg3[%c0_3, %c0_4] : memref<1x128xf32, #tpu.memory_space<vmem>>, vector<1x128xf32>
    %5 = vector.broadcast %4 : vector<1x128xf32> to vector<160x128xf32>
    %6 = arith.mulf %1, %5 : vector<160x128xf32>
    %c0_5 = arith.constant 0 : index
    %c0_6 = arith.constant 0 : index
    %7 = vector.load %arg4[%c0_5, %c0_6] : memref<1x128xf32, #tpu.memory_space<vmem>>, vector<1x128xf32>
    %8 = vector.broadcast %7 : vector<1x128xf32> to vector<160x128xf32>
    %9 = arith.addf %6, %8 : vector<160x128xf32>
    %c0_7 = arith.constant 0 : index
    %c0_8 = arith.constant 0 : index
    %10 = vector.load %arg5[%c0_7, %c0_8] : memref<1x128xf32, #tpu.memory_space<vmem>>, vector<1x128xf32>
    %11 = vector.broadcast %10 : vector<1x128xf32> to vector<160x128xf32>
    %12 = arith.mulf %3, %11 : vector<160x128xf32>
    %13 = arith.addf %9, %12 : vector<160x128xf32>
    %c0_9 = arith.constant 0 : index
    %c0_10 = arith.constant 0 : index
    %14 = vector.load %arg6[%c0_9, %c0_10] : memref<1x128xf32, #tpu.memory_space<vmem>>, vector<1x128xf32>
    %15 = vector.broadcast %14 : vector<1x128xf32> to vector<160x128xf32>
    %16 = arith.addf %13, %15 : vector<160x128xf32>
    %cst = arith.constant 0.000000e+00 : f32
    %17 = vector.broadcast %cst : f32 to vector<160x128xf32>
    %18 = arith.maximumf %16, %17 : vector<160x128xf32>
    %19 = arith.truncf %18 : vector<160x128xf32> to vector<160x128xbf16>
    %c0_11 = arith.constant 0 : index
    %c0_12 = arith.constant 0 : index
    %20 = vector.load %arg7[%c0_11, %c0_12] : memref<160x128xbf16, #tpu.memory_space<vmem>>, vector<160x128xbf16>
    tpu.vector_store %arg7[%c0_11, %c0_12], %19 {strides = array<i32>} : memref<160x128xbf16, #tpu.memory_space<vmem>>, vector<160x128xbf16>,
    return
  }
  func.func @transform_0(%arg0: i32) -> (i32, i32) {
    %c0_i32 = arith.constant 0 : i32
    %c0_i32_0 = arith.constant 0 : i32
    return %arg0, %c0_i32 : i32, i32
  }
  func.func @transform_1(%arg0: i32) -> (i32, i32) {
    %c0_i32 = arith.constant 0 : i32
    %c0_i32_0 = arith.constant 0 : i32
    return %arg0, %c0_i32 : i32, i32
  }
  func.func @transform_2(%arg0: i32) -> (i32, i32) {
    %c0_i32 = arith.constant 0 : i32
    %c0_i32_0 = arith.constant 0 : i32
    %c0_i32_1 = arith.constant 0 : i32
    return %c0_i32, %c0_i32_0 : i32, i32
  }
  func.func @transform_3(%arg0: i32) -> (i32, i32) {
    %c0_i32 = arith.constant 0 : i32
    %c0_i32_0 = arith.constant 0 : i32
    %c0_i32_1 = arith.constant 0 : i32
    return %c0_i32, %c0_i32_0 : i32, i32
  }
  func.func @transform_4(%arg0: i32) -> (i32, i32) {
    %c0_i32 = arith.constant 0 : i32
    %c0_i32_0 = arith.constant 0 : i32
    %c0_i32_1 = arith.constant 0 : i32
    return %c0_i32, %c0_i32_0 : i32, i32
  }
  func.func @transform_5(%arg0: i32) -> (i32, i32) {
    %c0_i32 = arith.constant 0 : i32
    %c0_i32_0 = arith.constant 0 : i32
    %c0_i32_1 = arith.constant 0 : i32
    return %c0_i32, %c0_i32_0 : i32, i32
  }
  func.func @transform_6(%arg0: i32) -> (i32, i32) {
    %c0_i32 = arith.constant 0 : i32
    %c0_i32_0 = arith.constant 0 : i32
    return %arg0, %c0_i32 : i32, i32
  }
}

</mosaic_0001>

<llo_original>
// kernel: basic_block_forward.5
$region0: #{basic_block_forward.5}
  #allocation0 [shape = 'u32[]', space=smem, size = 0x4, offset = 0x4, fixed_abs, tag = 'smem constant byte address 0x4 - core index']
  #allocation1 [shape = 'u32[144,128]{1,0:T(1,128)}', space=vmem, size = 0x12000, scoped, tag = 'internal scratch']
  %s0 = inlined_call_operand.vmem [shape: bf16[160,128], index: 0, kind: input, shape index: {}]
  %s1 = inlined_call_operand.vmem [shape: bf16[160,128], index: 1, kind: input, shape index: {}]
  %s2 = inlined_call_operand.vmem [shape: f32[1,128], index: 2, kind: input, shape index: {}]
  %s3 = inlined_call_operand.vmem [shape: f32[1,128], index: 3, kind: input, shape index: {}]
  %s4 = inlined_call_operand.vmem [shape: f32[1,128], index: 4, kind: input, shape index: {}]
  %s5 = inlined_call_operand.vmem [shape: f32[1,128], index: 5, kind: input, shape index: {}]
  %s6 = inlined_call_operand.vmem [shape: bf16[160,128], index: 6, kind: output, shape index: {}]
  %s7 = sld [smem:[#allocation0]]
  $region34: #{basic_block_forward.5} parent=0
    _
  %s9 = ssub.s32 1, %s7
  %s10 = scalar_select 0, %s9, %s7
  // Predicated region
  $region2: #{basic_block_forward.5} parent=0 // pred_check
    _
  $region3: #{basic_block_forward.5} parent=0 // pred_check_branch
    %12 = sbr.rel (0) target = $region5
  $region4: #{basic_block_forward.5} parent=0 // pred_region
    _
  $region5: #{basic_block_forward.5} parent=0 // pred_fallthru
    _
  // Predicated region
  $region6: #{basic_block_forward.5} parent=0 // pred_check
    _
  $region7: #{basic_block_forward.5} parent=0 // pred_check_branch
    %14 = sbr.rel (0) target = $region9
  $region8: #{basic_block_forward.5} parent=0 // pred_region
    _
  $region9: #{basic_block_forward.5} parent=0 // pred_fallthru
    _
  // Predicated region
  $region10: #{basic_block_forward.5} parent=0 // pred_check
    _
  $region11: #{basic_block_forward.5} parent=0 // pred_check_branch
    %16 = sbr.rel (0) target = $region13
  $region12: #{basic_block_forward.5} parent=0 // pred_region
    _
  $region13: #{basic_block_forward.5} parent=0 // pred_fallthru
    _
  // Predicated region
  $region14: #{basic_block_forward.5} parent=0 // pred_check
    _
  $region15: #{basic_block_forward.5} parent=0 // pred_check_branch
    %18 = sbr.rel (0) target = $region17
  $region16: #{basic_block_forward.5} parent=0 // pred_region
    _
  $region17: #{basic_block_forward.5} parent=0 // pred_fallthru
    _
  // Predicated region
  $region18: #{basic_block_forward.5} parent=0 // pred_check
    _
  $region19: #{basic_block_forward.5} parent=0 // pred_check_branch
    %20 = sbr.rel (0) target = $region21
  $region20: #{basic_block_forward.5} parent=0 // pred_region
    _
  $region21: #{basic_block_forward.5} parent=0 // pred_fallthru
    _
  // Predicated region
  $region22: #{basic_block_forward.5} parent=0 // pred_check
    _
  $region23: #{basic_block_forward.5} parent=0 // pred_check_branch
    %22 = sbr.rel (0) target = $region25
  $region24: #{basic_block_forward.5} parent=0 // pred_region
    _
  $region25: #{basic_block_forward.5} parent=0 // pred_fallthru
    _
  %v23 = vld [vmem:[%s0] sm:$0xf]
  %v24 = vld [vmem:[%s0 + $0x4] sm:$0xf]
  %v25 = vld [vmem:[%s0 + $0x8] sm:$0xf]
  %v26 = vld [vmem:[%s0 + $0xc] sm:$0xf]
  %v27 = vld [vmem:[%s0 + $0x10] sm:$0xf]
  %v28 = vld [vmem:[%s0 + $0x14] sm:$0xf]
  %v29 = vld [vmem:[%s0 + $0x18] sm:$0xf]
  %v30 = vld [vmem:[%s0 + $0x1c] sm:$0xf]
  %v31 = vld [vmem:[%s0 + $0x20] sm:$0xf]
  %v32 = vld [vmem:[%s0 + $0x24] sm:$0xf]
  %v33 = vld [vmem:[%s0 + $0x28] sm:$0xf]
  %v34 = vld [vmem:[%s0 + $0x2c] sm:$0xf]
  %v35 = vld [vmem:[%s0 + $0x30] sm:$0xf]
  %v36 = vld [vmem:[%s0 + $0x34] sm:$0xf]
  %v37 = vld [vmem:[%s0 + $0x38] sm:$0xf]
  %v38 = vld [vmem:[%s0 + $0x3c] sm:$0xf]
  %v39 = vld [vmem:[%s0 + $0x40] sm:$0xf]
  %v40 = vld [vmem:[%s0 + $0x44] sm:$0xf]
  %v41 = vld [vmem:[%s0 + $0x48] sm:$0xf]
  %v42 = vld [vmem:[%s0 + $0x4c] sm:$0xf]
  %v43 = vunpack.c.l.bf16 %v23
  %v44 = vunpack.c.l.bf16 %v24
  %v45 = vunpack.c.l.bf16 %v25
  %v46 = vunpack.c.l.bf16 %v26
  %v47 = vunpack.c.l.bf16 %v27
  %v48 = vunpack.c.l.bf16 %v28
  %v49 = vunpack.c.l.bf16 %v29
  %v50 = vunpack.c.l.bf16 %v30
  %v51 = vunpack.c.l.bf16 %v31
  %v52 = vunpack.c.l.bf16 %v32
  %v53 = vunpack.c.l.bf16 %v33
  %v54 = vunpack.c.l.bf16 %v34
  %v55 = vunpack.c.l.bf16 %v35
  %v56 = vunpack.c.l.bf16 %v36
  %v57 = vunpack.c.l.bf16 %v37
  %v58 = vunpack.c.l.bf16 %v38
  %v59 = vunpack.c.l.bf16 %v39
  %v60 = vunpack.c.l.bf16 %v40
  %v61 = vunpack.c.l.bf16 %v41
  %v62 = vunpack.c.l.bf16 %v42
  %v63 = vld [vmem:[%s1] sm:$0xf]
  %v64 = vld [vmem:[%s1 + $0x4] sm:$0xf]
  %v65 = vld [vmem:[%s1 + $0x8] sm:$0xf]
  %v66 = vld [vmem:[%s1 + $0xc] sm:$0xf]
  %v67 = vld [vmem:[%s1 + $0x10] sm:$0xf]
  %v68 = vld [vmem:[%s1 + $0x14] sm:$0xf]
  %v69 = vld [vmem:[%s1 + $0x18] sm:$0xf]
  %v70 = vld [vmem:[%s1 + $0x1c] sm:$0xf]
  %v71 = vld [vmem:[%s1 + $0x20] sm:$0xf]
  %v72 = vld [vmem:[%s1 + $0x24] sm:$0xf]
  %v73 = vld [vmem:[%s1 + $0x28] sm:$0xf]
  %v74 = vld [vmem:[%s1 + $0x2c] sm:$0xf]
  %v75 = vld [vmem:[%s1 + $0x30] sm:$0xf]
  %v76 = vld [vmem:[%s1 + $0x34] sm:$0xf]
  %v77 = vld [vmem:[%s1 + $0x38] sm:$0xf]
  %v78 = vld [vmem:[%s1 + $0x3c] sm:$0xf]
  %v79 = vld [vmem:[%s1 + $0x40] sm:$0xf]
  %v80 = vld [vmem:[%s1 + $0x44] sm:$0xf]
  %v81 = vld [vmem:[%s1 + $0x48] sm:$0xf]
  %v82 = vld [vmem:[%s1 + $0x4c] sm:$0xf]
  %v83 = vunpack.c.l.bf16 %v63
  %v84 = vunpack.c.l.bf16 %v64
  %v85 = vunpack.c.l.bf16 %v65
  %v86 = vunpack.c.l.bf16 %v66
  %v87 = vunpack.c.l.bf16 %v67
  %v88 = vunpack.c.l.bf16 %v68
  %v89 = vunpack.c.l.bf16 %v69
  %v90 = vunpack.c.l.bf16 %v70
  %v91 = vunpack.c.l.bf16 %v71
  %v92 = vunpack.c.l.bf16 %v72
  %v93 = vunpack.c.l.bf16 %v73
  %v94 = vunpack.c.l.bf16 %v74
  %v95 = vunpack.c.l.bf16 %v75
  %v96 = vunpack.c.l.bf16 %v76
  %v97 = vunpack.c.l.bf16 %v77
  %v98 = vunpack.c.l.bf16 %v78
  %v99 = vunpack.c.l.bf16 %v79
  %v100 = vunpack.c.l.bf16 %v80
  %v101 = vunpack.c.l.bf16 %v81
  %v102 = vunpack.c.l.bf16 %v82
  %v103 = vld [vmem:[%s2] sm:$0x1]
  %v105 = vlaneseq
  %v106 = vshrl.u32 %v105, 7
  %v107 = vsub.s32 0, %v106
  %v108 = vrot.slane %v103, %v107
  %v110 = vmul.f32 %v43, %v108
  %v111 = vmul.f32 %v44, %v108
  %v112 = vmul.f32 %v45, %v108
  %v113 = vmul.f32 %v46, %v108
  %v114 = vmul.f32 %v47, %v108
  %v115 = vmul.f32 %v48, %v108
  %v116 = vmul.f32 %v49, %v108
  %v117 = vmul.f32 %v50, %v108
  %v118 = vmul.f32 %v51, %v108
  %v119 = vmul.f32 %v52, %v108
  %v120 = vmul.f32 %v53, %v108
  %v121 = vmul.f32 %v54, %v108
  %v122 = vmul.f32 %v55, %v108
  %v123 = vmul.f32 %v56, %v108
  %v124 = vmul.f32 %v57, %v108
  %v125 = vmul.f32 %v58, %v108
  %v126 = vmul.f32 %v59, %v108
  %v127 = vmul.f32 %v60, %v108
  %v128 = vmul.f32 %v61, %v108
  %v129 = vmul.f32 %v62, %v108
  %v130 = vld [vmem:[%s3] sm:$0x1]
  %v132 = vlaneseq
  %v133 = vshrl.u32 %v132, 7
  %v134 = vsub.s32 0, %v133
  %v135 = vrot.slane %v130, %v134
  %v137 = vadd.f32 %v110, %v135
  %v138 = vadd.f32 %v111, %v135
  %v139 = vadd.f32 %v112, %v135
  %v140 = vadd.f32 %v113, %v135
  %v141 = vadd.f32 %v114, %v135
  %v142 = vadd.f32 %v115, %v135
  %v143 = vadd.f32 %v116, %v135
  %v144 = vadd.f32 %v117, %v135
  %v145 = vadd.f32 %v118, %v135
  %v146 = vadd.f32 %v119, %v135
  %v147 = vadd.f32 %v120, %v135
  %v148 = vadd.f32 %v121, %v135
  %v149 = vadd.f32 %v122, %v135
  %v150 = vadd.f32 %v123, %v135
  %v151 = vadd.f32 %v124, %v135
  %v152 = vadd.f32 %v125, %v135
  %v153 = vadd.f32 %v126, %v135
  %v154 = vadd.f32 %v127, %v135
  %v155 = vadd.f32 %v128, %v135
  %v156 = vadd.f32 %v129, %v135
  %v157 = vld [vmem:[%s4] sm:$0x1]
  %v159 = vlaneseq
  %v160 = vshrl.u32 %v159, 7
  %v161 = vsub.s32 0, %v160
  %v162 = vrot.slane %v157, %v161
  %v164 = vmul.f32 %v83, %v162
  %v165 = vmul.f32 %v84, %v162
  %v166 = vmul.f32 %v85, %v162
  %v167 = vmul.f32 %v86, %v162
  %v168 = vmul.f32 %v87, %v162
  %v169 = vmul.f32 %v88, %v162
  %v170 = vmul.f32 %v89, %v162
  %v171 = vmul.f32 %v90, %v162
  %v172 = vmul.f32 %v91, %v162
  %v173 = vmul.f32 %v92, %v162
  %v174 = vmul.f32 %v93, %v162
  %v175 = vmul.f32 %v94, %v162
  %v176 = vmul.f32 %v95, %v162
  %v177 = vmul.f32 %v96, %v162
  %v178 = vmul.f32 %v97, %v162
  %v179 = vmul.f32 %v98, %v162
  %v180 = vmul.f32 %v99, %v162
  %v181 = vmul.f32 %v100, %v162
  %v182 = vmul.f32 %v101, %v162
  %v183 = vmul.f32 %v102, %v162
  %v184 = vadd.f32 %v137, %v164
  %v185 = vadd.f32 %v138, %v165
  %v186 = vadd.f32 %v139, %v166
  %v187 = vadd.f32 %v140, %v167
  %v188 = vadd.f32 %v141, %v168
  %v189 = vadd.f32 %v142, %v169
  %v190 = vadd.f32 %v143, %v170
  %v191 = vadd.f32 %v144, %v171
  %v192 = vadd.f32 %v145, %v172
  %v193 = vadd.f32 %v146, %v173
  %v194 = vadd.f32 %v147, %v174
  %v195 = vadd.f32 %v148, %v175
  %v196 = vadd.f32 %v149, %v176
  %v197 = vadd.f32 %v150, %v177
  %v198 = vadd.f32 %v151, %v178
  %v199 = vadd.f32 %v152, %v179
  %v200 = vadd.f32 %v153, %v180
  %v201 = vadd.f32 %v154, %v181
  %v202 = vadd.f32 %v155, %v182
  %v203 = vadd.f32 %v156, %v183
  %v204 = vld [vmem:[%s5] sm:$0x1]
  %v206 = vlaneseq
  %v207 = vshrl.u32 %v206, 7
  %v208 = vsub.s32 0, %v207
  %v209 = vrot.slane %v204, %v208
  %v211 = vadd.f32 %v184, %v209
  %v212 = vadd.f32 %v185, %v209
  %v213 = vadd.f32 %v186, %v209
  %v214 = vadd.f32 %v187, %v209
  %v215 = vadd.f32 %v188, %v209
  %v216 = vadd.f32 %v189, %v209
  %v217 = vadd.f32 %v190, %v209
  %v218 = vadd.f32 %v191, %v209
  %v219 = vadd.f32 %v192, %v209
  %v220 = vadd.f32 %v193, %v209
  %v221 = vadd.f32 %v194, %v209
  %v222 = vadd.f32 %v195, %v209
  %v223 = vadd.f32 %v196, %v209
  %v224 = vadd.f32 %v197, %v209
  %v225 = vadd.f32 %v198, %v209
  %v226 = vadd.f32 %v199, %v209
  %v227 = vadd.f32 %v200, %v209
  %v228 = vadd.f32 %v201, %v209
  %v229 = vadd.f32 %v202, %v209
  %v230 = vadd.f32 %v203, %v209
  %v231 = vmax.f32 %v211, 0.0
  %v232 = vmax.f32 %v212, 0.0
  %v233 = vmax.f32 %v213, 0.0
  %v234 = vmax.f32 %v214, 0.0
  %v235 = vmax.f32 %v215, 0.0
  %v236 = vmax.f32 %v216, 0.0
  %v237 = vmax.f32 %v217, 0.0
  %v238 = vmax.f32 %v218, 0.0
  %v239 = vmax.f32 %v219, 0.0
  %v240 = vmax.f32 %v220, 0.0
  %v241 = vmax.f32 %v221, 0.0
  %v242 = vmax.f32 %v222, 0.0
  %v243 = vmax.f32 %v223, 0.0
  %v244 = vmax.f32 %v224, 0.0
  %v245 = vmax.f32 %v225, 0.0
  %v246 = vmax.f32 %v226, 0.0
  %v247 = vmax.f32 %v227, 0.0
  %v248 = vmax.f32 %v228, 0.0
  %v249 = vmax.f32 %v229, 0.0
  %v250 = vmax.f32 %v230, 0.0
  %v251 = vpack.c.bf16 %v232, %v231
  %v252 = vpack.c.bf16 %v234, %v233
  %v253 = vpack.c.bf16 %v236, %v235
  %v254 = vpack.c.bf16 %v238, %v237
  %v255 = vpack.c.bf16 %v240, %v239
  %v256 = vpack.c.bf16 %v242, %v241
  %v257 = vpack.c.bf16 %v244, %v243
  %v258 = vpack.c.bf16 %v246, %v245
  %v259 = vpack.c.bf16 %v248, %v247
  %v260 = vpack.c.bf16 %v250, %v249
  %v271 = vunpack.c.l.b16 %v251
  %v272 = vunpack.c.h.b16 %v251
  %v273 = vunpack.c.l.b16 %v252
  %v274 = vunpack.c.h.b16 %v252
  %v275 = vunpack.c.l.b16 %v253
  %v276 = vunpack.c.h.b16 %v253
  %v277 = vunpack.c.l.b16 %v254
  %v278 = vunpack.c.h.b16 %v254
  %v279 = vunpack.c.l.b16 %v255
  %v280 = vunpack.c.h.b16 %v255
  %v281 = vunpack.c.l.b16 %v256
  %v282 = vunpack.c.h.b16 %v256
  %v283 = vunpack.c.l.b16 %v257
  %v284 = vunpack.c.h.b16 %v257
  %v285 = vunpack.c.l.b16 %v258
  %v286 = vunpack.c.h.b16 %v258
  %v287 = vunpack.c.l.b16 %v259
  %v288 = vunpack.c.h.b16 %v259
  %v289 = vunpack.c.l.b16 %v260
  %v290 = vunpack.c.h.b16 %v260
  %v291 = vpack.c.b16 %v271, %v271
  %v292 = vpack.c.b16 %v272, %v272
  %v293 = vpack.c.b16 %v273, %v273
  %v294 = vpack.c.b16 %v274, %v274
  %v295 = vpack.c.b16 %v275, %v275
  %v296 = vpack.c.b16 %v276, %v276
  %v297 = vpack.c.b16 %v277, %v277
  %v298 = vpack.c.b16 %v278, %v278
  %v299 = vpack.c.b16 %v279, %v279
  %v300 = vpack.c.b16 %v280, %v280
  %v301 = vpack.c.b16 %v281, %v281
  %v302 = vpack.c.b16 %v282, %v282
  %v303 = vpack.c.b16 %v283, %v283
  %v304 = vpack.c.b16 %v284, %v284
  %v305 = vpack.c.b16 %v285, %v285
  %v306 = vpack.c.b16 %v286, %v286
  %v307 = vpack.c.b16 %v287, %v287
  %v308 = vpack.c.b16 %v288, %v288
  %v309 = vpack.c.b16 %v289, %v289
  %v310 = vpack.c.b16 %v290, %v290
  %331 = vst [vmem:[%s6] sm:$0xf] %v291
  %332 = vst [vmem:[%s6 + $0x4] sm:$0xf] %v292
  %333 = vst [vmem:[%s6 + $0x8] sm:$0xf] %v293
  %334 = vst [vmem:[%s6 + $0xc] sm:$0xf] %v294
  %335 = vst [vmem:[%s6 + $0x10] sm:$0xf] %v295
  %336 = vst [vmem:[%s6 + $0x14] sm:$0xf] %v296
  %337 = vst [vmem:[%s6 + $0x18] sm:$0xf] %v297
  %338 = vst [vmem:[%s6 + $0x1c] sm:$0xf] %v298
  %339 = vst [vmem:[%s6 + $0x20] sm:$0xf] %v299
  %340 = vst [vmem:[%s6 + $0x24] sm:$0xf] %v300
  %341 = vst [vmem:[%s6 + $0x28] sm:$0xf] %v301
  %342 = vst [vmem:[%s6 + $0x2c] sm:$0xf] %v302
  %343 = vst [vmem:[%s6 + $0x30] sm:$0xf] %v303
  %344 = vst [vmem:[%s6 + $0x34] sm:$0xf] %v304
  %345 = vst [vmem:[%s6 + $0x38] sm:$0xf] %v305
  %346 = vst [vmem:[%s6 + $0x3c] sm:$0xf] %v306
  %347 = vst [vmem:[%s6 + $0x40] sm:$0xf] %v307
  %348 = vst [vmem:[%s6 + $0x44] sm:$0xf] %v308
  %349 = vst [vmem:[%s6 + $0x48] sm:$0xf] %v309
  %350 = vst [vmem:[%s6 + $0x4c] sm:$0xf] %v310
  // Predicated region
  $region26: #{basic_block_forward.5} parent=0 // pred_check
    _
  $region27: #{basic_block_forward.5} parent=0 // pred_check_branch
    %352 = sbr.rel (0) target = $region29
  $region28: #{basic_block_forward.5} parent=0 // pred_region
    _
  $region29: #{basic_block_forward.5} parent=0 // pred_fallthru
    _
  // Predicated region
  $region30: #{basic_block_forward.5} parent=0 // pred_check
    _
  $region31: #{basic_block_forward.5} parent=0 // pred_check_branch
    %354 = sbr.rel (0) target = $region33
  $region32: #{basic_block_forward.5} parent=0 // pred_region
    _
  $region33: #{basic_block_forward.5} parent=0 // pred_fallthru
    _

// kernel: basic_block_forward.4
$region0: #{basic_block_forward.4}
  #allocation0 [shape = 'u32[]', space=smem, size = 0x4, offset = 0x4, fixed_abs, tag = 'smem constant byte address 0x4 - core index']
  #allocation1 [shape = 'u32[144,128]{1,0:T(1,128)}', space=vmem, size = 0x12000, scoped, tag = 'internal scratch']
  #allocation2 [shape = 'bf16[110,128]{1,0:T(8,128)(2,1)}', space=vmem, size = 0x7000, scoped, tag = 'scratch operand']
  %s0 = inlined_call_operand.vmem [shape: bf16[2,1,110,128], index: 0, kind: input, shape index: {}]
  %s1 = inlined_call_operand.vmem [shape: bf16[9,128,128], index: 1, kind: input, shape index: {}]
  %s2 = inlined_call_operand.vmem [shape: f32[80,1], index: 2, kind: input, shape index: {}]
  %s3 = inlined_call_operand.vmem [shape: f32[1,128], index: 3, kind: input, shape index: {}]
  %s4 = inlined_call_operand.vmem [shape: f32[1,128], index: 4, kind: input, shape index: {}]
  %s5 = inlined_call_operand.vmem [shape: f32[110,1], index: 5, kind: input, shape index: {}]
  %s6 = inlined_call_operand.vmem [shape: bf16[2,80,128], index: 6, kind: output, shape index: {0}]
  %s7 = inlined_call_operand.vmem [shape: f32[2,2,128], index: 7, kind: output, shape index: {1}]
  %8 = xla_tuple %s6, %s7
  %s9 = sld [smem:[#allocation0]]
  $region65: #{basic_block_forward.4} parent=0
    _
  %s11 = ssub.s32 1, %s9
  %s12 = scalar_select 0, %s11, %s9
  loop: start=0, step=1, limit=4
  $region2: #{basic_block_forward.4} parent=0 // loop_pre_header
    _
  $region3: #{basic_block_forward.4} parent=0 // loop_header
    %s14 = sphi 0, %s18
    %p15 = scmp.ge.s32.totalorder %s14, 4
    %s24 = sphi 0, %s26
    %s27 = sphi 0, %s24
    %s28 = sphi 0, %s27
    %s44 = sphi 0, %s28
    %s48 = sphi 0, %s48
    %s50 = sphi 0, %s48
    %s51 = sphi 0, %s50
    %s65 = sphi 0, %s51
    %s69 = sphi 0, %s69
    %s71 = sphi 0, %s69
    %s72 = sphi 0, %s71
    %s86 = sphi 0, %s72
    %s90 = sphi 0, %s90
    %s92 = sphi 0, %s90
    %s93 = sphi 0, %s92
    %s107 = sphi 0, %s93
    %s111 = sphi 0, %s111
    %s113 = sphi 0, %s111
    %s114 = sphi 0, %s113
    %s128 = sphi 0, %s114
    %s132 = sphi 0, %s132
    %s134 = sphi 0, %s132
    %s135 = sphi 0, %s134
    %s149 = sphi 0, %s135
    %s155 = sphi 0, %s157
    %s158 = sphi 0, %s155
    %s159 = sphi 0, %s158
    %s175 = sphi 0, %s159
    %s181 = sphi 0, %s183
    %s184 = sphi 0, %s181
    %s185 = sphi 0, %s184
    %s201 = sphi 0, %s185
  $region4: #{basic_block_forward.4} parent=0 // loop_header_branch
    %17 = sbr.rel (%p15) target = $region8
  $region5: #{basic_block_forward.4} parent=0 // loop_body
    %s19 = ssub.s32 %s14, 1
    %s20 = ssub.s32 %s14, 2
    %s21 = sadd.s32 %s14, 1
    %s22 = ssub.s32 %s14, %s21
    %p23 = scmp.eq.s32.totalorder %s22, 0
    %s25 = sadd.s32 %s24, 1
    %s26 = scalar_select %p23, %s24, %s25
    %p29 = pneg %p23
    %p30 = scmp.eq.s32.totalorder %s14, 1
    %p31 = por %p29, %p30
    %p32 = scmp.ne.s32.totalorder %s24, %s27
    %p33 = scmp.eq.s32.totalorder %s14, 0
    %p34 = por %p32, %p33
    %p35 = scmp.ne.s32.totalorder %s24, %s27
    %p36 = scmp.eq.s32.totalorder %s19, 1
    %p37 = por %p35, %p36
    %p38 = scmp.ne.s32.totalorder %s27, %s28
    %p39 = scmp.eq.s32.totalorder %s19, 0
    %p40 = por %p38, %p39
    %p41 = scmp.ne.s32.totalorder %s27, %s28
    %p42 = scmp.eq.s32.totalorder %s20, 1
    %p43 = por %p41, %p42
    %p45 = scmp.ne.s32.totalorder %s28, %s44
    %p46 = scmp.eq.s32.totalorder %s20, 0
    %p47 = por %p45, %p46
    %s49 = sadd.s32 %s48, 1
    %p52 = scmp.eq.s32.totalorder %s14, 1
    %p53 = scmp.ne.s32.totalorder %s48, %s50
    %p54 = scmp.eq.s32.totalorder %s14, 0
    %p55 = por %p53, %p54
    %p56 = scmp.ne.s32.totalorder %s48, %s50
    %p57 = scmp.eq.s32.totalorder %s19, 1
    %p58 = por %p56, %p57
    %p59 = scmp.ne.s32.totalorder %s50, %s51
    %p60 = scmp.eq.s32.totalorder %s19, 0
    %p61 = por %p59, %p60
    %p62 = scmp.ne.s32.totalorder %s50, %s51
    %p63 = scmp.eq.s32.totalorder %s20, 1
    %p64 = por %p62, %p63
    %p66 = scmp.ne.s32.totalorder %s51, %s65
    %p67 = scmp.eq.s32.totalorder %s20, 0
    %p68 = por %p66, %p67
    %s70 = sadd.s32 %s69, 1
    %p73 = scmp.eq.s32.totalorder %s14, 1
    %p74 = scmp.ne.s32.totalorder %s69, %s71
    %p75 = scmp.eq.s32.totalorder %s14, 0
    %p76 = por %p74, %p75
    %p77 = scmp.ne.s32.totalorder %s69, %s71
    %p78 = scmp.eq.s32.totalorder %s19, 1
    %p79 = por %p77, %p78
    %p80 = scmp.ne.s32.totalorder %s71, %s72
    %p81 = scmp.eq.s32.totalorder %s19, 0
    %p82 = por %p80, %p81
    %p83 = scmp.ne.s32.totalorder %s71, %s72
    %p84 = scmp.eq.s32.totalorder %s20, 1
    %p85 = por %p83, %p84
    %p87 = scmp.ne.s32.totalorder %s72, %s86
    %p88 = scmp.eq.s32.totalorder %s20, 0
    %p89 = por %p87, %p88
    %s91 = sadd.s32 %s90, 1
    %p94 = scmp.eq.s32.totalorder %s14, 1
    %p95 = scmp.ne.s32.totalorder %s90, %s92
    %p96 = scmp.eq.s32.totalorder %s14, 0
    %p97 = por %p95, %p96
    %p98 = scmp.ne.s32.totalorder %s90, %s92
    %p99 = scmp.eq.s32.totalorder %s19, 1
    %p100 = por %p98, %p99
    %p101 = scmp.ne.s32.totalorder %s92, %s93
    %p102 = scmp.eq.s32.totalorder %s19, 0
    %p103 = por %p101, %p102
    %p104 = scmp.ne.s32.totalorder %s92, %s93
    %p105 = scmp.eq.s32.totalorder %s20, 1
    %p106 = por %p104, %p105
    %p108 = scmp.ne.s32.totalorder %s93, %s107
    %p109 = scmp.eq.s32.totalorder %s20, 0
    %p110 = por %p108, %p109
    %s112 = sadd.s32 %s111, 1
    %p115 = scmp.eq.s32.totalorder %s14, 1
    %p116 = scmp.ne.s32.totalorder %s111, %s113
    %p117 = scmp.eq.s32.totalorder %s14, 0
    %p118 = por %p116, %p117
    %p119 = scmp.ne.s32.totalorder %s111, %s113
    %p120 = scmp.eq.s32.totalorder %s19, 1
    %p121 = por %p119, %p120
    %p122 = scmp.ne.s32.totalorder %s113, %s114
    %p123 = scmp.eq.s32.totalorder %s19, 0
    %p124 = por %p122, %p123
    %p125 = scmp.ne.s32.totalorder %s113, %s114
    %p126 = scmp.eq.s32.totalorder %s20, 1
    %p127 = por %p125, %p126
    %p129 = scmp.ne.s32.totalorder %s114, %s128
    %p130 = scmp.eq.s32.totalorder %s20, 0
    %p131 = por %p129, %p130
    %s133 = sadd.s32 %s132, 1
    %p136 = scmp.eq.s32.totalorder %s14, 1
    %p137 = scmp.ne.s32.totalorder %s132, %s134
    %p138 = scmp.eq.s32.totalorder %s14, 0
    %p139 = por %p137, %p138
    %p140 = scmp.ne.s32.totalorder %s132, %s134
    %p141 = scmp.eq.s32.totalorder %s19, 1
    %p142 = por %p140, %p141
    %p143 = scmp.ne.s32.totalorder %s134, %s135
    %p144 = scmp.eq.s32.totalorder %s19, 0
    %p145 = por %p143, %p144
    %p146 = scmp.ne.s32.totalorder %s134, %s135
    %p147 = scmp.eq.s32.totalorder %s20, 1
    %p148 = por %p146, %p147
    %p150 = scmp.ne.s32.totalorder %s135, %s149
    %p151 = scmp.eq.s32.totalorder %s20, 0
    %p152 = por %p150, %p151
    %s153 = ssub.s32 %s14, %s21
    %p154 = scmp.eq.s32.totalorder %s153, 0
    %s156 = sadd.s32 %s155, 1
    %s157 = scalar_select %p154, %s155, %s156
    %p160 = pneg %p154
    %p161 = scmp.eq.s32.totalorder %s14, 1
    %p162 = por %p160, %p161
    %p163 = scmp.ne.s32.totalorder %s155, %s158
    %p164 = scmp.eq.s32.totalorder %s14, 0
    %p165 = por %p163, %p164
    %p166 = scmp.ne.s32.totalorder %s155, %s158
    %p167 = scmp.eq.s32.totalorder %s19, 1
    %p168 = por %p166, %p167
    %p169 = scmp.ne.s32.totalorder %s158, %s159
    %p170 = scmp.eq.s32.totalorder %s19, 0
    %p171 = por %p169, %p170
    %p172 = scmp.ne.s32.totalorder %s158, %s159
    %p173 = scmp.eq.s32.totalorder %s20, 1
    %p174 = por %p172, %p173
    %p176 = scmp.ne.s32.totalorder %s159, %s175
    %p177 = scmp.eq.s32.totalorder %s20, 0
    %p178 = por %p176, %p177
    %s179 = ssub.s32 %s14, %s21
    %p180 = scmp.eq.s32.totalorder %s179, 0
    %s182 = sadd.s32 %s181, 1
    %s183 = scalar_select %p180, %s181, %s182
    %p186 = pneg %p180
    %p187 = scmp.eq.s32.totalorder %s14, 1
    %p188 = por %p186, %p187
    %p189 = scmp.ne.s32.totalorder %s181, %s184
    %p190 = scmp.eq.s32.totalorder %s14, 0
    %p191 = por %p189, %p190
    %p192 = scmp.ne.s32.totalorder %s181, %s184
    %p193 = scmp.eq.s32.totalorder %s19, 1
    %p194 = por %p192, %p193
    %p195 = scmp.ne.s32.totalorder %s184, %s185
    %p196 = scmp.eq.s32.totalorder %s19, 0
    %p197 = por %p195, %p196
    %p198 = scmp.ne.s32.totalorder %s184, %s185
    %p199 = scmp.eq.s32.totalorder %s20, 1
    %p200 = por %p198, %p199
    %p202 = scmp.ne.s32.totalorder %s185, %s201
    %p203 = scmp.eq.s32.totalorder %s20, 0
    %p204 = por %p202, %p203
    %p205 = scmp.le.s32.totalorder 1, %s14
    %p206 = scmp.lt.s32.totalorder %s14, 3
    %p207 = pnand %p205, %p206
    %p208 = pneg %p207
    // Predicated region
    $region9: #{basic_block_forward.4} parent=5 // pred_check
      _
    $region10: #{basic_block_forward.4} parent=5 // pred_check_branch
      %210 = sbr.rel (%p207) target = $region12
    $region11: #{basic_block_forward.4} parent=5 // pred_region
      %s211 = ssub.s32 %s14, 1
      // Predicated region
      $region13: #{basic_block_forward.4} parent=11 // pred_check
        %p212 = pneg %p61
      $region14: #{basic_block_forward.4} parent=11 // pred_check_branch
        %214 = sbr.rel (%p212) target = $region16
      $region15: #{basic_block_forward.4} parent=11 // pred_region
        _
      $region16: #{basic_block_forward.4} parent=11 // pred_fallthru
        _
      // Predicated region
      $region17: #{basic_block_forward.4} parent=11 // pred_check
        %p215 = pneg %p82
      $region18: #{basic_block_forward.4} parent=11 // pred_check_branch
        %217 = sbr.rel (%p215) target = $region20
      $region19: #{basic_block_forward.4} parent=11 // pred_region
        _
      $region20: #{basic_block_forward.4} parent=11 // pred_fallthru
        _
      // Predicated region
      $region21: #{basic_block_forward.4} parent=11 // pred_check
        %p218 = pneg %p103
      $region22: #{basic_block_forward.4} parent=11 // pred_check_branch
        %220 = sbr.rel (%p218) target = $region24
      $region23: #{basic_block_forward.4} parent=11 // pred_region
        _
      $region24: #{basic_block_forward.4} parent=11 // pred_fallthru
        _
      // Predicated region
      $region25: #{basic_block_forward.4} parent=11 // pred_check
        %p221 = pneg %p124
      $region26: #{basic_block_forward.4} parent=11 // pred_check_branch
        %223 = sbr.rel (%p221) target = $region28
      $region27: #{basic_block_forward.4} parent=11 // pred_region
        _
      $region28: #{basic_block_forward.4} parent=11 // pred_fallthru
        _
      // Predicated region
      $region29: #{basic_block_forward.4} parent=11 // pred_check
        %p224 = pneg %p145
      $region30: #{basic_block_forward.4} parent=11 // pred_check_branch
        %226 = sbr.rel (%p224) target = $region32
      $region31: #{basic_block_forward.4} parent=11 // pred_region
        _
      $region32: #{basic_block_forward.4} parent=11 // pred_fallthru
        _
    $region12: #{basic_block_forward.4} parent=5 // pred_fallthru
      _
    %p227 = scmp.lt.s32.totalorder %s14, 2
    // Predicated region
    $region33: #{basic_block_forward.4} parent=5 // pred_check
      %p228 = pneg %p227
    $region34: #{basic_block_forward.4} parent=5 // pred_check_branch
      %230 = sbr.rel (%p228) target = $region36
    $region35: #{basic_block_forward.4} parent=5 // pred_region
      // Predicated region
      $region37: #{basic_block_forward.4} parent=35 // pred_check
        %p231 = pneg %p34
      $region38: #{basic_block_forward.4} parent=35 // pred_check_branch
        %233 = sbr.rel (%p231) target = $region40
      $region39: #{basic_block_forward.4} parent=35 // pred_region
        %p234 = scmp.lt.s32.totalorder %s14, 1
        %s235 = scalar_select %p234, %s14, 1
        %s236 = smul.addr %s235, 14
        %s237 = smul.addr %s236, 4
        %s238 = scalar_lea.vmem %s0, %s237
      $region40: #{basic_block_forward.4} parent=35 // pred_fallthru
        _
    $region36: #{basic_block_forward.4} parent=5 // pred_fallthru
      _
    %p239 = scmp.le.s32.totalorder 1, %s14
    %p240 = scmp.lt.s32.totalorder %s14, 3
    %p241 = pnand %p239, %p240
    %p242 = pneg %p241
    // Predicated region
    $region41: #{basic_block_forward.4} parent=5 // pred_check
      _
    $region42: #{basic_block_forward.4} parent=5 // pred_check_branch
      %244 = sbr.rel (%p241) target = $region44
    $region43: #{basic_block_forward.4} parent=5 // pred_region
      %s245 = ssub.s32 %s14, 1
      %p246 = scmp.lt.s32.totalorder %s19, 1
      %s247 = scalar_select %p246, %s19, 1
      %s248 = smul.addr %s247, 14
      %s249 = smul.addr %s248, 4
      %s250 = scalar_lea.vmem %s0, %s249
      %p251 = pneg %p40
      %p252 = pneg %p37
      %p253 = pneg %p61
      %p254 = pneg %p58
      %p255 = pneg %p82
      %p256 = pneg %p79
      %p257 = pneg %p103
      %p258 = pneg %p100
      %p259 = pneg %p124
      %p260 = pneg %p121
      %p261 = pneg %p145
      %p262 = pneg %p142
      %p263 = pneg %p171
      %p264 = pneg %p168
      %p265 = scmp.lt.s32.totalorder %s19, 1
      %s266 = scalar_select %p265, %s19, 1
      %s267 = smul.addr %s266, 10
      %s268 = smul.addr %s267, 4
      %s269 = scalar_lea.vmem %s6, %s268
      %p270 = pneg %p197
      %p271 = pneg %p194
      %p272 = scmp.lt.s32.totalorder %s19, 1
      %s273 = scalar_select %p272, %s19, 1
      %s274 = smul.addr %s273, 2
      %s275 = scalar_lea.vmem %s7, %s274
      %p276 = scmp.lt.s32.totalorder %s19, 1
      %s277 = scalar_select %p276, %s19, 1
      %s278 = smul.addr %s277, 14
      %s279 = smul.addr %s278, 4
      %s280 = scalar_lea.vmem %s0, %s279
      %p281 = scmp.lt.s32.totalorder %s19, 1
      %s282 = scalar_select %p281, %s19, 1
      %s283 = smul.addr %s282, 10
      %s284 = smul.addr %s283, 4
      %s285 = scalar_lea.vmem %s6, %s284
      %p286 = scmp.lt.s32.totalorder %s19, 1
      %s287 = scalar_select %p286, %s19, 1
      %s288 = smul.addr %s287, 2
      %s289 = scalar_lea.vmem %s7, %s288
      %v291 = vld [vmem:[%s280] sm:$0xf]
      %v292 = vld [vmem:[%s280 + $0x4] sm:$0xf]
      %v293 = vld [vmem:[%s280 + $0x8] sm:$0xf]
      %v294 = vld [vmem:[%s280 + $0xc] sm:$0xf]
      %v295 = vld [vmem:[%s280 + $0x10] sm:$0xf]
      %v296 = vld [vmem:[%s280 + $0x14] sm:$0xf]
      %v297 = vld [vmem:[%s280 + $0x18] sm:$0xf]
      %v298 = vld [vmem:[%s280 + $0x1c] sm:$0xf]
      %v299 = vld [vmem:[%s280 + $0x20] sm:$0xf]
      %v300 = vld [vmem:[%s280 + $0x24] sm:$0xf]
      %v301 = vld [vmem:[%s280 + $0x28] sm:$0xf]
      %v302 = vld [vmem:[%s280 + $0x2c] sm:$0xf]
      %v303 = vld [vmem:[%s280 + $0x30] sm:$0xf]
      %v304 = vld [vmem:[%s280 + $0x34] sm:$0x7]
      %v305 = vunpack.c.l.bf16 %v291
      %v306 = vunpack.c.l.bf16 %v292
      %v307 = vunpack.c.l.bf16 %v293
      %v308 = vunpack.c.l.bf16 %v294
      %v309 = vunpack.c.l.bf16 %v295
      %v310 = vunpack.c.l.bf16 %v296
      %v311 = vunpack.c.l.bf16 %v297
      %v312 = vunpack.c.l.bf16 %v298
      %v313 = vunpack.c.l.bf16 %v299
      %v314 = vunpack.c.l.bf16 %v300
      %v315 = vunpack.c.l.bf16 %v301
      %v316 = vunpack.c.l.bf16 %v302
      %v317 = vunpack.c.l.bf16 %v303
      %v318 = vunpack.c.l.bf16 %v304
      %v319 = vld [vmem:[%s3] sm:$0x1]
      %v321 = vlaneseq
      %v322 = vshrl.u32 %v321, 7
      %v323 = vsub.s32 0, %v322
      %v324 = vrot.slane %v319, %v323
      %v326 = vmul.f32 %v305, %v324
      %v327 = vmul.f32 %v306, %v324
      %v328 = vmul.f32 %v307, %v324
      %v329 = vmul.f32 %v308, %v324
      %v330 = vmul.f32 %v309, %v324
      %v331 = vmul.f32 %v310, %v324
      %v332 = vmul.f32 %v311, %v324
      %v333 = vmul.f32 %v312, %v324
      %v334 = vmul.f32 %v313, %v324
      %v335 = vmul.f32 %v314, %v324
      %v336 = vmul.f32 %v315, %v324
      %v337 = vmul.f32 %v316, %v324
      %v338 = vmul.f32 %v317, %v324
      %v339 = vmul.f32 %v318, %v324
      %v340 = vld [vmem:[%s4] sm:$0x1]
      %v342 = vlaneseq
      %v343 = vshrl.u32 %v342, 7
      %v344 = vsub.s32 0, %v343
      %v345 = vrot.slane %v340, %v344
      %v347 = vadd.f32 %v326, %v345
      %v348 = vadd.f32 %v327, %v345
      %v349 = vadd.f32 %v328, %v345
      %v350 = vadd.f32 %v329, %v345
      %v351 = vadd.f32 %v330, %v345
      %v352 = vadd.f32 %v331, %v345
      %v353 = vadd.f32 %v332, %v345
      %v354 = vadd.f32 %v333, %v345
      %v355 = vadd.f32 %v334, %v345
      %v356 = vadd.f32 %v335, %v345
      %v357 = vadd.f32 %v336, %v345
      %v358 = vadd.f32 %v337, %v345
      %v359 = vadd.f32 %v338, %v345
      %v360 = vadd.f32 %v339, %v345
      %v361 = vmax.f32 %v347, 0.0
      %v362 = vmax.f32 %v348, 0.0
      %v363 = vmax.f32 %v349, 0.0
      %v364 = vmax.f32 %v350, 0.0
      %v365 = vmax.f32 %v351, 0.0
      %v366 = vmax.f32 %v352, 0.0
      %v367 = vmax.f32 %v353, 0.0
      %v368 = vmax.f32 %v354, 0.0
      %v369 = vmax.f32 %v355, 0.0
      %v370 = vmax.f32 %v356, 0.0
      %v371 = vmax.f32 %v357, 0.0
      %v372 = vmax.f32 %v358, 0.0
      %v373 = vmax.f32 %v359, 0.0
      %v374 = vmax.f32 %v360, 0.0
      %v375 = vld [vmem:[%s5] sm:$0xff]
      %v376 = vld [vmem:[%s5 + $0x8] sm:$0xff]
      %v377 = vld [vmem:[%s5 + $0x10] sm:$0xff]
      %v378 = vld [vmem:[%s5 + $0x18] sm:$0xff]
      %v379 = vld [vmem:[%s5 + $0x20] sm:$0xff]
      %v380 = vld [vmem:[%s5 + $0x28] sm:$0xff]
      %v381 = vld [vmem:[%s5 + $0x30] sm:$0xff]
      %v382 = vld [vmem:[%s5 + $0x38] sm:$0xff]
      %v383 = vld [vmem:[%s5 + $0x40] sm:$0xff]
      %v384 = vld [vmem:[%s5 + $0x48] sm:$0xff]
      %v385 = vld [vmem:[%s5 + $0x50] sm:$0xff]
      %v386 = vld [vmem:[%s5 + $0x58] sm:$0xff]
      %v387 = vld [vmem:[%s5 + $0x60] sm:$0xff]
      %v388 = vld [vmem:[%s5 + $0x68] sm:$0x3f]
      %390 = vset.pattern.permute.xlu0 0
      %391 = vperm.xlu0 %390, %v375
      %v392 = vpop.permute.xlu0 %391
      %395 = vset.pattern.permute.xlu0 0
      %396 = vperm.xlu0 %395, %v376
      %v397 = vpop.permute.xlu0 %396
      %400 = vset.pattern.permute.xlu0 0
      %401 = vperm.xlu0 %400, %v377
      %v402 = vpop.permute.xlu0 %401
      %405 = vset.pattern.permute.xlu0 0
      %406 = vperm.xlu0 %405, %v378
      %v407 = vpop.permute.xlu0 %406
      %410 = vset.pattern.permute.xlu0 0
      %411 = vperm.xlu0 %410, %v379
      %v412 = vpop.permute.xlu0 %411
      %415 = vset.pattern.permute.xlu0 0
      %416 = vperm.xlu0 %415, %v380
      %v417 = vpop.permute.xlu0 %416
      %420 = vset.pattern.permute.xlu0 0
      %421 = vperm.xlu0 %420, %v381
      %v422 = vpop.permute.xlu0 %421
      %425 = vset.pattern.permute.xlu0 0
      %426 = vperm.xlu0 %425, %v382
      %v427 = vpop.permute.xlu0 %426
      %430 = vset.pattern.permute.xlu0 0
      %431 = vperm.xlu0 %430, %v383
      %v432 = vpop.permute.xlu0 %431
      %435 = vset.pattern.permute.xlu0 0
      %436 = vperm.xlu0 %435, %v384
      %v437 = vpop.permute.xlu0 %436
      %440 = vset.pattern.permute.xlu0 0
      %441 = vperm.xlu0 %440, %v385
      %v442 = vpop.permute.xlu0 %441
      %445 = vset.pattern.permute.xlu0 0
      %446 = vperm.xlu0 %445, %v386
      %v447 = vpop.permute.xlu0 %446
      %450 = vset.pattern.permute.xlu0 0
      %451 = vperm.xlu0 %450, %v387
      %v452 = vpop.permute.xlu0 %451
      %455 = vset.pattern.permute.xlu0 0
      %456 = vperm.xlu0 %455, %v388
      %v457 = vpop.permute.xlu0 %456
      %v459 = vmul.f32 %v361, %v392
      %v460 = vmul.f32 %v362, %v397
      %v461 = vmul.f32 %v363, %v402
      %v462 = vmul.f32 %v364, %v407
      %v463 = vmul.f32 %v365, %v412
      %v464 = vmul.f32 %v366, %v417
      %v465 = vmul.f32 %v367, %v422
      %v466 = vmul.f32 %v368, %v427
      %v467 = vmul.f32 %v369, %v432
      %v468 = vmul.f32 %v370, %v437
      %v469 = vmul.f32 %v371, %v442
      %v470 = vmul.f32 %v372, %v447
      %v471 = vmul.f32 %v373, %v452
      %v472 = vmul.f32 %v374, %v457
      %v473 = vpack.c.bf16 %v460, %v459
      %v474 = vpack.c.bf16 %v462, %v461
      %v475 = vpack.c.bf16 %v464, %v463
      %v476 = vpack.c.bf16 %v466, %v465
      %v477 = vpack.c.bf16 %v468, %v467
      %v478 = vpack.c.bf16 %v470, %v469
      %v479 = vpack.c.bf16 %v472, %v471
      %v487 = vunpack.c.l.b16 %v473
      %v488 = vunpack.c.h.b16 %v473
      %v489 = vunpack.c.l.b16 %v474
      %v490 = vunpack.c.h.b16 %v474
      %v491 = vunpack.c.l.b16 %v475
      %v492 = vunpack.c.h.b16 %v475
      %v493 = vunpack.c.l.b16 %v476
      %v494 = vunpack.c.h.b16 %v476
      %v495 = vunpack.c.l.b16 %v477
      %v496 = vunpack.c.h.b16 %v477
      %v497 = vunpack.c.l.b16 %v478
      %v498 = vunpack.c.h.b16 %v478
      %v499 = vunpack.c.l.b16 %v479
      %v500 = vunpack.c.h.b16 %v479
      %v501 = vpack.c.b16 %v487, %v487
      %v502 = vpack.c.b16 %v488, %v488
      %v503 = vpack.c.b16 %v489, %v489
      %v504 = vpack.c.b16 %v490, %v490
      %v505 = vpack.c.b16 %v491, %v491
      %v506 = vpack.c.b16 %v492, %v492
      %v507 = vpack.c.b16 %v493, %v493
      %v508 = vpack.c.b16 %v494, %v494
      %v509 = vpack.c.b16 %v495, %v495
      %v510 = vpack.c.b16 %v496, %v496
      %v511 = vpack.c.b16 %v497, %v497
      %v512 = vpack.c.b16 %v498, %v498
      %v513 = vpack.c.b16 %v499, %v499
      %v514 = vpack.c.b16 %v500, %v500
      %529 = vst [vmem:[#allocation2] sm:$0xf] %v501
      %530 = vst [vmem:[#allocation2 + $0x4] sm:$0xf] %v502
      %531 = vst [vmem:[#allocation2 + $0x8] sm:$0xf] %v503
      %532 = vst [vmem:[#allocation2 + $0xc] sm:$0xf] %v504
      %533 = vst [vmem:[#allocation2 + $0x10] sm:$0xf] %v505
      %534 = vst [vmem:[#allocation2 + $0x14] sm:$0xf] %v506
      %535 = vst [vmem:[#allocation2 + $0x18] sm:$0xf] %v507
      %536 = vst [vmem:[#allocation2 + $0x1c] sm:$0xf] %v508
      %537 = vst [vmem:[#allocation2 + $0x20] sm:$0xf] %v509
      %538 = vst [vmem:[#allocation2 + $0x24] sm:$0xf] %v510
      %539 = vst [vmem:[#allocation2 + $0x28] sm:$0xf] %v511
      %540 = vst [vmem:[#allocation2 + $0x2c] sm:$0xf] %v512
      %541 = vst [vmem:[#allocation2 + $0x30] sm:$0xf] %v513
      %542 = vst [vmem:[#allocation2 + $0x34] sm:$0x7] %v514
      %v543 = vld [vmem:[#allocation2] sm:$0xf]
      %v544 = vld [vmem:[#allocation2 + $0x4] sm:$0xf]
      %v545 = vld [vmem:[#allocation2 + $0x8] sm:$0xf]
      %v546 = vld [vmem:[#allocation2 + $0xc] sm:$0xf]
      %v547 = vld [vmem:[#allocation2 + $0x10] sm:$0xf]
      %v548 = vld [vmem:[#allocation2 + $0x14] sm:$0xf]
      %v549 = vld [vmem:[#allocation2 + $0x18] sm:$0xf]
      %v550 = vld [vmem:[#allocation2 + $0x1c] sm:$0xf]
      %v551 = vld [vmem:[#allocation2 + $0x20] sm:$0xf]
      %v552 = vld [vmem:[#allocation2 + $0x24] sm:$0xf]
      %v553 = vld [vmem:[%s1] sm:$0xf]
      %v554 = vld [vmem:[%s1 + $0x4] sm:$0xf]
      %v555 = vld [vmem:[%s1 + $0x8] sm:$0xf]
      %v556 = vld [vmem:[%s1 + $0xc] sm:$0xf]
      %v557 = vld [vmem:[%s1 + $0x10] sm:$0xf]
      %v558 = vld [vmem:[%s1 + $0x14] sm:$0xf]
      %v559 = vld [vmem:[%s1 + $0x18] sm:$0xf]
      %v560 = vld [vmem:[%s1 + $0x1c] sm:$0xf]
      %v561 = vld [vmem:[%s1 + $0x20] sm:$0xf]
      %v562 = vld [vmem:[%s1 + $0x24] sm:$0xf]
      %v563 = vld [vmem:[%s1 + $0x28] sm:$0xf]
      %v564 = vld [vmem:[%s1 + $0x2c] sm:$0xf]
      %v565 = vld [vmem:[%s1 + $0x30] sm:$0xf]
      %v566 = vld [vmem:[%s1 + $0x34] sm:$0xf]
      %v567 = vld [vmem:[%s1 + $0x38] sm:$0xf]
      %v568 = vld [vmem:[%s1 + $0x3c] sm:$0xf]
      %v569 = vld [vmem:[#allocation2 + $0x28] sm:$0x1]
      %s570 = scalar_lea.vmem %s1, 64
      %v571 = vld [vmem:[%s570] sm:$0xf]
      %v572 = vld [vmem:[%s570 + $0x4] sm:$0xf]
      %v573 = vld [vmem:[%s570 + $0x8] sm:$0xf]
      %v574 = vld [vmem:[%s570 + $0xc] sm:$0xf]
      %v575 = vld [vmem:[%s570 + $0x10] sm:$0xf]
      %v576 = vld [vmem:[%s570 + $0x14] sm:$0xf]
      %v577 = vld [vmem:[%s570 + $0x18] sm:$0xf]
      %v578 = vld [vmem:[%s570 + $0x1c] sm:$0xf]
      %v579 = vld [vmem:[%s570 + $0x20] sm:$0xf]
      %v580 = vld [vmem:[%s570 + $0x24] sm:$0xf]
      %v581 = vld [vmem:[%s570 + $0x28] sm:$0xf]
      %v582 = vld [vmem:[%s570 + $0x2c] sm:$0xf]
      %v583 = vld [vmem:[%s570 + $0x30] sm:$0xf]
      %v584 = vld [vmem:[%s570 + $0x34] sm:$0xf]
      %v585 = vld [vmem:[%s570 + $0x38] sm:$0xf]
      %v586 = vld [vmem:[%s570 + $0x3c] sm:$0xf]
      %v598 = vunpack.c.l.b16 %v543
      %v599 = vunpack.c.l.b16 %v544
      %v600 = vunpack.c.l.b16 %v545
      %v601 = vunpack.c.l.b16 %v546
      %v602 = vunpack.c.l.b16 %v547
      %v603 = vunpack.c.l.b16 %v548
      %v604 = vunpack.c.l.b16 %v549
      %v605 = vunpack.c.l.b16 %v550
      %v606 = vunpack.c.l.b16 %v551
      %v607 = vunpack.c.l.b16 %v552
      %v608 = vunpack.c.l.b16 %v569
      %v609 = vpack.c.b16 %v599, %v598
      %v610 = vpack.c.b16 %v601, %v600
      %v611 = vpack.c.b16 %v603, %v602
      %v612 = vpack.c.b16 %v605, %v604
      %v613 = vpack.c.b16 %v607, %v606
      %v614 = vpack.c.b16 %v608, %v608
      %vm615 = vsmask.f32 7424
      %v617 = vshrl.u32 %v609, 16
      %v619 = vshll.u32 %v609, 16
      %v621 = vrot.slane %v619, 1
      %v622 = vor.u32 %v617, %v621
      %v624 = vshll.u32 %v610, 16
      %v626 = vrot.slane %v624, 1
      %v627 = vsel %vm615, %v622, %v626
      %v628 = vshrl.u32 %v610, 16
      %v630 = vor.u32 %v628, %v626
      %v632 = vshll.u32 %v611, 16
      %v634 = vrot.slane %v632, 1
      %v635 = vsel %vm615, %v630, %v634
      %v636 = vshrl.u32 %v611, 16
      %v638 = vor.u32 %v636, %v634
      %v640 = vshll.u32 %v612, 16
      %v642 = vrot.slane %v640, 1
      %v643 = vsel %vm615, %v638, %v642
      %v644 = vshrl.u32 %v612, 16
      %v646 = vor.u32 %v644, %v642
      %v648 = vshll.u32 %v613, 16
      %v650 = vrot.slane %v648, 1
      %v651 = vsel %vm615, %v646, %v650
      %v652 = vshrl.u32 %v613, 16
      %v654 = vor.u32 %v652, %v650
      %v656 = vshll.u32 %v614, 16
      %v658 = vrot.slane %v656, 1
      %v659 = vsel %vm615, %v654, %v658
      %v681 = vunpack.c.l.b16 %v571
      %v682 = vunpack.c.l.b16 %v572
      %v683 = vunpack.c.l.b16 %v573
      %v684 = vunpack.c.l.b16 %v574
      %v685 = vunpack.c.l.b16 %v575
      %v686 = vunpack.c.l.b16 %v576
      %v687 = vunpack.c.l.b16 %v577
      %v688 = vunpack.c.l.b16 %v578
      %v689 = vunpack.c.l.b16 %v579
      %v690 = vunpack.c.l.b16 %v580
      %v691 = vunpack.c.l.b16 %v581
      %v692 = vunpack.c.l.b16 %v582
      %v693 = vunpack.c.l.b16 %v583
      %v694 = vunpack.c.l.b16 %v584
      %v695 = vunpack.c.l.b16 %v585
      %v696 = vunpack.c.l.b16 %v586
      %v697 = vpack.c.b16 %v682, %v681
      %v698 = vpack.c.b16 %v684, %v683
      %v699 = vpack.c.b16 %v686, %v685
      %v700 = vpack.c.b16 %v688, %v687
      %v701 = vpack.c.b16 %v690, %v689
      %v702 = vpack.c.b16 %v692, %v691
      %v703 = vpack.c.b16 %v694, %v693
      %v704 = vpack.c.b16 %v696, %v695
      %713 = vmatprep.subr.bf16.mxu0 0
      %714 = vmatpush1.bf16.msra.mxu0 %v704
      %715 = vmatprep.subr.bf16.mxu0 0
      %716 = vmatpush1.bf16.msra.mxu0 %v703
      %717 = vmatprep.subr.bf16.mxu0 0
      %718 = vmatpush1.bf16.msra.mxu0 %v702
      %719 = vmatprep.subr.bf16.mxu0 0
      %720 = vmatpush1.bf16.msra.mxu0 %v701
      %721 = vmatprep.subr.bf16.mxu0 0
      %722 = vmatpush1.bf16.msra.mxu0 %v700
      %723 = vmatprep.subr.bf16.mxu0 0
      %724 = vmatpush1.bf16.msra.mxu0 %v699
      %725 = vmatprep.subr.bf16.mxu0 0
      %726 = vmatpush1.bf16.msra.mxu0 %v698
      %727 = vmatprep.subr.bf16.mxu0 0
      %728 = vmatpush1.bf16.msra.mxu0 %v697
      %729 = vmatprep.subr.bf16.mxu0 0
      %730 = vmatpush2.bf16.msra.mxu0 0
      %731 = vmatprep.subr.bf16.mxu0 0
      %732 = vmatpush2.bf16.msra.mxu0 0
      %733 = vmatprep.subr.bf16.mxu0 0
      %734 = vmatpush2.bf16.msra.mxu0 0
      %735 = vmatprep.subr.bf16.mxu0 0
      %736 = vmatpush2.bf16.msra.mxu0 0
      %737 = vmatprep.subr.bf16.mxu0 0
      %738 = vmatpush2.bf16.msra.mxu0 0
      %739 = vmatprep.subr.bf16.mxu0 0
      %740 = vmatpush2.bf16.msra.mxu0 0
      %741 = vmatprep.subr.bf16.mxu0 0
      %742 = vmatpush2.bf16.msra.mxu0 0
      %743 = vmatprep.subr.bf16.mxu0 0
      %744 = vmatpush2.bf16.msra.mxu0 0
      %745 = vmatprep.mubr.bf16.mxu0 0
      %746 = vmatmul.mubr.bf16.gmra.mxu0 %v627
      %v747 = vpop.f32.mrf.mxu0
      %v748 = vadd.f32 0.0, %v747
      %v749 = vpop.f32.mrf.mxu0
      %v750 = vpop.f32.mrf.mxu0
      %v751 = vadd.f32 0.0, %v750
      %v752 = vpop.f32.mrf.mxu0
      %753 = vmatprep.mubr.bf16.mxu0 0
      %754 = vmatmul.mubr.bf16.gmra.mxu0 %v635
      %v755 = vpop.f32.mrf.mxu0
      %v756 = vadd.f32 0.0, %v755
      %v757 = vpop.f32.mrf.mxu0
      %v758 = vpop.f32.mrf.mxu0
      %v759 = vadd.f32 0.0, %v758
      %v760 = vpop.f32.mrf.mxu0
      %761 = vmatprep.mubr.bf16.mxu0 0
      %762 = vmatmul.mubr.bf16.gmra.mxu0 %v643
      %v763 = vpop.f32.mrf.mxu0
      %v764 = vadd.f32 0.0, %v763
      %v765 = vpop.f32.mrf.mxu0
      %v766 = vpop.f32.mrf.mxu0
      %v767 = vadd.f32 0.0, %v766
      %v768 = vpop.f32.mrf.mxu0
      %769 = vmatprep.mubr.bf16.mxu0 0
      %770 = vmatmul.mubr.bf16.gmra.mxu0 %v651
      %v771 = vpop.f32.mrf.mxu0
      %v772 = vadd.f32 0.0, %v771
      %v773 = vpop.f32.mrf.mxu0
      %v774 = vpop.f32.mrf.mxu0
      %v775 = vadd.f32 0.0, %v774
      %v776 = vpop.f32.mrf.mxu0
      %777 = vmatprep.mubr.bf16.mxu0 0
      %778 = vmatmul.mubr.bf16.gmra.mxu0 %v659
      %v779 = vpop.f32.mrf.mxu0
      %v780 = vadd.f32 0.0, %v779
      %v781 = vpop.f32.mrf.mxu0
      %v782 = vpop.f32.mrf.mxu0
      %v783 = vadd.f32 0.0, %v782
      %v784 = vpop.f32.mrf.mxu0
      %785 = vdwg.mxu0
      %v807 = vunpack.c.l.b16 %v553
      %v808 = vunpack.c.l.b16 %v554
      %v809 = vunpack.c.l.b16 %v555
      %v810 = vunpack.c.l.b16 %v556
      %v811 = vunpack.c.l.b16 %v557
      %v812 = vunpack.c.l.b16 %v558
      %v813 = vunpack.c.l.b16 %v559
      %v814 = vunpack.c.l.b16 %v560
      %v815 = vunpack.c.l.b16 %v561
      %v816 = vunpack.c.l.b16 %v562
      %v817 = vunpack.c.l.b16 %v563
      %v818 = vunpack.c.l.b16 %v564
      %v819 = vunpack.c.l.b16 %v565
      %v820 = vunpack.c.l.b16 %v566
      %v821 = vunpack.c.l.b16 %v567
      %v822 = vunpack.c.l.b16 %v568
      %v823 = vpack.c.b16 %v808, %v807
      %v824 = vpack.c.b16 %v810, %v809
      %v825 = vpack.c.b16 %v812, %v811
      %v826 = vpack.c.b16 %v814, %v813
      %v827 = vpack.c.b16 %v816, %v815
      %v828 = vpack.c.b16 %v818, %v817
      %v829 = vpack.c.b16 %v820, %v819
      %v830 = vpack.c.b16 %v822, %v821
      %839 = vmatprep.subr.bf16.mxu0 0
      %840 = vmatpush1.bf16.msra.mxu0 %v830
      %841 = vmatprep.subr.bf16.mxu0 0
      %842 = vmatpush1.bf16.msra.mxu0 %v829
      %843 = vmatprep.subr.bf16.mxu0 0
      %844 = vmatpush1.bf16.msra.mxu0 %v828
      %845 = vmatprep.subr.bf16.mxu0 0
      %846 = vmatpush1.bf16.msra.mxu0 %v827
      %847 = vmatprep.subr.bf16.mxu0 0
      %848 = vmatpush1.bf16.msra.mxu0 %v826
      %849 = vmatprep.subr.bf16.mxu0 0
      %850 = vmatpush1.bf16.msra.mxu0 %v825
      %851 = vmatprep.subr.bf16.mxu0 0
      %852 = vmatpush1.bf16.msra.mxu0 %v824
      %853 = vmatprep.subr.bf16.mxu0 0
      %854 = vmatpush1.bf16.msra.mxu0 %v823
      %855 = vmatprep.subr.bf16.mxu0 0
      %856 = vmatpush2.bf16.msra.mxu0 0
      %857 = vmatprep.subr.bf16.mxu0 0
      %858 = vmatpush2.bf16.msra.mxu0 0
      %859 = vmatprep.subr.bf16.mxu0 0
      %860 = vmatpush2.bf16.msra.mxu0 0
      %861 = vmatprep.subr.bf16.mxu0 0
      %862 = vmatpush2.bf16.msra.mxu0 0
      %863 = vmatprep.subr.bf16.mxu0 0
      %864 = vmatpush2.bf16.msra.mxu0 0
      %865 = vmatprep.subr.bf16.mxu0 0
      %866 = vmatpush2.bf16.msra.mxu0 0
      %867 = vmatprep.subr.bf16.mxu0 0
      %868 = vmatpush2.bf16.msra.mxu0 0
      %869 = vmatprep.subr.bf16.mxu0 0
      %870 = vmatpush2.bf16.msra.mxu0 0
      %871 = vmatprep.mubr.bf16.mxu0 0
      %872 = vmatmul.mubr.bf16.gmra.mxu0 %v609
      %v873 = vpop.f32.mrf.mxu0
      %v874 = vadd.f32 %v748, %v873
      %v875 = vpop.f32.mrf.mxu0
      %v876 = vpop.f32.mrf.mxu0
      %v877 = vadd.f32 %v751, %v876
      %v878 = vpop.f32.mrf.mxu0
      %879 = vmatprep.mubr.bf16.mxu0 0
      %880 = vmatmul.mubr.bf16.gmra.mxu0 %v610
      %v881 = vpop.f32.mrf.mxu0
      %v882 = vadd.f32 %v756, %v881
      %v883 = vpop.f32.mrf.mxu0
      %v884 = vpop.f32.mrf.mxu0
      %v885 = vadd.f32 %v759, %v884
      %v886 = vpop.f32.mrf.mxu0
      %887 = vmatprep.mubr.bf16.mxu0 0
      %888 = vmatmul.mubr.bf16.gmra.mxu0 %v611
      %v889 = vpop.f32.mrf.mxu0
      %v890 = vadd.f32 %v764, %v889
      %v891 = vpop.f32.mrf.mxu0
      %v892 = vpop.f32.mrf.mxu0
      %v893 = vadd.f32 %v767, %v892
      %v894 = vpop.f32.mrf.mxu0
      %895 = vmatprep.mubr.bf16.mxu0 0
      %896 = vmatmul.mubr.bf16.gmra.mxu0 %v612
      %v897 = vpop.f32.mrf.mxu0
      %v898 = vadd.f32 %v772, %v897
      %v899 = vpop.f32.mrf.mxu0
      %v900 = vpop.f32.mrf.mxu0
      %v901 = vadd.f32 %v775, %v900
      %v902 = vpop.f32.mrf.mxu0
      %903 = vmatprep.mubr.bf16.mxu0 0
      %904 = vmatmul.mubr.bf16.gmra.mxu0 %v613
      %v905 = vpop.f32.mrf.mxu0
      %v906 = vadd.f32 %v780, %v905
      %v907 = vpop.f32.mrf.mxu0
      %v908 = vpop.f32.mrf.mxu0
      %v909 = vadd.f32 %v783, %v908
      %v910 = vpop.f32.mrf.mxu0
      %911 = vdwg.mxu0
      %v912 = vld [vmem:[#allocation2] sm:$0xe]
      %s913 = scalar_lea.vmem %s1, 128
      %v914 = vld [vmem:[%s913] sm:$0xf]
      %v915 = vld [vmem:[%s913 + $0x4] sm:$0xf]
      %v916 = vld [vmem:[%s913 + $0x8] sm:$0xf]
      %v917 = vld [vmem:[%s913 + $0xc] sm:$0xf]
      %v918 = vld [vmem:[%s913 + $0x10] sm:$0xf]
      %v919 = vld [vmem:[%s913 + $0x14] sm:$0xf]
      %v920 = vld [vmem:[%s913 + $0x18] sm:$0xf]
      %v921 = vld [vmem:[%s913 + $0x1c] sm:$0xf]
      %v922 = vld [vmem:[%s913 + $0x20] sm:$0xf]
      %v923 = vld [vmem:[%s913 + $0x24] sm:$0xf]
      %v924 = vld [vmem:[%s913 + $0x28] sm:$0xf]
      %v925 = vld [vmem:[%s913 + $0x2c] sm:$0xf]
      %v926 = vld [vmem:[%s913 + $0x30] sm:$0xf]
      %v927 = vld [vmem:[%s913 + $0x34] sm:$0xf]
      %v928 = vld [vmem:[%s913 + $0x38] sm:$0xf]
      %v929 = vld [vmem:[%s913 + $0x3c] sm:$0xf]
      %v931 = vunpack.c.l.b16 %v912
      %v932 = vpack.c.b16 %v599, %v931
      %vm933 = vcmask 1046528
      %v934 = vrot.slane %v932, 1
      %v935 = vrot.slane %v610, 1
      %v936 = vsel %vm933, %v934, %v935
      %v937 = vrot.slane %v611, 1
      %v938 = vsel %vm933, %v935, %v937
      %v939 = vrot.slane %v612, 1
      %v940 = vsel %vm933, %v937, %v939
      %v941 = vrot.slane %v613, 1
      %v942 = vsel %vm933, %v939, %v941
      %v943 = vrot.slane %v614, 1
      %v944 = vsel %vm933, %v941, %v943
      %v966 = vunpack.c.l.b16 %v914
      %v967 = vunpack.c.l.b16 %v915
      %v968 = vunpack.c.l.b16 %v916
      %v969 = vunpack.c.l.b16 %v917
      %v970 = vunpack.c.l.b16 %v918
      %v971 = vunpack.c.l.b16 %v919
      %v972 = vunpack.c.l.b16 %v920
      %v973 = vunpack.c.l.b16 %v921
      %v974 = vunpack.c.l.b16 %v922
      %v975 = vunpack.c.l.b16 %v923
      %v976 = vunpack.c.l.b16 %v924
      %v977 = vunpack.c.l.b16 %v925
      %v978 = vunpack.c.l.b16 %v926
      %v979 = vunpack.c.l.b16 %v927
      %v980 = vunpack.c.l.b16 %v928
      %v981 = vunpack.c.l.b16 %v929
      %v982 = vpack.c.b16 %v967, %v966
      %v983 = vpack.c.b16 %v969, %v968
      %v984 = vpack.c.b16 %v971, %v970
      %v985 = vpack.c.b16 %v973, %v972
      %v986 = vpack.c.b16 %v975, %v974
      %v987 = vpack.c.b16 %v977, %v976
      %v988 = vpack.c.b16 %v979, %v978
      %v989 = vpack.c.b16 %v981, %v980
      %998 = vmatprep.subr.bf16.mxu0 0
      %999 = vmatpush1.bf16.msra.mxu0 %v989
      %1000 = vmatprep.subr.bf16.mxu0 0
      %1001 = vmatpush1.bf16.msra.mxu0 %v988
      %1002 = vmatprep.subr.bf16.mxu0 0
      %1003 = vmatpush1.bf16.msra.mxu0 %v987
      %1004 = vmatprep.subr.bf16.mxu0 0
      %1005 = vmatpush1.bf16.msra.mxu0 %v986
      %1006 = vmatprep.subr.bf16.mxu0 0
      %1007 = vmatpush1.bf16.msra.mxu0 %v985
      %1008 = vmatprep.subr.bf16.mxu0 0
      %1009 = vmatpush1.bf16.msra.mxu0 %v984
      %1010 = vmatprep.subr.bf16.mxu0 0
      %1011 = vmatpush1.bf16.msra.mxu0 %v983
      %1012 = vmatprep.subr.bf16.mxu0 0
      %1013 = vmatpush1.bf16.msra.mxu0 %v982
      %1014 = vmatprep.subr.bf16.mxu0 0
      %1015 = vmatpush2.bf16.msra.mxu0 0
      %1016 = vmatprep.subr.bf16.mxu0 0
      %1017 = vmatpush2.bf16.msra.mxu0 0
      %1018 = vmatprep.subr.bf16.mxu0 0
      %1019 = vmatpush2.bf16.msra.mxu0 0
      %1020 = vmatprep.subr.bf16.mxu0 0
      %1021 = vmatpush2.bf16.msra.mxu0 0
      %1022 = vmatprep.subr.bf16.mxu0 0
      %1023 = vmatpush2.bf16.msra.mxu0 0
      %1024 = vmatprep.subr.bf16.mxu0 0
      %1025 = vmatpush2.bf16.msra.mxu0 0
      %1026 = vmatprep.subr.bf16.mxu0 0
      %1027 = vmatpush2.bf16.msra.mxu0 0
      %1028 = vmatprep.subr.bf16.mxu0 0
      %1029 = vmatpush2.bf16.msra.mxu0 0
      %1030 = vmatprep.mubr.bf16.mxu0 0
      %1031 = vmatmul.mubr.bf16.gmra.mxu0 %v936
      %v1032 = vpop.f32.mrf.mxu0
      %v1033 = vadd.f32 0.0, %v1032
      %v1034 = vpop.f32.mrf.mxu0
      %v1035 = vpop.f32.mrf.mxu0
      %v1036 = vadd.f32 0.0, %v1035
      %v1037 = vpop.f32.mrf.mxu0
      %1038 = vmatprep.mubr.bf16.mxu0 0
      %1039 = vmatmul.mubr.bf16.gmra.mxu0 %v938
      %v1040 = vpop.f32.mrf.mxu0
      %v1041 = vadd.f32 0.0, %v1040
      %v1042 = vpop.f32.mrf.mxu0
      %v1043 = vpop.f32.mrf.mxu0
      %v1044 = vadd.f32 0.0, %v1043
      %v1045 = vpop.f32.mrf.mxu0
      %1046 = vmatprep.mubr.bf16.mxu0 0
      %1047 = vmatmul.mubr.bf16.gmra.mxu0 %v940
      %v1048 = vpop.f32.mrf.mxu0
      %v1049 = vadd.f32 0.0, %v1048
      %v1050 = vpop.f32.mrf.mxu0
      %v1051 = vpop.f32.mrf.mxu0
      %v1052 = vadd.f32 0.0, %v1051
      %v1053 = vpop.f32.mrf.mxu0
      %1054 = vmatprep.mubr.bf16.mxu0 0
      %1055 = vmatmul.mubr.bf16.gmra.mxu0 %v942
      %v1056 = vpop.f32.mrf.mxu0
      %v1057 = vadd.f32 0.0, %v1056
      %v1058 = vpop.f32.mrf.mxu0
      %v1059 = vpop.f32.mrf.mxu0
      %v1060 = vadd.f32 0.0, %v1059
      %v1061 = vpop.f32.mrf.mxu0
      %1062 = vmatprep.mubr.bf16.mxu0 0
      %1063 = vmatmul.mubr.bf16.gmra.mxu0 %v944
      %v1064 = vpop.f32.mrf.mxu0
      %v1065 = vadd.f32 0.0, %v1064
      %v1066 = vpop.f32.mrf.mxu0
      %v1067 = vpop.f32.mrf.mxu0
      %v1068 = vadd.f32 0.0, %v1067
      %v1069 = vpop.f32.mrf.mxu0
      %1070 = vdwg.mxu0
      %v1071 = vadd.f32 %v874, %v1033
      %v1072 = vadd.f32 %v877, %v1036
      %v1073 = vadd.f32 %v882, %v1041
      %v1074 = vadd.f32 %v885, %v1044
      %v1075 = vadd.f32 %v890, %v1049
      %v1076 = vadd.f32 %v893, %v1052
      %v1077 = vadd.f32 %v898, %v1057
      %v1078 = vadd.f32 %v901, %v1060
      %v1079 = vadd.f32 %v906, %v1065
      %v1080 = vadd.f32 %v909, %v1068
      %v1081 = vld [vmem:[#allocation2 + $0x4] sm:$0xe]
      %v1082 = vld [vmem:[#allocation2 + $0x8] sm:$0xf]
      %v1083 = vld [vmem:[#allocation2 + $0xc] sm:$0xf]
      %v1084 = vld [vmem:[#allocation2 + $0x10] sm:$0xf]
      %v1085 = vld [vmem:[#allocation2 + $0x14] sm:$0xf]
      %v1086 = vld [vmem:[#allocation2 + $0x18] sm:$0xf]
      %v1087 = vld [vmem:[#allocation2 + $0x1c] sm:$0xf]
      %v1088 = vld [vmem:[#allocation2 + $0x20] sm:$0xf]
      %v1089 = vld [vmem:[#allocation2 + $0x24] sm:$0xf]
      %v1090 = vld [vmem:[#allocation2 + $0x28] sm:$0xf]
      %v1091 = vld [vmem:[#allocation2 + $0x2c] sm:$0x1]
      %s1092 = scalar_lea.vmem %s1, 192
      %v1093 = vld [vmem:[%s1092] sm:$0xf]
      %v1094 = vld [vmem:[%s1092 + $0x4] sm:$0xf]
      %v1095 = vld [vmem:[%s1092 + $0x8] sm:$0xf]
      %v1096 = vld [vmem:[%s1092 + $0xc] sm:$0xf]
      %v1097 = vld [vmem:[%s1092 + $0x10] sm:$0xf]
      %v1098 = vld [vmem:[%s1092 + $0x14] sm:$0xf]
      %v1099 = vld [vmem:[%s1092 + $0x18] sm:$0xf]
      %v1100 = vld [vmem:[%s1092 + $0x1c] sm:$0xf]
      %v1101 = vld [vmem:[%s1092 + $0x20] sm:$0xf]
      %v1102 = vld [vmem:[%s1092 + $0x24] sm:$0xf]
      %v1103 = vld [vmem:[%s1092 + $0x28] sm:$0xf]
      %v1104 = vld [vmem:[%s1092 + $0x2c] sm:$0xf]
      %v1105 = vld [vmem:[%s1092 + $0x30] sm:$0xf]
      %v1106 = vld [vmem:[%s1092 + $0x34] sm:$0xf]
      %v1107 = vld [vmem:[%s1092 + $0x38] sm:$0xf]
      %v1108 = vld [vmem:[%s1092 + $0x3c] sm:$0xf]
      %v1120 = vunpack.c.l.b16 %v1081
      %v1121 = vunpack.c.l.b16 %v1082
      %v1122 = vunpack.c.l.b16 %v1083
      %v1123 = vunpack.c.l.b16 %v1084
      %v1124 = vunpack.c.l.b16 %v1085
      %v1125 = vunpack.c.l.b16 %v1086
      %v1126 = vunpack.c.l.b16 %v1087
      %v1127 = vunpack.c.l.b16 %v1088
      %v1128 = vunpack.c.l.b16 %v1089
      %v1129 = vunpack.c.l.b16 %v1090
      %v1130 = vunpack.c.l.b16 %v1091
      %v1131 = vpack.c.b16 %v1121, %v1120
      %v1132 = vpack.c.b16 %v1123, %v1122
      %v1133 = vpack.c.b16 %v1125, %v1124
      %v1134 = vpack.c.b16 %v1127, %v1126
      %v1135 = vpack.c.b16 %v1129, %v1128
      %v1136 = vpack.c.b16 %v1130, %v1130
      %v1137 = vrot.slane %v1131, 1
      %v1138 = vrot.slane %v1132, 1
      %v1139 = vsel %vm933, %v1137, %v1138
      %v1140 = vrot.slane %v1133, 1
      %v1141 = vsel %vm933, %v1138, %v1140
      %v1142 = vrot.slane %v1134, 1
      %v1143 = vsel %vm933, %v1140, %v1142
      %v1144 = vrot.slane %v1135, 1
      %v1145 = vsel %vm933, %v1142, %v1144
      %v1146 = vrot.slane %v1136, 1
      %v1147 = vsel %vm933, %v1144, %v1146
      %v1169 = vunpack.c.l.b16 %v1093
      %v1170 = vunpack.c.l.b16 %v1094
      %v1171 = vunpack.c.l.b16 %v1095
      %v1172 = vunpack.c.l.b16 %v1096
      %v1173 = vunpack.c.l.b16 %v1097
      %v1174 = vunpack.c.l.b16 %v1098
      %v1175 = vunpack.c.l.b16 %v1099
      %v1176 = vunpack.c.l.b16 %v1100
      %v1177 = vunpack.c.l.b16 %v1101
      %v1178 = vunpack.c.l.b16 %v1102
      %v1179 = vunpack.c.l.b16 %v1103
      %v1180 = vunpack.c.l.b16 %v1104
      %v1181 = vunpack.c.l.b16 %v1105
      %v1182 = vunpack.c.l.b16 %v1106
      %v1183 = vunpack.c.l.b16 %v1107
      %v1184 = vunpack.c.l.b16 %v1108
      %v1185 = vpack.c.b16 %v1170, %v1169
      %v1186 = vpack.c.b16 %v1172, %v1171
      %v1187 = vpack.c.b16 %v1174, %v1173
      %v1188 = vpack.c.b16 %v1176, %v1175
      %v1189 = vpack.c.b16 %v1178, %v1177
      %v1190 = vpack.c.b16 %v1180, %v1179
      %v1191 = vpack.c.b16 %v1182, %v1181
      %v1192 = vpack.c.b16 %v1184, %v1183
      %1201 = vmatprep.subr.bf16.mxu0 0
      %1202 = vmatpush1.bf16.msra.mxu0 %v1192
      %1203 = vmatprep.subr.bf16.mxu0 0
      %1204 = vmatpush1.bf16.msra.mxu0 %v1191
      %1205 = vmatprep.subr.bf16.mxu0 0
      %1206 = vmatpush1.bf16.msra.mxu0 %v1190
      %1207 = vmatprep.subr.bf16.mxu0 0
      %1208 = vmatpush1.bf16.msra.mxu0 %v1189
      %1209 = vmatprep.subr.bf16.mxu0 0
      %1210 = vmatpush1.bf16.msra.mxu0 %v1188
      %1211 = vmatprep.subr.bf16.mxu0 0
      %1212 = vmatpush1.bf16.msra.mxu0 %v1187
      %1213 = vmatprep.subr.bf16.mxu0 0
      %1214 = vmatpush1.bf16.msra.mxu0 %v1186
      %1215 = vmatprep.subr.bf16.mxu0 0
      %1216 = vmatpush1.bf16.msra.mxu0 %v1185
      %1217 = vmatprep.subr.bf16.mxu0 0
      %1218 = vmatpush2.bf16.msra.mxu0 0
      %1219 = vmatprep.subr.bf16.mxu0 0
      %1220 = vmatpush2.bf16.msra.mxu0 0
      %1221 = vmatprep.subr.bf16.mxu0 0
      %1222 = vmatpush2.bf16.msra.mxu0 0
      %1223 = vmatprep.subr.bf16.mxu0 0
      %1224 = vmatpush2.bf16.msra.mxu0 0
      %1225 = vmatprep.subr.bf16.mxu0 0
      %1226 = vmatpush2.bf16.msra.mxu0 0
      %1227 = vmatprep.subr.bf16.mxu0 0
      %1228 = vmatpush2.bf16.msra.mxu0 0
      %1229 = vmatprep.subr.bf16.mxu0 0
      %1230 = vmatpush2.bf16.msra.mxu0 0
      %1231 = vmatprep.subr.bf16.mxu0 0
      %1232 = vmatpush2.bf16.msra.mxu0 0
      %1233 = vmatprep.mubr.bf16.mxu0 0
      %1234 = vmatmul.mubr.bf16.gmra.mxu0 %v1139
      %v1235 = vpop.f32.mrf.mxu0
      %v1236 = vadd.f32 0.0, %v1235
      %v1237 = vpop.f32.mrf.mxu0
      %v1238 = vpop.f32.mrf.mxu0
      %v1239 = vadd.f32 0.0, %v1238
      %v1240 = vpop.f32.mrf.mxu0
      %1241 = vmatprep.mubr.bf16.mxu0 0
      %1242 = vmatmul.mubr.bf16.gmra.mxu0 %v1141
      %v1243 = vpop.f32.mrf.mxu0
      %v1244 = vadd.f32 0.0, %v1243
      %v1245 = vpop.f32.mrf.mxu0
      %v1246 = vpop.f32.mrf.mxu0
      %v1247 = vadd.f32 0.0, %v1246
      %v1248 = vpop.f32.mrf.mxu0
      %1249 = vmatprep.mubr.bf16.mxu0 0
      %1250 = vmatmul.mubr.bf16.gmra.mxu0 %v1143
      %v1251 = vpop.f32.mrf.mxu0
      %v1252 = vadd.f32 0.0, %v1251
      %v1253 = vpop.f32.mrf.mxu0
      %v1254 = vpop.f32.mrf.mxu0
      %v1255 = vadd.f32 0.0, %v1254
      %v1256 = vpop.f32.mrf.mxu0
      %1257 = vmatprep.mubr.bf16.mxu0 0
      %1258 = vmatmul.mubr.bf16.gmra.mxu0 %v1145
      %v1259 = vpop.f32.mrf.mxu0
      %v1260 = vadd.f32 0.0, %v1259
      %v1261 = vpop.f32.mrf.mxu0
      %v1262 = vpop.f32.mrf.mxu0
      %v1263 = vadd.f32 0.0, %v1262
      %v1264 = vpop.f32.mrf.mxu0
      %1265 = vmatprep.mubr.bf16.mxu0 0
      %1266 = vmatmul.mubr.bf16.gmra.mxu0 %v1147
      %v1267 = vpop.f32.mrf.mxu0
      %v1268 = vadd.f32 0.0, %v1267
      %v1269 = vpop.f32.mrf.mxu0
      %v1270 = vpop.f32.mrf.mxu0
      %v1271 = vadd.f32 0.0, %v1270
      %v1272 = vpop.f32.mrf.mxu0
      %1273 = vdwg.mxu0
      %v1274 = vadd.f32 %v1071, %v1236
      %v1275 = vadd.f32 %v1072, %v1239
      %v1276 = vadd.f32 %v1073, %v1244
      %v1277 = vadd.f32 %v1074, %v1247
      %v1278 = vadd.f32 %v1075, %v1252
      %v1279 = vadd.f32 %v1076, %v1255
      %v1280 = vadd.f32 %v1077, %v1260
      %v1281 = vadd.f32 %v1078, %v1263
      %v1282 = vadd.f32 %v1079, %v1268
      %v1283 = vadd.f32 %v1080, %v1271
      %v1284 = vld [vmem:[#allocation2 + $0x2c] sm:$0x3]
      %s1285 = scalar_lea.vmem %s1, 256
      %v1286 = vld [vmem:[%s1285] sm:$0xf]
      %v1287 = vld [vmem:[%s1285 + $0x4] sm:$0xf]
      %v1288 = vld [vmem:[%s1285 + $0x8] sm:$0xf]
      %v1289 = vld [vmem:[%s1285 + $0xc] sm:$0xf]
      %v1290 = vld [vmem:[%s1285 + $0x10] sm:$0xf]
      %v1291 = vld [vmem:[%s1285 + $0x14] sm:$0xf]
      %v1292 = vld [vmem:[%s1285 + $0x18] sm:$0xf]
      %v1293 = vld [vmem:[%s1285 + $0x1c] sm:$0xf]
      %v1294 = vld [vmem:[%s1285 + $0x20] sm:$0xf]
      %v1295 = vld [vmem:[%s1285 + $0x24] sm:$0xf]
      %v1296 = vld [vmem:[%s1285 + $0x28] sm:$0xf]
      %v1297 = vld [vmem:[%s1285 + $0x2c] sm:$0xf]
      %v1298 = vld [vmem:[%s1285 + $0x30] sm:$0xf]
      %v1299 = vld [vmem:[%s1285 + $0x34] sm:$0xf]
      %v1300 = vld [vmem:[%s1285 + $0x38] sm:$0xf]
      %v1301 = vld [vmem:[%s1285 + $0x3c] sm:$0xf]
      %v1303 = vunpack.c.l.b16 %v1284
      %v1304 = vpack.c.b16 %v1303, %v1303
      %vm1305 = vsmask.f32 6400
      %v1307 = vshrl.u32 %v1131, 16
      %v1309 = vrot.slane %v1307, 1
      %v1310 = vshll.u32 %v1131, 16
      %v1312 = vrot.slane %v1310, 2
      %v1313 = vor.u32 %v1309, %v1312
      %v1315 = vshrl.u32 %v1132, 16
      %v1317 = vrot.slane %v1315, 1
      %v1318 = vshll.u32 %v1132, 16
      %v1320 = vrot.slane %v1318, 2
      %v1321 = vor.u32 %v1317, %v1320
      %v1322 = vsel %vm1305, %v1313, %v1321
      %v1324 = vshrl.u32 %v1133, 16
      %v1326 = vrot.slane %v1324, 1
      %v1327 = vshll.u32 %v1133, 16
      %v1329 = vrot.slane %v1327, 2
      %v1330 = vor.u32 %v1326, %v1329
      %v1331 = vsel %vm1305, %v1321, %v1330
      %v1333 = vshrl.u32 %v1134, 16
      %v1335 = vrot.slane %v1333, 1
      %v1336 = vshll.u32 %v1134, 16
      %v1338 = vrot.slane %v1336, 2
      %v1339 = vor.u32 %v1335, %v1338
      %v1340 = vsel %vm1305, %v1330, %v1339
      %v1342 = vshrl.u32 %v1135, 16
      %v1344 = vrot.slane %v1342, 1
      %v1345 = vshll.u32 %v1135, 16
      %v1347 = vrot.slane %v1345, 2
      %v1348 = vor.u32 %v1344, %v1347
      %v1349 = vsel %vm1305, %v1339, %v1348
      %v1351 = vshrl.u32 %v1304, 16
      %v1353 = vrot.slane %v1351, 1
      %v1354 = vshll.u32 %v1304, 16
      %v1356 = vrot.slane %v1354, 2
      %v1357 = vor.u32 %v1353, %v1356
      %v1358 = vsel %vm1305, %v1348, %v1357
      %v1380 = vunpack.c.l.b16 %v1286
      %v1381 = vunpack.c.l.b16 %v1287
      %v1382 = vunpack.c.l.b16 %v1288
      %v1383 = vunpack.c.l.b16 %v1289
      %v1384 = vunpack.c.l.b16 %v1290
      %v1385 = vunpack.c.l.b16 %v1291
      %v1386 = vunpack.c.l.b16 %v1292
      %v1387 = vunpack.c.l.b16 %v1293
      %v1388 = vunpack.c.l.b16 %v1294
      %v1389 = vunpack.c.l.b16 %v1295
      %v1390 = vunpack.c.l.b16 %v1296
      %v1391 = vunpack.c.l.b16 %v1297
      %v1392 = vunpack.c.l.b16 %v1298
      %v1393 = vunpack.c.l.b16 %v1299
      %v1394 = vunpack.c.l.b16 %v1300
      %v1395 = vunpack.c.l.b16 %v1301
      %v1396 = vpack.c.b16 %v1381, %v1380
      %v1397 = vpack.c.b16 %v1383, %v1382
      %v1398 = vpack.c.b16 %v1385, %v1384
      %v1399 = vpack.c.b16 %v1387, %v1386
      %v1400 = vpack.c.b16 %v1389, %v1388
      %v1401 = vpack.c.b16 %v1391, %v1390
      %v1402 = vpack.c.b16 %v1393, %v1392
      %v1403 = vpack.c.b16 %v1395, %v1394
      %1412 = vmatprep.subr.bf16.mxu0 0
      %1413 = vmatpush1.bf16.msra.mxu0 %v1403
      %1414 = vmatprep.subr.bf16.mxu0 0
      %1415 = vmatpush1.bf16.msra.mxu0 %v1402
      %1416 = vmatprep.subr.bf16.mxu0 0
      %1417 = vmatpush1.bf16.msra.mxu0 %v1401
      %1418 = vmatprep.subr.bf16.mxu0 0
      %1419 = vmatpush1.bf16.msra.mxu0 %v1400
      %1420 = vmatprep.subr.bf16.mxu0 0
      %1421 = vmatpush1.bf16.msra.mxu0 %v1399
      %1422 = vmatprep.subr.bf16.mxu0 0
      %1423 = vmatpush1.bf16.msra.mxu0 %v1398
      %1424 = vmatprep.subr.bf16.mxu0 0
      %1425 = vmatpush1.bf16.msra.mxu0 %v1397
      %1426 = vmatprep.subr.bf16.mxu0 0
      %1427 = vmatpush1.bf16.msra.mxu0 %v1396
      %1428 = vmatprep.subr.bf16.mxu0 0
      %1429 = vmatpush2.bf16.msra.mxu0 0
      %1430 = vmatprep.subr.bf16.mxu0 0
      %1431 = vmatpush2.bf16.msra.mxu0 0
      %1432 = vmatprep.subr.bf16.mxu0 0
      %1433 = vmatpush2.bf16.msra.mxu0 0
      %1434 = vmatprep.subr.bf16.mxu0 0
      %1435 = vmatpush2.bf16.msra.mxu0 0
      %1436 = vmatprep.subr.bf16.mxu0 0
      %1437 = vmatpush2.bf16.msra.mxu0 0
      %1438 = vmatprep.subr.bf16.mxu0 0
      %1439 = vmatpush2.bf16.msra.mxu0 0
      %1440 = vmatprep.subr.bf16.mxu0 0
      %1441 = vmatpush2.bf16.msra.mxu0 0
      %1442 = vmatprep.subr.bf16.mxu0 0
      %1443 = vmatpush2.bf16.msra.mxu0 0
      %1444 = vmatprep.mubr.bf16.mxu0 0
      %1445 = vmatmul.mubr.bf16.gmra.mxu0 %v1322
      %v1446 = vpop.f32.mrf.mxu0
      %v1447 = vadd.f32 0.0, %v1446
      %v1448 = vpop.f32.mrf.mxu0
      %v1449 = vpop.f32.mrf.mxu0
      %v1450 = vadd.f32 0.0, %v1449
      %v1451 = vpop.f32.mrf.mxu0
      %1452 = vmatprep.mubr.bf16.mxu0 0
      %1453 = vmatmul.mubr.bf16.gmra.mxu0 %v1331
      %v1454 = vpop.f32.mrf.mxu0
      %v1455 = vadd.f32 0.0, %v1454
      %v1456 = vpop.f32.mrf.mxu0
      %v1457 = vpop.f32.mrf.mxu0
      %v1458 = vadd.f32 0.0, %v1457
      %v1459 = vpop.f32.mrf.mxu0
      %1460 = vmatprep.mubr.bf16.mxu0 0
      %1461 = vmatmul.mubr.bf16.gmra.mxu0 %v1340
      %v1462 = vpop.f32.mrf.mxu0
      %v1463 = vadd.f32 0.0, %v1462
      %v1464 = vpop.f32.mrf.mxu0
      %v1465 = vpop.f32.mrf.mxu0
      %v1466 = vadd.f32 0.0, %v1465
      %v1467 = vpop.f32.mrf.mxu0
      %1468 = vmatprep.mubr.bf16.mxu0 0
      %1469 = vmatmul.mubr.bf16.gmra.mxu0 %v1349
      %v1470 = vpop.f32.mrf.mxu0
      %v1471 = vadd.f32 0.0, %v1470
      %v1472 = vpop.f32.mrf.mxu0
      %v1473 = vpop.f32.mrf.mxu0
      %v1474 = vadd.f32 0.0, %v1473
      %v1475 = vpop.f32.mrf.mxu0
      %1476 = vmatprep.mubr.bf16.mxu0 0
      %1477 = vmatmul.mubr.bf16.gmra.mxu0 %v1358
      %v1478 = vpop.f32.mrf.mxu0
      %v1479 = vadd.f32 0.0, %v1478
      %v1480 = vpop.f32.mrf.mxu0
      %v1481 = vpop.f32.mrf.mxu0
      %v1482 = vadd.f32 0.0, %v1481
      %v1483 = vpop.f32.mrf.mxu0
      %1484 = vdwg.mxu0
      %v1485 = vadd.f32 %v1274, %v1447
      %v1486 = vadd.f32 %v1275, %v1450
      %v1487 = vadd.f32 %v1276, %v1455
      %v1488 = vadd.f32 %v1277, %v1458
      %v1489 = vadd.f32 %v1278, %v1463
      %v1490 = vadd.f32 %v1279, %v1466
      %v1491 = vadd.f32 %v1280, %v1471
      %v1492 = vadd.f32 %v1281, %v1474
      %v1493 = vadd.f32 %v1282, %v1479
      %v1494 = vadd.f32 %v1283, %v1482
      %v1495 = vld [vmem:[#allocation2 + $0x4] sm:$0xc]
      %s1496 = scalar_lea.vmem %s1, 320
      %v1497 = vld [vmem:[%s1496] sm:$0xf]
      %v1498 = vld [vmem:[%s1496 + $0x4] sm:$0xf]
      %v1499 = vld [vmem:[%s1496 + $0x8] sm:$0xf]
      %v1500 = vld [vmem:[%s1496 + $0xc] sm:$0xf]
      %v1501 = vld [vmem:[%s1496 + $0x10] sm:$0xf]
      %v1502 = vld [vmem:[%s1496 + $0x14] sm:$0xf]
      %v1503 = vld [vmem:[%s1496 + $0x18] sm:$0xf]
      %v1504 = vld [vmem:[%s1496 + $0x1c] sm:$0xf]
      %v1505 = vld [vmem:[%s1496 + $0x20] sm:$0xf]
      %v1506 = vld [vmem:[%s1496 + $0x24] sm:$0xf]
      %v1507 = vld [vmem:[%s1496 + $0x28] sm:$0xf]
      %v1508 = vld [vmem:[%s1496 + $0x2c] sm:$0xf]
      %v1509 = vld [vmem:[%s1496 + $0x30] sm:$0xf]
      %v1510 = vld [vmem:[%s1496 + $0x34] sm:$0xf]
      %v1511 = vld [vmem:[%s1496 + $0x38] sm:$0xf]
      %v1512 = vld [vmem:[%s1496 + $0x3c] sm:$0xf]
      %v1514 = vunpack.c.l.b16 %v1495
      %v1515 = vpack.c.b16 %v1121, %v1514
      %vm1516 = vcmask 1045504
      %v1517 = vrot.slane %v1515, 2
      %v1518 = vrot.slane %v1132, 2
      %v1519 = vsel %vm1516, %v1517, %v1518
      %v1520 = vrot.slane %v1133, 2
      %v1521 = vsel %vm1516, %v1518, %v1520
      %v1522 = vrot.slane %v1134, 2
      %v1523 = vsel %vm1516, %v1520, %v1522
      %v1524 = vrot.slane %v1135, 2
      %v1525 = vsel %vm1516, %v1522, %v1524
      %v1526 = vrot.slane %v1304, 2
      %v1527 = vsel %vm1516, %v1524, %v1526
      %v1549 = vunpack.c.l.b16 %v1497
      %v1550 = vunpack.c.l.b16 %v1498
      %v1551 = vunpack.c.l.b16 %v1499
      %v1552 = vunpack.c.l.b16 %v1500
      %v1553 = vunpack.c.l.b16 %v1501
      %v1554 = vunpack.c.l.b16 %v1502
      %v1555 = vunpack.c.l.b16 %v1503
      %v1556 = vunpack.c.l.b16 %v1504
      %v1557 = vunpack.c.l.b16 %v1505
      %v1558 = vunpack.c.l.b16 %v1506
      %v1559 = vunpack.c.l.b16 %v1507
      %v1560 = vunpack.c.l.b16 %v1508
      %v1561 = vunpack.c.l.b16 %v1509
      %v1562 = vunpack.c.l.b16 %v1510
      %v1563 = vunpack.c.l.b16 %v1511
      %v1564 = vunpack.c.l.b16 %v1512
      %v1565 = vpack.c.b16 %v1550, %v1549
      %v1566 = vpack.c.b16 %v1552, %v1551
      %v1567 = vpack.c.b16 %v1554, %v1553
      %v1568 = vpack.c.b16 %v1556, %v1555
      %v1569 = vpack.c.b16 %v1558, %v1557
      %v1570 = vpack.c.b16 %v1560, %v1559
      %v1571 = vpack.c.b16 %v1562, %v1561
      %v1572 = vpack.c.b16 %v1564, %v1563
      %1581 = vmatprep.subr.bf16.mxu0 0
      %1582 = vmatpush1.bf16.msra.mxu0 %v1572
      %1583 = vmatprep.subr.bf16.mxu0 0
      %1584 = vmatpush1.bf16.msra.mxu0 %v1571
      %1585 = vmatprep.subr.bf16.mxu0 0
      %1586 = vmatpush1.bf16.msra.mxu0 %v1570
      %1587 = vmatprep.subr.bf16.mxu0 0
      %1588 = vmatpush1.bf16.msra.mxu0 %v1569
      %1589 = vmatprep.subr.bf16.mxu0 0
      %1590 = vmatpush1.bf16.msra.mxu0 %v1568
      %1591 = vmatprep.subr.bf16.mxu0 0
      %1592 = vmatpush1.bf16.msra.mxu0 %v1567
      %1593 = vmatprep.subr.bf16.mxu0 0
      %1594 = vmatpush1.bf16.msra.mxu0 %v1566
      %1595 = vmatprep.subr.bf16.mxu0 0
      %1596 = vmatpush1.bf16.msra.mxu0 %v1565
      %1597 = vmatprep.subr.bf16.mxu0 0
      %1598 = vmatpush2.bf16.msra.mxu0 0
      %1599 = vmatprep.subr.bf16.mxu0 0
      %1600 = vmatpush2.bf16.msra.mxu0 0
      %1601 = vmatprep.subr.bf16.mxu0 0
      %1602 = vmatpush2.bf16.msra.mxu0 0
      %1603 = vmatprep.subr.bf16.mxu0 0
      %1604 = vmatpush2.bf16.msra.mxu0 0
      %1605 = vmatprep.subr.bf16.mxu0 0
      %1606 = vmatpush2.bf16.msra.mxu0 0
      %1607 = vmatprep.subr.bf16.mxu0 0
      %1608 = vmatpush2.bf16.msra.mxu0 0
      %1609 = vmatprep.subr.bf16.mxu0 0
      %1610 = vmatpush2.bf16.msra.mxu0 0
      %1611 = vmatprep.subr.bf16.mxu0 0
      %1612 = vmatpush2.bf16.msra.mxu0 0
      %1613 = vmatprep.mubr.bf16.mxu0 0
      %1614 = vmatmul.mubr.bf16.gmra.mxu0 %v1519
      %v1615 = vpop.f32.mrf.mxu0
      %v1616 = vadd.f32 0.0, %v1615
      %v1617 = vpop.f32.mrf.mxu0
      %v1618 = vpop.f32.mrf.mxu0
      %v1619 = vadd.f32 0.0, %v1618
      %v1620 = vpop.f32.mrf.mxu0
      %1621 = vmatprep.mubr.bf16.mxu0 0
      %1622 = vmatmul.mubr.bf16.gmra.mxu0 %v1521
      %v1623 = vpop.f32.mrf.mxu0
      %v1624 = vadd.f32 0.0, %v1623
      %v1625 = vpop.f32.mrf.mxu0
      %v1626 = vpop.f32.mrf.mxu0
      %v1627 = vadd.f32 0.0, %v1626
      %v1628 = vpop.f32.mrf.mxu0
      %1629 = vmatprep.mubr.bf16.mxu0 0
      %1630 = vmatmul.mubr.bf16.gmra.mxu0 %v1523
      %v1631 = vpop.f32.mrf.mxu0
      %v1632 = vadd.f32 0.0, %v1631
      %v1633 = vpop.f32.mrf.mxu0
      %v1634 = vpop.f32.mrf.mxu0
      %v1635 = vadd.f32 0.0, %v1634
      %v1636 = vpop.f32.mrf.mxu0
      %1637 = vmatprep.mubr.bf16.mxu0 0
      %1638 = vmatmul.mubr.bf16.gmra.mxu0 %v1525
      %v1639 = vpop.f32.mrf.mxu0
      %v1640 = vadd.f32 0.0, %v1639
      %v1641 = vpop.f32.mrf.mxu0
      %v1642 = vpop.f32.mrf.mxu0
      %v1643 = vadd.f32 0.0, %v1642
      %v1644 = vpop.f32.mrf.mxu0
      %1645 = vmatprep.mubr.bf16.mxu0 0
      %1646 = vmatmul.mubr.bf16.gmra.mxu0 %v1527
      %v1647 = vpop.f32.mrf.mxu0
      %v1648 = vadd.f32 0.0, %v1647
      %v1649 = vpop.f32.mrf.mxu0
      %v1650 = vpop.f32.mrf.mxu0
      %v1651 = vadd.f32 0.0, %v1650
      %v1652 = vpop.f32.mrf.mxu0
      %1653 = vdwg.mxu0
      %v1654 = vadd.f32 %v1485, %v1616
      %v1655 = vadd.f32 %v1486, %v1619
      %v1656 = vadd.f32 %v1487, %v1624
      %v1657 = vadd.f32 %v1488, %v1627
      %v1658 = vadd.f32 %v1489, %v1632
      %v1659 = vadd.f32 %v1490, %v1635
      %v1660 = vadd.f32 %v1491, %v1640
      %v1661 = vadd.f32 %v1492, %v1643
      %v1662 = vadd.f32 %v1493, %v1648
      %v1663 = vadd.f32 %v1494, %v1651
      %v1664 = vld [vmem:[#allocation2 + $0x8] sm:$0xc]
      %v1665 = vld [vmem:[#allocation2 + $0xc] sm:$0xf]
      %v1666 = vld [vmem:[#allocation2 + $0x10] sm:$0xf]
      %v1667 = vld [vmem:[#allocation2 + $0x14] sm:$0xf]
      %v1668 = vld [vmem:[#allocation2 + $0x18] sm:$0xf]
      %v1669 = vld [vmem:[#allocation2 + $0x1c] sm:$0xf]
      %v1670 = vld [vmem:[#allocation2 + $0x20] sm:$0xf]
      %v1671 = vld [vmem:[#allocation2 + $0x24] sm:$0xf]
      %v1672 = vld [vmem:[#allocation2 + $0x28] sm:$0xf]
      %v1673 = vld [vmem:[#allocation2 + $0x2c] sm:$0xf]
      %v1674 = vld [vmem:[#allocation2 + $0x30] sm:$0x3]
      %s1675 = scalar_lea.vmem %s1, 384
      %v1676 = vld [vmem:[%s1675] sm:$0xf]
      %v1677 = vld [vmem:[%s1675 + $0x4] sm:$0xf]
      %v1678 = vld [vmem:[%s1675 + $0x8] sm:$0xf]
      %v1679 = vld [vmem:[%s1675 + $0xc] sm:$0xf]
      %v1680 = vld [vmem:[%s1675 + $0x10] sm:$0xf]
      %v1681 = vld [vmem:[%s1675 + $0x14] sm:$0xf]
      %v1682 = vld [vmem:[%s1675 + $0x18] sm:$0xf]
      %v1683 = vld [vmem:[%s1675 + $0x1c] sm:$0xf]
      %v1684 = vld [vmem:[%s1675 + $0x20] sm:$0xf]
      %v1685 = vld [vmem:[%s1675 + $0x24] sm:$0xf]
      %v1686 = vld [vmem:[%s1675 + $0x28] sm:$0xf]
      %v1687 = vld [vmem:[%s1675 + $0x2c] sm:$0xf]
      %v1688 = vld [vmem:[%s1675 + $0x30] sm:$0xf]
      %v1689 = vld [vmem:[%s1675 + $0x34] sm:$0xf]
      %v1690 = vld [vmem:[%s1675 + $0x38] sm:$0xf]
      %v1691 = vld [vmem:[%s1675 + $0x3c] sm:$0xf]
      %v1703 = vunpack.c.l.b16 %v1664
      %v1704 = vunpack.c.l.b16 %v1665
      %v1705 = vunpack.c.l.b16 %v1666
      %v1706 = vunpack.c.l.b16 %v1667
      %v1707 = vunpack.c.l.b16 %v1668
      %v1708 = vunpack.c.l.b16 %v1669
      %v1709 = vunpack.c.l.b16 %v1670
      %v1710 = vunpack.c.l.b16 %v1671
      %v1711 = vunpack.c.l.b16 %v1672
      %v1712 = vunpack.c.l.b16 %v1673
      %v1713 = vunpack.c.l.b16 %v1674
      %v1714 = vpack.c.b16 %v1704, %v1703
      %v1715 = vpack.c.b16 %v1706, %v1705
      %v1716 = vpack.c.b16 %v1708, %v1707
      %v1717 = vpack.c.b16 %v1710, %v1709
      %v1718 = vpack.c.b16 %v1712, %v1711
      %v1719 = vpack.c.b16 %v1713, %v1713
      %v1720 = vrot.slane %v1714, 2
      %v1721 = vrot.slane %v1715, 2
      %v1722 = vsel %vm1516, %v1720, %v1721
      %v1723 = vrot.slane %v1716, 2
      %v1724 = vsel %vm1516, %v1721, %v1723
      %v1725 = vrot.slane %v1717, 2
      %v1726 = vsel %vm1516, %v1723, %v1725
      %v1727 = vrot.slane %v1718, 2
      %v1728 = vsel %vm1516, %v1725, %v1727
      %v1729 = vrot.slane %v1719, 2
      %v1730 = vsel %vm1516, %v1727, %v1729
      %v1752 = vunpack.c.l.b16 %v1676
      %v1753 = vunpack.c.l.b16 %v1677
      %v1754 = vunpack.c.l.b16 %v1678
      %v1755 = vunpack.c.l.b16 %v1679
      %v1756 = vunpack.c.l.b16 %v1680
      %v1757 = vunpack.c.l.b16 %v1681
      %v1758 = vunpack.c.l.b16 %v1682
      %v1759 = vunpack.c.l.b16 %v1683
      %v1760 = vunpack.c.l.b16 %v1684
      %v1761 = vunpack.c.l.b16 %v1685
      %v1762 = vunpack.c.l.b16 %v1686
      %v1763 = vunpack.c.l.b16 %v1687
      %v1764 = vunpack.c.l.b16 %v1688
      %v1765 = vunpack.c.l.b16 %v1689
      %v1766 = vunpack.c.l.b16 %v1690
      %v1767 = vunpack.c.l.b16 %v1691
      %v1768 = vpack.c.b16 %v1753, %v1752
      %v1769 = vpack.c.b16 %v1755, %v1754
      %v1770 = vpack.c.b16 %v1757, %v1756
      %v1771 = vpack.c.b16 %v1759, %v1758
      %v1772 = vpack.c.b16 %v1761, %v1760
      %v1773 = vpack.c.b16 %v1763, %v1762
      %v1774 = vpack.c.b16 %v1765, %v1764
      %v1775 = vpack.c.b16 %v1767, %v1766
      %1784 = vmatprep.subr.bf16.mxu0 0
      %1785 = vmatpush1.bf16.msra.mxu0 %v1775
      %1786 = vmatprep.subr.bf16.mxu0 0
      %1787 = vmatpush1.bf16.msra.mxu0 %v1774
      %1788 = vmatprep.subr.bf16.mxu0 0
      %1789 = vmatpush1.bf16.msra.mxu0 %v1773
      %1790 = vmatprep.subr.bf16.mxu0 0
      %1791 = vmatpush1.bf16.msra.mxu0 %v1772
      %1792 = vmatprep.subr.bf16.mxu0 0
      %1793 = vmatpush1.bf16.msra.mxu0 %v1771
      %1794 = vmatprep.subr.bf16.mxu0 0
      %1795 = vmatpush1.bf16.msra.mxu0 %v1770
      %1796 = vmatprep.subr.bf16.mxu0 0
      %1797 = vmatpush1.bf16.msra.mxu0 %v1769
      %1798 = vmatprep.subr.bf16.mxu0 0
      %1799 = vmatpush1.bf16.msra.mxu0 %v1768
      %1800 = vmatprep.subr.bf16.mxu0 0
      %1801 = vmatpush2.bf16.msra.mxu0 0
      %1802 = vmatprep.subr.bf16.mxu0 0
      %1803 = vmatpush2.bf16.msra.mxu0 0
      %1804 = vmatprep.subr.bf16.mxu0 0
      %1805 = vmatpush2.bf16.msra.mxu0 0
      %1806 = vmatprep.subr.bf16.mxu0 0
      %1807 = vmatpush2.bf16.msra.mxu0 0
      %1808 = vmatprep.subr.bf16.mxu0 0
      %1809 = vmatpush2.bf16.msra.mxu0 0
      %1810 = vmatprep.subr.bf16.mxu0 0
      %1811 = vmatpush2.bf16.msra.mxu0 0
      %1812 = vmatprep.subr.bf16.mxu0 0
      %1813 = vmatpush2.bf16.msra.mxu0 0
      %1814 = vmatprep.subr.bf16.mxu0 0
      %1815 = vmatpush2.bf16.msra.mxu0 0
      %1816 = vmatprep.mubr.bf16.mxu0 0
      %1817 = vmatmul.mubr.bf16.gmra.mxu0 %v1722
      %v1818 = vpop.f32.mrf.mxu0
      %v1819 = vadd.f32 0.0, %v1818
      %v1820 = vpop.f32.mrf.mxu0
      %v1821 = vpop.f32.mrf.mxu0
      %v1822 = vadd.f32 0.0, %v1821
      %v1823 = vpop.f32.mrf.mxu0
      %1824 = vmatprep.mubr.bf16.mxu0 0
      %1825 = vmatmul.mubr.bf16.gmra.mxu0 %v1724
      %v1826 = vpop.f32.mrf.mxu0
      %v1827 = vadd.f32 0.0, %v1826
      %v1828 = vpop.f32.mrf.mxu0
      %v1829 = vpop.f32.mrf.mxu0
      %v1830 = vadd.f32 0.0, %v1829
      %v1831 = vpop.f32.mrf.mxu0
      %1832 = vmatprep.mubr.bf16.mxu0 0
      %1833 = vmatmul.mubr.bf16.gmra.mxu0 %v1726
      %v1834 = vpop.f32.mrf.mxu0
      %v1835 = vadd.f32 0.0, %v1834
      %v1836 = vpop.f32.mrf.mxu0
      %v1837 = vpop.f32.mrf.mxu0
      %v1838 = vadd.f32 0.0, %v1837
      %v1839 = vpop.f32.mrf.mxu0
      %1840 = vmatprep.mubr.bf16.mxu0 0
      %1841 = vmatmul.mubr.bf16.gmra.mxu0 %v1728
      %v1842 = vpop.f32.mrf.mxu0
      %v1843 = vadd.f32 0.0, %v1842
      %v1844 = vpop.f32.mrf.mxu0
      %v1845 = vpop.f32.mrf.mxu0
      %v1846 = vadd.f32 0.0, %v1845
      %v1847 = vpop.f32.mrf.mxu0
      %1848 = vmatprep.mubr.bf16.mxu0 0
      %1849 = vmatmul.mubr.bf16.gmra.mxu0 %v1730
      %v1850 = vpop.f32.mrf.mxu0
      %v1851 = vadd.f32 0.0, %v1850
      %v1852 = vpop.f32.mrf.mxu0
      %v1853 = vpop.f32.mrf.mxu0
      %v1854 = vadd.f32 0.0, %v1853
      %v1855 = vpop.f32.mrf.mxu0
      %1856 = vdwg.mxu0
      %v1857 = vadd.f32 %v1654, %v1819
      %v1858 = vadd.f32 %v1655, %v1822
      %v1859 = vadd.f32 %v1656, %v1827
      %v1860 = vadd.f32 %v1657, %v1830
      %v1861 = vadd.f32 %v1658, %v1835
      %v1862 = vadd.f32 %v1659, %v1838
      %v1863 = vadd.f32 %v1660, %v1843
      %v1864 = vadd.f32 %v1661, %v1846
      %v1865 = vadd.f32 %v1662, %v1851
      %v1866 = vadd.f32 %v1663, %v1854
      %v1867 = vld [vmem:[#allocation2 + $0x30] sm:$0x7]
      %s1868 = scalar_lea.vmem %s1, 448
      %v1869 = vld [vmem:[%s1868] sm:$0xf]
      %v1870 = vld [vmem:[%s1868 + $0x4] sm:$0xf]
      %v1871 = vld [vmem:[%s1868 + $0x8] sm:$0xf]
      %v1872 = vld [vmem:[%s1868 + $0xc] sm:$0xf]
      %v1873 = vld [vmem:[%s1868 + $0x10] sm:$0xf]
      %v1874 = vld [vmem:[%s1868 + $0x14] sm:$0xf]
      %v1875 = vld [vmem:[%s1868 + $0x18] sm:$0xf]
      %v1876 = vld [vmem:[%s1868 + $0x1c] sm:$0xf]
      %v1877 = vld [vmem:[%s1868 + $0x20] sm:$0xf]
      %v1878 = vld [vmem:[%s1868 + $0x24] sm:$0xf]
      %v1879 = vld [vmem:[%s1868 + $0x28] sm:$0xf]
      %v1880 = vld [vmem:[%s1868 + $0x2c] sm:$0xf]
      %v1881 = vld [vmem:[%s1868 + $0x30] sm:$0xf]
      %v1882 = vld [vmem:[%s1868 + $0x34] sm:$0xf]
      %v1883 = vld [vmem:[%s1868 + $0x38] sm:$0xf]
      %v1884 = vld [vmem:[%s1868 + $0x3c] sm:$0xf]
      %v1886 = vunpack.c.l.b16 %v1867
      %v1887 = vpack.c.b16 %v1886, %v1886
      %vm1888 = vsmask.f32 5376
      %v1890 = vshrl.u32 %v1714, 16
      %v1892 = vrot.slane %v1890, 2
      %v1893 = vshll.u32 %v1714, 16
      %v1895 = vrot.slane %v1893, 3
      %v1896 = vor.u32 %v1892, %v1895
      %v1898 = vshrl.u32 %v1715, 16
      %v1900 = vrot.slane %v1898, 2
      %v1901 = vshll.u32 %v1715, 16
      %v1903 = vrot.slane %v1901, 3
      %v1904 = vor.u32 %v1900, %v1903
      %v1905 = vsel %vm1888, %v1896, %v1904
      %v1907 = vshrl.u32 %v1716, 16
      %v1909 = vrot.slane %v1907, 2
      %v1910 = vshll.u32 %v1716, 16
      %v1912 = vrot.slane %v1910, 3
      %v1913 = vor.u32 %v1909, %v1912
      %v1914 = vsel %vm1888, %v1904, %v1913
      %v1916 = vshrl.u32 %v1717, 16
      %v1918 = vrot.slane %v1916, 2
      %v1919 = vshll.u32 %v1717, 16
      %v1921 = vrot.slane %v1919, 3
      %v1922 = vor.u32 %v1918, %v1921
      %v1923 = vsel %vm1888, %v1913, %v1922
      %v1925 = vshrl.u32 %v1718, 16
      %v1927 = vrot.slane %v1925, 2
      %v1928 = vshll.u32 %v1718, 16
      %v1930 = vrot.slane %v1928, 3
      %v1931 = vor.u32 %v1927, %v1930
      %v1932 = vsel %vm1888, %v1922, %v1931
      %v1934 = vshrl.u32 %v1887, 16
      %v1936 = vrot.slane %v1934, 2
      %v1937 = vshll.u32 %v1887, 16
      %v1939 = vrot.slane %v1937, 3
      %v1940 = vor.u32 %v1936, %v1939
      %v1941 = vsel %vm1888, %v1931, %v1940
      %v1963 = vunpack.c.l.b16 %v1869
      %v1964 = vunpack.c.l.b16 %v1870
      %v1965 = vunpack.c.l.b16 %v1871
      %v1966 = vunpack.c.l.b16 %v1872
      %v1967 = vunpack.c.l.b16 %v1873
      %v1968 = vunpack.c.l.b16 %v1874
      %v1969 = vunpack.c.l.b16 %v1875
      %v1970 = vunpack.c.l.b16 %v1876
      %v1971 = vunpack.c.l.b16 %v1877
      %v1972 = vunpack.c.l.b16 %v1878
      %v1973 = vunpack.c.l.b16 %v1879
      %v1974 = vunpack.c.l.b16 %v1880
      %v1975 = vunpack.c.l.b16 %v1881
      %v1976 = vunpack.c.l.b16 %v1882
      %v1977 = vunpack.c.l.b16 %v1883
      %v1978 = vunpack.c.l.b16 %v1884
      %v1979 = vpack.c.b16 %v1964, %v1963
      %v1980 = vpack.c.b16 %v1966, %v1965
      %v1981 = vpack.c.b16 %v1968, %v1967
      %v1982 = vpack.c.b16 %v1970, %v1969
      %v1983 = vpack.c.b16 %v1972, %v1971
      %v1984 = vpack.c.b16 %v1974, %v1973
      %v1985 = vpack.c.b16 %v1976, %v1975
      %v1986 = vpack.c.b16 %v1978, %v1977
      %1995 = vmatprep.subr.bf16.mxu0 0
      %1996 = vmatpush1.bf16.msra.mxu0 %v1986
      %1997 = vmatprep.subr.bf16.mxu0 0
      %1998 = vmatpush1.bf16.msra.mxu0 %v1985
      %1999 = vmatprep.subr.bf16.mxu0 0
      %2000 = vmatpush1.bf16.msra.mxu0 %v1984
      %2001 = vmatprep.subr.bf16.mxu0 0
      %2002 = vmatpush1.bf16.msra.mxu0 %v1983
      %2003 = vmatprep.subr.bf16.mxu0 0
      %2004 = vmatpush1.bf16.msra.mxu0 %v1982
      %2005 = vmatprep.subr.bf16.mxu0 0
      %2006 = vmatpush1.bf16.msra.mxu0 %v1981
      %2007 = vmatprep.subr.bf16.mxu0 0
      %2008 = vmatpush1.bf16.msra.mxu0 %v1980
      %2009 = vmatprep.subr.bf16.mxu0 0
      %2010 = vmatpush1.bf16.msra.mxu0 %v1979
      %2011 = vmatprep.subr.bf16.mxu0 0
      %2012 = vmatpush2.bf16.msra.mxu0 0
      %2013 = vmatprep.subr.bf16.mxu0 0
      %2014 = vmatpush2.bf16.msra.mxu0 0
      %2015 = vmatprep.subr.bf16.mxu0 0
      %2016 = vmatpush2.bf16.msra.mxu0 0
      %2017 = vmatprep.subr.bf16.mxu0 0
      %2018 = vmatpush2.bf16.msra.mxu0 0
      %2019 = vmatprep.subr.bf16.mxu0 0
      %2020 = vmatpush2.bf16.msra.mxu0 0
      %2021 = vmatprep.subr.bf16.mxu0 0
      %2022 = vmatpush2.bf16.msra.mxu0 0
      %2023 = vmatprep.subr.bf16.mxu0 0
      %2024 = vmatpush2.bf16.msra.mxu0 0
      %2025 = vmatprep.subr.bf16.mxu0 0
      %2026 = vmatpush2.bf16.msra.mxu0 0
      %2027 = vmatprep.mubr.bf16.mxu0 0
      %2028 = vmatmul.mubr.bf16.gmra.mxu0 %v1905
      %v2029 = vpop.f32.mrf.mxu0
      %v2030 = vadd.f32 0.0, %v2029
      %v2031 = vpop.f32.mrf.mxu0
      %v2032 = vpop.f32.mrf.mxu0
      %v2033 = vadd.f32 0.0, %v2032
      %v2034 = vpop.f32.mrf.mxu0
      %2035 = vmatprep.mubr.bf16.mxu0 0
      %2036 = vmatmul.mubr.bf16.gmra.mxu0 %v1914
      %v2037 = vpop.f32.mrf.mxu0
      %v2038 = vadd.f32 0.0, %v2037
      %v2039 = vpop.f32.mrf.mxu0
      %v2040 = vpop.f32.mrf.mxu0
      %v2041 = vadd.f32 0.0, %v2040
      %v2042 = vpop.f32.mrf.mxu0
      %2043 = vmatprep.mubr.bf16.mxu0 0
      %2044 = vmatmul.mubr.bf16.gmra.mxu0 %v1923
      %v2045 = vpop.f32.mrf.mxu0
      %v2046 = vadd.f32 0.0, %v2045
      %v2047 = vpop.f32.mrf.mxu0
      %v2048 = vpop.f32.mrf.mxu0
      %v2049 = vadd.f32 0.0, %v2048
      %v2050 = vpop.f32.mrf.mxu0
      %2051 = vmatprep.mubr.bf16.mxu0 0
      %2052 = vmatmul.mubr.bf16.gmra.mxu0 %v1932
      %v2053 = vpop.f32.mrf.mxu0
      %v2054 = vadd.f32 0.0, %v2053
      %v2055 = vpop.f32.mrf.mxu0
      %v2056 = vpop.f32.mrf.mxu0
      %v2057 = vadd.f32 0.0, %v2056
      %v2058 = vpop.f32.mrf.mxu0
      %2059 = vmatprep.mubr.bf16.mxu0 0
      %2060 = vmatmul.mubr.bf16.gmra.mxu0 %v1941
      %v2061 = vpop.f32.mrf.mxu0
      %v2062 = vadd.f32 0.0, %v2061
      %v2063 = vpop.f32.mrf.mxu0
      %v2064 = vpop.f32.mrf.mxu0
      %v2065 = vadd.f32 0.0, %v2064
      %v2066 = vpop.f32.mrf.mxu0
      %2067 = vdwg.mxu0
      %v2068 = vadd.f32 %v1857, %v2030
      %v2069 = vadd.f32 %v1858, %v2033
      %v2070 = vadd.f32 %v1859, %v2038
      %v2071 = vadd.f32 %v1860, %v2041
      %v2072 = vadd.f32 %v1861, %v2046
      %v2073 = vadd.f32 %v1862, %v2049
      %v2074 = vadd.f32 %v1863, %v2054
      %v2075 = vadd.f32 %v1864, %v2057
      %v2076 = vadd.f32 %v1865, %v2062
      %v2077 = vadd.f32 %v1866, %v2065
      %v2078 = vld [vmem:[#allocation2 + $0x8] sm:$0x8]
      %s2079 = scalar_lea.vmem %s1, 512
      %v2080 = vld [vmem:[%s2079] sm:$0xf]
      %v2081 = vld [vmem:[%s2079 + $0x4] sm:$0xf]
      %v2082 = vld [vmem:[%s2079 + $0x8] sm:$0xf]
      %v2083 = vld [vmem:[%s2079 + $0xc] sm:$0xf]
      %v2084 = vld [vmem:[%s2079 + $0x10] sm:$0xf]
      %v2085 = vld [vmem:[%s2079 + $0x14] sm:$0xf]
      %v2086 = vld [vmem:[%s2079 + $0x18] sm:$0xf]
      %v2087 = vld [vmem:[%s2079 + $0x1c] sm:$0xf]
      %v2088 = vld [vmem:[%s2079 + $0x20] sm:$0xf]
      %v2089 = vld [vmem:[%s2079 + $0x24] sm:$0xf]
      %v2090 = vld [vmem:[%s2079 + $0x28] sm:$0xf]
      %v2091 = vld [vmem:[%s2079 + $0x2c] sm:$0xf]
      %v2092 = vld [vmem:[%s2079 + $0x30] sm:$0xf]
      %v2093 = vld [vmem:[%s2079 + $0x34] sm:$0xf]
      %v2094 = vld [vmem:[%s2079 + $0x38] sm:$0xf]
      %v2095 = vld [vmem:[%s2079 + $0x3c] sm:$0xf]
      %v2097 = vunpack.c.l.b16 %v2078
      %v2098 = vpack.c.b16 %v1704, %v2097
      %vm2099 = vcmask 1044480
      %v2100 = vrot.slane %v2098, 3
      %v2101 = vrot.slane %v1715, 3
      %v2102 = vsel %vm2099, %v2100, %v2101
      %v2103 = vrot.slane %v1716, 3
      %v2104 = vsel %vm2099, %v2101, %v2103
      %v2105 = vrot.slane %v1717, 3
      %v2106 = vsel %vm2099, %v2103, %v2105
      %v2107 = vrot.slane %v1718, 3
      %v2108 = vsel %vm2099, %v2105, %v2107
      %v2109 = vrot.slane %v1887, 3
      %v2110 = vsel %vm2099, %v2107, %v2109
      %v2132 = vunpack.c.l.b16 %v2080
      %v2133 = vunpack.c.l.b16 %v2081
      %v2134 = vunpack.c.l.b16 %v2082
      %v2135 = vunpack.c.l.b16 %v2083
      %v2136 = vunpack.c.l.b16 %v2084
      %v2137 = vunpack.c.l.b16 %v2085
      %v2138 = vunpack.c.l.b16 %v2086
      %v2139 = vunpack.c.l.b16 %v2087
      %v2140 = vunpack.c.l.b16 %v2088
      %v2141 = vunpack.c.l.b16 %v2089
      %v2142 = vunpack.c.l.b16 %v2090
      %v2143 = vunpack.c.l.b16 %v2091
      %v2144 = vunpack.c.l.b16 %v2092
      %v2145 = vunpack.c.l.b16 %v2093
      %v2146 = vunpack.c.l.b16 %v2094
      %v2147 = vunpack.c.l.b16 %v2095
      %v2148 = vpack.c.b16 %v2133, %v2132
      %v2149 = vpack.c.b16 %v2135, %v2134
      %v2150 = vpack.c.b16 %v2137, %v2136
      %v2151 = vpack.c.b16 %v2139, %v2138
      %v2152 = vpack.c.b16 %v2141, %v2140
      %v2153 = vpack.c.b16 %v2143, %v2142
      %v2154 = vpack.c.b16 %v2145, %v2144
      %v2155 = vpack.c.b16 %v2147, %v2146
      %2164 = vmatprep.subr.bf16.mxu0 0
      %2165 = vmatpush1.bf16.msra.mxu0 %v2155
      %2166 = vmatprep.subr.bf16.mxu0 0
      %2167 = vmatpush1.bf16.msra.mxu0 %v2154
      %2168 = vmatprep.subr.bf16.mxu0 0
      %2169 = vmatpush1.bf16.msra.mxu0 %v2153
      %2170 = vmatprep.subr.bf16.mxu0 0
      %2171 = vmatpush1.bf16.msra.mxu0 %v2152
      %2172 = vmatprep.subr.bf16.mxu0 0
      %2173 = vmatpush1.bf16.msra.mxu0 %v2151
      %2174 = vmatprep.subr.bf16.mxu0 0
      %2175 = vmatpush1.bf16.msra.mxu0 %v2150
      %2176 = vmatprep.subr.bf16.mxu0 0
      %2177 = vmatpush1.bf16.msra.mxu0 %v2149
      %2178 = vmatprep.subr.bf16.mxu0 0
      %2179 = vmatpush1.bf16.msra.mxu0 %v2148
      %2180 = vmatprep.subr.bf16.mxu0 0
      %2181 = vmatpush2.bf16.msra.mxu0 0
      %2182 = vmatprep.subr.bf16.mxu0 0
      %2183 = vmatpush2.bf16.msra.mxu0 0
      %2184 = vmatprep.subr.bf16.mxu0 0
      %2185 = vmatpush2.bf16.msra.mxu0 0
      %2186 = vmatprep.subr.bf16.mxu0 0
      %2187 = vmatpush2.bf16.msra.mxu0 0
      %2188 = vmatprep.subr.bf16.mxu0 0
      %2189 = vmatpush2.bf16.msra.mxu0 0
      %2190 = vmatprep.subr.bf16.mxu0 0
      %2191 = vmatpush2.bf16.msra.mxu0 0
      %2192 = vmatprep.subr.bf16.mxu0 0
      %2193 = vmatpush2.bf16.msra.mxu0 0
      %2194 = vmatprep.subr.bf16.mxu0 0
      %2195 = vmatpush2.bf16.msra.mxu0 0
      %2196 = vmatprep.mubr.bf16.mxu0 0
      %2197 = vmatmul.mubr.bf16.gmra.mxu0 %v2102
      %v2198 = vpop.f32.mrf.mxu0
      %v2199 = vadd.f32 0.0, %v2198
      %v2200 = vpop.f32.mrf.mxu0
      %v2201 = vpop.f32.mrf.mxu0
      %v2202 = vadd.f32 0.0, %v2201
      %v2203 = vpop.f32.mrf.mxu0
      %2204 = vmatprep.mubr.bf16.mxu0 0
      %2205 = vmatmul.mubr.bf16.gmra.mxu0 %v2104
      %v2206 = vpop.f32.mrf.mxu0
      %v2207 = vadd.f32 0.0, %v2206
      %v2208 = vpop.f32.mrf.mxu0
      %v2209 = vpop.f32.mrf.mxu0
      %v2210 = vadd.f32 0.0, %v2209
      %v2211 = vpop.f32.mrf.mxu0
      %2212 = vmatprep.mubr.bf16.mxu0 0
      %2213 = vmatmul.mubr.bf16.gmra.mxu0 %v2106
      %v2214 = vpop.f32.mrf.mxu0
      %v2215 = vadd.f32 0.0, %v2214
      %v2216 = vpop.f32.mrf.mxu0
      %v2217 = vpop.f32.mrf.mxu0
      %v2218 = vadd.f32 0.0, %v2217
      %v2219 = vpop.f32.mrf.mxu0
      %2220 = vmatprep.mubr.bf16.mxu0 0
      %2221 = vmatmul.mubr.bf16.gmra.mxu0 %v2108
      %v2222 = vpop.f32.mrf.mxu0
      %v2223 = vadd.f32 0.0, %v2222
      %v2224 = vpop.f32.mrf.mxu0
      %v2225 = vpop.f32.mrf.mxu0
      %v2226 = vadd.f32 0.0, %v2225
      %v2227 = vpop.f32.mrf.mxu0
      %2228 = vmatprep.mubr.bf16.mxu0 0
      %2229 = vmatmul.mubr.bf16.gmra.mxu0 %v2110
      %v2230 = vpop.f32.mrf.mxu0
      %v2231 = vadd.f32 0.0, %v2230
      %v2232 = vpop.f32.mrf.mxu0
      %v2233 = vpop.f32.mrf.mxu0
      %v2234 = vadd.f32 0.0, %v2233
      %v2235 = vpop.f32.mrf.mxu0
      %2236 = vdwg.mxu0
      %v2237 = vadd.f32 %v2068, %v2199
      %v2238 = vadd.f32 %v2069, %v2202
      %v2239 = vadd.f32 %v2070, %v2207
      %v2240 = vadd.f32 %v2071, %v2210
      %v2241 = vadd.f32 %v2072, %v2215
      %v2242 = vadd.f32 %v2073, %v2218
      %v2243 = vadd.f32 %v2074, %v2223
      %v2244 = vadd.f32 %v2075, %v2226
      %v2245 = vadd.f32 %v2076, %v2231
      %v2246 = vadd.f32 %v2077, %v2234
      %v2247 = vld [vmem:[%s2] sm:$0xff]
      %v2248 = vld [vmem:[%s2 + $0x8] sm:$0xff]
      %v2249 = vld [vmem:[%s2 + $0x10] sm:$0xff]
      %v2250 = vld [vmem:[%s2 + $0x18] sm:$0xff]
      %v2251 = vld [vmem:[%s2 + $0x20] sm:$0xff]
      %v2252 = vld [vmem:[%s2 + $0x28] sm:$0xff]
      %v2253 = vld [vmem:[%s2 + $0x30] sm:$0xff]
      %v2254 = vld [vmem:[%s2 + $0x38] sm:$0xff]
      %v2255 = vld [vmem:[%s2 + $0x40] sm:$0xff]
      %v2256 = vld [vmem:[%s2 + $0x48] sm:$0xff]
      %2258 = vset.pattern.permute.xlu0 0
      %2259 = vperm.xlu0 %2258, %v2247
      %v2260 = vpop.permute.xlu0 %2259
      %2263 = vset.pattern.permute.xlu0 0
      %2264 = vperm.xlu0 %2263, %v2248
      %v2265 = vpop.permute.xlu0 %2264
      %2268 = vset.pattern.permute.xlu0 0
      %2269 = vperm.xlu0 %2268, %v2249
      %v2270 = vpop.permute.xlu0 %2269
      %2273 = vset.pattern.permute.xlu0 0
      %2274 = vperm.xlu0 %2273, %v2250
      %v2275 = vpop.permute.xlu0 %2274
      %2278 = vset.pattern.permute.xlu0 0
      %2279 = vperm.xlu0 %2278, %v2251
      %v2280 = vpop.permute.xlu0 %2279
      %2283 = vset.pattern.permute.xlu0 0
      %2284 = vperm.xlu0 %2283, %v2252
      %v2285 = vpop.permute.xlu0 %2284
      %2288 = vset.pattern.permute.xlu0 0
      %2289 = vperm.xlu0 %2288, %v2253
      %v2290 = vpop.permute.xlu0 %2289
      %2293 = vset.pattern.permute.xlu0 0
      %2294 = vperm.xlu0 %2293, %v2254
      %v2295 = vpop.permute.xlu0 %2294
      %2298 = vset.pattern.permute.xlu0 0
      %2299 = vperm.xlu0 %2298, %v2255
      %v2300 = vpop.permute.xlu0 %2299
      %2303 = vset.pattern.permute.xlu0 0
      %2304 = vperm.xlu0 %2303, %v2256
      %v2305 = vpop.permute.xlu0 %2304
      %v2307 = vmul.f32 %v2237, %v2260
      %v2308 = vmul.f32 %v2238, %v2265
      %v2309 = vmul.f32 %v2239, %v2270
      %v2310 = vmul.f32 %v2240, %v2275
      %v2311 = vmul.f32 %v2241, %v2280
      %v2312 = vmul.f32 %v2242, %v2285
      %v2313 = vmul.f32 %v2243, %v2290
      %v2314 = vmul.f32 %v2244, %v2295
      %v2315 = vmul.f32 %v2245, %v2300
      %v2316 = vmul.f32 %v2246, %v2305
      %v2317 = vadd.f32 %v2307, %v2308
      %v2318 = vadd.f32 %v2317, %v2309
      %v2319 = vadd.f32 %v2318, %v2310
      %v2320 = vadd.f32 %v2319, %v2311
      %v2321 = vadd.f32 %v2320, %v2312
      %v2322 = vadd.f32 %v2321, %v2313
      %v2323 = vadd.f32 %v2322, %v2314
      %v2324 = vadd.f32 %v2323, %v2315
      %v2325 = vadd.f32 %v2324, %v2316
      %v2326 = vrot.slane %v2325, 4
      %v2327 = vadd.f32 %v2325, %v2326
      %v2328 = vrot.slane %v2327, 2
      %v2329 = vadd.f32 %v2327, %v2328
      %v2330 = vrot.slane %v2329, 1
      %v2331 = vadd.f32 %v2329, %v2330
      %2332 = vst [vmem:[%s289] sm:$0x1] %v2331
      %v2333 = vmul.f32 %v2307, %v2237
      %v2334 = vmul.f32 %v2308, %v2238
      %v2335 = vmul.f32 %v2309, %v2239
      %v2336 = vmul.f32 %v2310, %v2240
      %v2337 = vmul.f32 %v2311, %v2241
      %v2338 = vmul.f32 %v2312, %v2242
      %v2339 = vmul.f32 %v2313, %v2243
      %v2340 = vmul.f32 %v2314, %v2244
      %v2341 = vmul.f32 %v2315, %v2245
      %v2342 = vmul.f32 %v2316, %v2246
      %v2343 = vadd.f32 %v2333, %v2334
      %v2344 = vadd.f32 %v2343, %v2335
      %v2345 = vadd.f32 %v2344, %v2336
      %v2346 = vadd.f32 %v2345, %v2337
      %v2347 = vadd.f32 %v2346, %v2338
      %v2348 = vadd.f32 %v2347, %v2339
      %v2349 = vadd.f32 %v2348, %v2340
      %v2350 = vadd.f32 %v2349, %v2341
      %v2351 = vadd.f32 %v2350, %v2342
      %v2352 = vrot.slane %v2351, 4
      %v2353 = vadd.f32 %v2351, %v2352
      %v2354 = vrot.slane %v2353, 2
      %v2355 = vadd.f32 %v2353, %v2354
      %v2356 = vrot.slane %v2355, 1
      %v2357 = vadd.f32 %v2355, %v2356
      %2358 = vst [vmem:[%s289 + $0x1] sm:$0x1] %v2357
      %v2359 = vpack.c.bf16 %v2238, %v2237
      %v2360 = vpack.c.bf16 %v2240, %v2239
      %v2361 = vpack.c.bf16 %v2242, %v2241
      %v2362 = vpack.c.bf16 %v2244, %v2243
      %v2363 = vpack.c.bf16 %v2246, %v2245
      %v2369 = vunpack.c.l.b16 %v2359
      %v2370 = vunpack.c.h.b16 %v2359
      %v2371 = vunpack.c.l.b16 %v2360
      %v2372 = vunpack.c.h.b16 %v2360
      %v2373 = vunpack.c.l.b16 %v2361
      %v2374 = vunpack.c.h.b16 %v2361
      %v2375 = vunpack.c.l.b16 %v2362
      %v2376 = vunpack.c.h.b16 %v2362
      %v2377 = vunpack.c.l.b16 %v2363
      %v2378 = vunpack.c.h.b16 %v2363
      %v2379 = vpack.c.b16 %v2369, %v2369
      %v2380 = vpack.c.b16 %v2370, %v2370
      %v2381 = vpack.c.b16 %v2371, %v2371
      %v2382 = vpack.c.b16 %v2372, %v2372
      %v2383 = vpack.c.b16 %v2373, %v2373
      %v2384 = vpack.c.b16 %v2374, %v2374
      %v2385 = vpack.c.b16 %v2375, %v2375
      %v2386 = vpack.c.b16 %v2376, %v2376
      %v2387 = vpack.c.b16 %v2377, %v2377
      %v2388 = vpack.c.b16 %v2378, %v2378
      %2399 = vst [vmem:[%s285] sm:$0xf] %v2379
      %2400 = vst [vmem:[%s285 + $0x4] sm:$0xf] %v2380
      %2401 = vst [vmem:[%s285 + $0x8] sm:$0xf] %v2381
      %2402 = vst [vmem:[%s285 + $0xc] sm:$0xf] %v2382
      %2403 = vst [vmem:[%s285 + $0x10] sm:$0xf] %v2383
      %2404 = vst [vmem:[%s285 + $0x14] sm:$0xf] %v2384
      %2405 = vst [vmem:[%s285 + $0x18] sm:$0xf] %v2385
      %2406 = vst [vmem:[%s285 + $0x1c] sm:$0xf] %v2386
      %2407 = vst [vmem:[%s285 + $0x20] sm:$0xf] %v2387
      %2408 = vst [vmem:[%s285 + $0x24] sm:$0xf] %v2388
      %p2409 = scmp.lt.s32.totalorder %s19, 1
      %s2410 = scalar_select %p2409, %s19, 1
      %s2411 = smul.addr %s2410, 10
      %s2412 = smul.addr %s2411, 4
      %s2413 = scalar_lea.vmem %s6, %s2412
      %p2414 = scmp.lt.s32.totalorder %s19, 1
      %s2415 = scalar_select %p2414, %s19, 1
      %s2416 = smul.addr %s2415, 2
      %s2417 = scalar_lea.vmem %s7, %s2416
      // Predicated region
      $region45: #{basic_block_forward.4} parent=43 // pred_check
        %p2418 = pneg %p168
      $region46: #{basic_block_forward.4} parent=43 // pred_check_branch
        %2420 = sbr.rel (%p2418) target = $region48
      $region47: #{basic_block_forward.4} parent=43 // pred_region
        _
      $region48: #{basic_block_forward.4} parent=43 // pred_fallthru
        _
      // Predicated region
      $region49: #{basic_block_forward.4} parent=43 // pred_check
        %p2421 = pneg %p194
      $region50: #{basic_block_forward.4} parent=43 // pred_check_branch
        %2423 = sbr.rel (%p2421) target = $region52
      $region51: #{basic_block_forward.4} parent=43 // pred_region
        _
      $region52: #{basic_block_forward.4} parent=43 // pred_fallthru
        _
    $region44: #{basic_block_forward.4} parent=5 // pred_fallthru
      _
    %p2424 = scmp.le.s32.totalorder 2, %s14
    // Predicated region
    $region53: #{basic_block_forward.4} parent=5 // pred_check
      %p2425 = pneg %p2424
    $region54: #{basic_block_forward.4} parent=5 // pred_check_branch
      %2427 = sbr.rel (%p2425) target = $region56
    $region55: #{basic_block_forward.4} parent=5 // pred_region
      %s2428 = ssub.s32 %s14, 2
      // Predicated region
      $region57: #{basic_block_forward.4} parent=55 // pred_check
        %p2429 = pneg %p174
      $region58: #{basic_block_forward.4} parent=55 // pred_check_branch
        %2431 = sbr.rel (%p2429) target = $region60
      $region59: #{basic_block_forward.4} parent=55 // pred_region
        %p2432 = scmp.lt.s32.totalorder %s20, 1
        %s2433 = scalar_select %p2432, %s20, 1
        %s2434 = smul.addr %s2433, 10
        %s2435 = smul.addr %s2434, 4
        %s2436 = scalar_lea.vmem %s6, %s2435
      $region60: #{basic_block_forward.4} parent=55 // pred_fallthru
        _
      // Predicated region
      $region61: #{basic_block_forward.4} parent=55 // pred_check
        %p2437 = pneg %p200
      $region62: #{basic_block_forward.4} parent=55 // pred_check_branch
        %2439 = sbr.rel (%p2437) target = $region64
      $region63: #{basic_block_forward.4} parent=55 // pred_region
        %p2440 = scmp.lt.s32.totalorder %s20, 1
        %s2441 = scalar_select %p2440, %s20, 1
        %s2442 = smul.addr %s2441, 2
        %s2443 = scalar_lea.vmem %s7, %s2442
      $region64: #{basic_block_forward.4} parent=55 // pred_fallthru
        _
    $region56: #{basic_block_forward.4} parent=5 // pred_fallthru
      _
  $region6: #{basic_block_forward.4} parent=0 // loop_footer
    %s18 = sadd.s32 1, %s14
  $region7: #{basic_block_forward.4} parent=0 // loop_footer_branch
    %13 = sbr.rel target = $region3
  $region8: #{basic_block_forward.4} parent=0 // loop_exit
    _

// kernel: basic_block_forward.3
$region0: #{basic_block_forward.3}
  #allocation0 [shape = 'u32[]', space=smem, size = 0x4, offset = 0x4, fixed_abs, tag = 'smem constant byte address 0x4 - core index']
  #allocation1 [shape = 'u32[144,128]{1,0:T(1,128)}', space=vmem, size = 0x12000, scoped, tag = 'internal scratch']
  %s0 = inlined_call_operand.vmem [shape: bf16[2,4,100,128], index: 0, kind: input, shape index: {}]
  %s1 = inlined_call_operand.vmem [shape: bf16[9,128,128], index: 1, kind: input, shape index: {}]
  %s2 = inlined_call_operand.vmem [shape: f32[80,1], index: 2, kind: input, shape index: {}]
  %s3 = inlined_call_operand.vmem [shape: bf16[128,128], index: 3, kind: input, shape index: {}]
  %s4 = inlined_call_operand.vmem [shape: bf16[2,110,128], index: 4, kind: output, shape index: {0}]
  %s5 = inlined_call_operand.vmem [shape: f32[2,2,128], index: 5, kind: output, shape index: {1}]
  %s6 = inlined_call_operand.vmem [shape: bf16[2,80,128], index: 6, kind: output, shape index: {2}]
  %s7 = inlined_call_operand.vmem [shape: f32[2,2,128], index: 7, kind: output, shape index: {3}]
  %8 = xla_tuple %s4, %s5, %s6, %s7
  %s9 = sld [smem:[#allocation0]]
  $region73: #{basic_block_forward.3} parent=0
    _
  %s11 = ssub.s32 1, %s9
  %s12 = scalar_select 0, %s11, %s9
  loop: start=0, step=1, limit=4
  $region2: #{basic_block_forward.3} parent=0 // loop_pre_header
    _
  $region3: #{basic_block_forward.3} parent=0 // loop_header
    %s14 = sphi 0, %s18
    %p15 = scmp.ge.s32.totalorder %s14, 4
    %s24 = sphi 0, %s26
    %s27 = sphi 0, %s24
    %s28 = sphi 0, %s27
    %s44 = sphi 0, %s28
    %s48 = sphi 0, %s48
    %s50 = sphi 0, %s48
    %s51 = sphi 0, %s50
    %s65 = sphi 0, %s51
    %s69 = sphi 0, %s69
    %s71 = sphi 0, %s69
    %s72 = sphi 0, %s71
    %s86 = sphi 0, %s72
    %s90 = sphi 0, %s90
    %s92 = sphi 0, %s90
    %s93 = sphi 0, %s92
    %s107 = sphi 0, %s93
    %s113 = sphi 0, %s115
    %s116 = sphi 0, %s113
    %s117 = sphi 0, %s116
    %s133 = sphi 0, %s117
    %s139 = sphi 0, %s141
    %s142 = sphi 0, %s139
    %s143 = sphi 0, %s142
    %s159 = sphi 0, %s143
    %s165 = sphi 0, %s167
    %s168 = sphi 0, %s165
    %s169 = sphi 0, %s168
    %s185 = sphi 0, %s169
    %s191 = sphi 0, %s193
    %s194 = sphi 0, %s191
    %s195 = sphi 0, %s194
    %s211 = sphi 0, %s195
  $region4: #{basic_block_forward.3} parent=0 // loop_header_branch
    %17 = sbr.rel (%p15) target = $region8
  $region5: #{basic_block_forward.3} parent=0 // loop_body
    %s19 = ssub.s32 %s14, 1
    %s20 = ssub.s32 %s14, 2
    %s21 = sadd.s32 %s14, 1
    %s22 = ssub.s32 %s14, %s21
    %p23 = scmp.eq.s32.totalorder %s22, 0
    %s25 = sadd.s32 %s24, 1
    %s26 = scalar_select %p23, %s24, %s25
    %p29 = pneg %p23
    %p30 = scmp.eq.s32.totalorder %s14, 1
    %p31 = por %p29, %p30
    %p32 = scmp.ne.s32.totalorder %s24, %s27
    %p33 = scmp.eq.s32.totalorder %s14, 0
    %p34 = por %p32, %p33
    %p35 = scmp.ne.s32.totalorder %s24, %s27
    %p36 = scmp.eq.s32.totalorder %s19, 1
    %p37 = por %p35, %p36
    %p38 = scmp.ne.s32.totalorder %s27, %s28
    %p39 = scmp.eq.s32.totalorder %s19, 0
    %p40 = por %p38, %p39
    %p41 = scmp.ne.s32.totalorder %s27, %s28
    %p42 = scmp.eq.s32.totalorder %s20, 1
    %p43 = por %p41, %p42
    %p45 = scmp.ne.s32.totalorder %s28, %s44
    %p46 = scmp.eq.s32.totalorder %s20, 0
    %p47 = por %p45, %p46
    %s49 = sadd.s32 %s48, 1
    %p52 = scmp.eq.s32.totalorder %s14, 1
    %p53 = scmp.ne.s32.totalorder %s48, %s50
    %p54 = scmp.eq.s32.totalorder %s14, 0
    %p55 = por %p53, %p54
    %p56 = scmp.ne.s32.totalorder %s48, %s50
    %p57 = scmp.eq.s32.totalorder %s19, 1
    %p58 = por %p56, %p57
    %p59 = scmp.ne.s32.totalorder %s50, %s51
    %p60 = scmp.eq.s32.totalorder %s19, 0
    %p61 = por %p59, %p60
    %p62 = scmp.ne.s32.totalorder %s50, %s51
    %p63 = scmp.eq.s32.totalorder %s20, 1
    %p64 = por %p62, %p63
    %p66 = scmp.ne.s32.totalorder %s51, %s65
    %p67 = scmp.eq.s32.totalorder %s20, 0
    %p68 = por %p66, %p67
    %s70 = sadd.s32 %s69, 1
    %p73 = scmp.eq.s32.totalorder %s14, 1
    %p74 = scmp.ne.s32.totalorder %s69, %s71
    %p75 = scmp.eq.s32.totalorder %s14, 0
    %p76 = por %p74, %p75
    %p77 = scmp.ne.s32.totalorder %s69, %s71
    %p78 = scmp.eq.s32.totalorder %s19, 1
    %p79 = por %p77, %p78
    %p80 = scmp.ne.s32.totalorder %s71, %s72
    %p81 = scmp.eq.s32.totalorder %s19, 0
    %p82 = por %p80, %p81
    %p83 = scmp.ne.s32.totalorder %s71, %s72
    %p84 = scmp.eq.s32.totalorder %s20, 1
    %p85 = por %p83, %p84
    %p87 = scmp.ne.s32.totalorder %s72, %s86
    %p88 = scmp.eq.s32.totalorder %s20, 0
    %p89 = por %p87, %p88
    %s91 = sadd.s32 %s90, 1
    %p94 = scmp.eq.s32.totalorder %s14, 1
    %p95 = scmp.ne.s32.totalorder %s90, %s92
    %p96 = scmp.eq.s32.totalorder %s14, 0
    %p97 = por %p95, %p96
    %p98 = scmp.ne.s32.totalorder %s90, %s92
    %p99 = scmp.eq.s32.totalorder %s19, 1
    %p100 = por %p98, %p99
    %p101 = scmp.ne.s32.totalorder %s92, %s93
    %p102 = scmp.eq.s32.totalorder %s19, 0
    %p103 = por %p101, %p102
    %p104 = scmp.ne.s32.totalorder %s92, %s93
    %p105 = scmp.eq.s32.totalorder %s20, 1
    %p106 = por %p104, %p105
    %p108 = scmp.ne.s32.totalorder %s93, %s107
    %p109 = scmp.eq.s32.totalorder %s20, 0
    %p110 = por %p108, %p109
    %s111 = ssub.s32 %s14, %s21
    %p112 = scmp.eq.s32.totalorder %s111, 0
    %s114 = sadd.s32 %s113, 1
    %s115 = scalar_select %p112, %s113, %s114
    %p118 = pneg %p112
    %p119 = scmp.eq.s32.totalorder %s14, 1
    %p120 = por %p118, %p119
    %p121 = scmp.ne.s32.totalorder %s113, %s116
    %p122 = scmp.eq.s32.totalorder %s14, 0
    %p123 = por %p121, %p122
    %p124 = scmp.ne.s32.totalorder %s113, %s116
    %p125 = scmp.eq.s32.totalorder %s19, 1
    %p126 = por %p124, %p125
    %p127 = scmp.ne.s32.totalorder %s116, %s117
    %p128 = scmp.eq.s32.totalorder %s19, 0
    %p129 = por %p127, %p128
    %p130 = scmp.ne.s32.totalorder %s116, %s117
    %p131 = scmp.eq.s32.totalorder %s20, 1
    %p132 = por %p130, %p131
    %p134 = scmp.ne.s32.totalorder %s117, %s133
    %p135 = scmp.eq.s32.totalorder %s20, 0
    %p136 = por %p134, %p135
    %s137 = ssub.s32 %s14, %s21
    %p138 = scmp.eq.s32.totalorder %s137, 0
    %s140 = sadd.s32 %s139, 1
    %s141 = scalar_select %p138, %s139, %s140
    %p144 = pneg %p138
    %p145 = scmp.eq.s32.totalorder %s14, 1
    %p146 = por %p144, %p145
    %p147 = scmp.ne.s32.totalorder %s139, %s142
    %p148 = scmp.eq.s32.totalorder %s14, 0
    %p149 = por %p147, %p148
    %p150 = scmp.ne.s32.totalorder %s139, %s142
    %p151 = scmp.eq.s32.totalorder %s19, 1
    %p152 = por %p150, %p151
    %p153 = scmp.ne.s32.totalorder %s142, %s143
    %p154 = scmp.eq.s32.totalorder %s19, 0
    %p155 = por %p153, %p154
    %p156 = scmp.ne.s32.totalorder %s142, %s143
    %p157 = scmp.eq.s32.totalorder %s20, 1
    %p158 = por %p156, %p157
    %p160 = scmp.ne.s32.totalorder %s143, %s159
    %p161 = scmp.eq.s32.totalorder %s20, 0
    %p162 = por %p160, %p161
    %s163 = ssub.s32 %s14, %s21
    %p164 = scmp.eq.s32.totalorder %s163, 0
    %s166 = sadd.s32 %s165, 1
    %s167 = scalar_select %p164, %s165, %s166
    %p170 = pneg %p164
    %p171 = scmp.eq.s32.totalorder %s14, 1
    %p172 = por %p170, %p171
    %p173 = scmp.ne.s32.totalorder %s165, %s168
    %p174 = scmp.eq.s32.totalorder %s14, 0
    %p175 = por %p173, %p174
    %p176 = scmp.ne.s32.totalorder %s165, %s168
    %p177 = scmp.eq.s32.totalorder %s19, 1
    %p178 = por %p176, %p177
    %p179 = scmp.ne.s32.totalorder %s168, %s169
    %p180 = scmp.eq.s32.totalorder %s19, 0
    %p181 = por %p179, %p180
    %p182 = scmp.ne.s32.totalorder %s168, %s169
    %p183 = scmp.eq.s32.totalorder %s20, 1
    %p184 = por %p182, %p183
    %p186 = scmp.ne.s32.totalorder %s169, %s185
    %p187 = scmp.eq.s32.totalorder %s20, 0
    %p188 = por %p186, %p187
    %s189 = ssub.s32 %s14, %s21
    %p190 = scmp.eq.s32.totalorder %s189, 0
    %s192 = sadd.s32 %s191, 1
    %s193 = scalar_select %p190, %s191, %s192
    %p196 = pneg %p190
    %p197 = scmp.eq.s32.totalorder %s14, 1
    %p198 = por %p196, %p197
    %p199 = scmp.ne.s32.totalorder %s191, %s194
    %p200 = scmp.eq.s32.totalorder %s14, 0
    %p201 = por %p199, %p200
    %p202 = scmp.ne.s32.totalorder %s191, %s194
    %p203 = scmp.eq.s32.totalorder %s19, 1
    %p204 = por %p202, %p203
    %p205 = scmp.ne.s32.totalorder %s194, %s195
    %p206 = scmp.eq.s32.totalorder %s19, 0
    %p207 = por %p205, %p206
    %p208 = scmp.ne.s32.totalorder %s194, %s195
    %p209 = scmp.eq.s32.totalorder %s20, 1
    %p210 = por %p208, %p209
    %p212 = scmp.ne.s32.totalorder %s195, %s211
    %p213 = scmp.eq.s32.totalorder %s20, 0
    %p214 = por %p212, %p213
    %p215 = scmp.le.s32.totalorder 1, %s14
    %p216 = scmp.lt.s32.totalorder %s14, 3
    %p217 = pnand %p215, %p216
    %p218 = pneg %p217
    // Predicated region
    $region9: #{basic_block_forward.3} parent=5 // pred_check
      _
    $region10: #{basic_block_forward.3} parent=5 // pred_check_branch
      %220 = sbr.rel (%p217) target = $region12
    $region11: #{basic_block_forward.3} parent=5 // pred_region
      %s221 = ssub.s32 %s14, 1
      // Predicated region
      $region13: #{basic_block_forward.3} parent=11 // pred_check
        %p222 = pneg %p61
      $region14: #{basic_block_forward.3} parent=11 // pred_check_branch
        %224 = sbr.rel (%p222) target = $region16
      $region15: #{basic_block_forward.3} parent=11 // pred_region
        _
      $region16: #{basic_block_forward.3} parent=11 // pred_fallthru
        _
      // Predicated region
      $region17: #{basic_block_forward.3} parent=11 // pred_check
        %p225 = pneg %p82
      $region18: #{basic_block_forward.3} parent=11 // pred_check_branch
        %227 = sbr.rel (%p225) target = $region20
      $region19: #{basic_block_forward.3} parent=11 // pred_region
        _
      $region20: #{basic_block_forward.3} parent=11 // pred_fallthru
        _
      // Predicated region
      $region21: #{basic_block_forward.3} parent=11 // pred_check
        %p228 = pneg %p103
      $region22: #{basic_block_forward.3} parent=11 // pred_check_branch
        %230 = sbr.rel (%p228) target = $region24
      $region23: #{basic_block_forward.3} parent=11 // pred_region
        _
      $region24: #{basic_block_forward.3} parent=11 // pred_fallthru
        _
    $region12: #{basic_block_forward.3} parent=5 // pred_fallthru
      _
    %p231 = scmp.lt.s32.totalorder %s14, 2
    // Predicated region
    $region25: #{basic_block_forward.3} parent=5 // pred_check
      %p232 = pneg %p231
    $region26: #{basic_block_forward.3} parent=5 // pred_check_branch
      %234 = sbr.rel (%p232) target = $region28
    $region27: #{basic_block_forward.3} parent=5 // pred_region
      // Predicated region
      $region29: #{basic_block_forward.3} parent=27 // pred_check
        %p235 = pneg %p34
      $region30: #{basic_block_forward.3} parent=27 // pred_check_branch
        %237 = sbr.rel (%p235) target = $region32
      $region31: #{basic_block_forward.3} parent=27 // pred_region
        %p238 = scmp.lt.s32.totalorder %s14, 1
        %s239 = scalar_select %p238, %s14, 1
        %s240 = smul.addr %s239, 52
        %s241 = smul.addr %s240, 4
        %s242 = scalar_lea.vmem %s0, %s241
      $region32: #{basic_block_forward.3} parent=27 // pred_fallthru
        _
    $region28: #{basic_block_forward.3} parent=5 // pred_fallthru
      _
    %p243 = scmp.le.s32.totalorder 1, %s14
    %p244 = scmp.lt.s32.totalorder %s14, 3
    %p245 = pnand %p243, %p244
    %p246 = pneg %p245
    // Predicated region
    $region33: #{basic_block_forward.3} parent=5 // pred_check
      _
    $region34: #{basic_block_forward.3} parent=5 // pred_check_branch
      %248 = sbr.rel (%p245) target = $region36
    $region35: #{basic_block_forward.3} parent=5 // pred_region
      %s249 = ssub.s32 %s14, 1
      %p250 = scmp.lt.s32.totalorder %s19, 1
      %s251 = scalar_select %p250, %s19, 1
      %s252 = smul.addr %s251, 52
      %s253 = smul.addr %s252, 4
      %s254 = scalar_lea.vmem %s0, %s253
      %p255 = pneg %p40
      %p256 = pneg %p37
      %p257 = pneg %p61
      %p258 = pneg %p58
      %p259 = pneg %p82
      %p260 = pneg %p79
      %p261 = pneg %p103
      %p262 = pneg %p100
      %p263 = pneg %p129
      %p264 = pneg %p126
      %p265 = scmp.lt.s32.totalorder %s19, 1
      %s266 = scalar_select %p265, %s19, 1
      %s267 = smul.addr %s266, 14
      %s268 = smul.addr %s267, 4
      %s269 = scalar_lea.vmem %s4, %s268
      %p270 = pneg %p155
      %p271 = pneg %p152
      %p272 = scmp.lt.s32.totalorder %s19, 1
      %s273 = scalar_select %p272, %s19, 1
      %s274 = smul.addr %s273, 2
      %s275 = scalar_lea.vmem %s5, %s274
      %p276 = pneg %p181
      %p277 = pneg %p178
      %p278 = scmp.lt.s32.totalorder %s19, 1
      %s279 = scalar_select %p278, %s19, 1
      %s280 = smul.addr %s279, 10
      %s281 = smul.addr %s280, 4
      %s282 = scalar_lea.vmem %s6, %s281
      %p283 = pneg %p207
      %p284 = pneg %p204
      %p285 = scmp.lt.s32.totalorder %s19, 1
      %s286 = scalar_select %p285, %s19, 1
      %s287 = smul.addr %s286, 2
      %s288 = scalar_lea.vmem %s7, %s287
      %p289 = scmp.lt.s32.totalorder %s19, 1
      %s290 = scalar_select %p289, %s19, 1
      %s291 = smul.addr %s290, 52
      %s292 = smul.addr %s291, 4
      %s293 = scalar_lea.vmem %s0, %s292
      %p294 = scmp.lt.s32.totalorder %s19, 1
      %s295 = scalar_select %p294, %s19, 1
      %s296 = smul.addr %s295, 14
      %s297 = smul.addr %s296, 4
      %s298 = scalar_lea.vmem %s4, %s297
      %p299 = scmp.lt.s32.totalorder %s19, 1
      %s300 = scalar_select %p299, %s19, 1
      %s301 = smul.addr %s300, 2
      %s302 = scalar_lea.vmem %s5, %s301
      %p303 = scmp.lt.s32.totalorder %s19, 1
      %s304 = scalar_select %p303, %s19, 1
      %s305 = smul.addr %s304, 10
      %s306 = smul.addr %s305, 4
      %s307 = scalar_lea.vmem %s6, %s306
      %p308 = scmp.lt.s32.totalorder %s19, 1
      %s309 = scalar_select %p308, %s19, 1
      %s310 = smul.addr %s309, 2
      %s311 = scalar_lea.vmem %s7, %s310
      %v313 = vld [vmem:[%s293] sm:$0xf]
      %v314 = vld [vmem:[%s293 + $0x4] sm:$0xf]
      %v315 = vld [vmem:[%s293 + $0x8] sm:$0xf]
      %v316 = vld [vmem:[%s293 + $0xc] sm:$0xf]
      %v317 = vld [vmem:[%s293 + $0x10] sm:$0xf]
      %v318 = vld [vmem:[%s293 + $0x14] sm:$0xf]
      %v319 = vld [vmem:[%s293 + $0x18] sm:$0xf]
      %v320 = vld [vmem:[%s293 + $0x1c] sm:$0xf]
      %v321 = vld [vmem:[%s293 + $0x20] sm:$0xf]
      %v322 = vld [vmem:[%s293 + $0x24] sm:$0xf]
      %v323 = vld [vmem:[%s1] sm:$0xf]
      %v324 = vld [vmem:[%s1 + $0x4] sm:$0xf]
      %v325 = vld [vmem:[%s1 + $0x8] sm:$0xf]
      %v326 = vld [vmem:[%s1 + $0xc] sm:$0xf]
      %v327 = vld [vmem:[%s1 + $0x10] sm:$0xf]
      %v328 = vld [vmem:[%s1 + $0x14] sm:$0xf]
      %v329 = vld [vmem:[%s1 + $0x18] sm:$0xf]
      %v330 = vld [vmem:[%s1 + $0x1c] sm:$0xf]
      %v331 = vld [vmem:[%s1 + $0x20] sm:$0xf]
      %v332 = vld [vmem:[%s1 + $0x24] sm:$0xf]
      %v333 = vld [vmem:[%s1 + $0x28] sm:$0xf]
      %v334 = vld [vmem:[%s1 + $0x2c] sm:$0xf]
      %v335 = vld [vmem:[%s1 + $0x30] sm:$0xf]
      %v336 = vld [vmem:[%s1 + $0x34] sm:$0xf]
      %v337 = vld [vmem:[%s1 + $0x38] sm:$0xf]
      %v338 = vld [vmem:[%s1 + $0x3c] sm:$0xf]
      %s339 = scalar_lea.vmem %s293, 52
      %v340 = vld [vmem:[%s339] sm:$0xf]
      %v341 = vld [vmem:[%s339 + $0x4] sm:$0xf]
      %v342 = vld [vmem:[%s339 + $0x8] sm:$0xf]
      %v343 = vld [vmem:[%s339 + $0xc] sm:$0xf]
      %v344 = vld [vmem:[%s339 + $0x10] sm:$0xf]
      %v345 = vld [vmem:[%s339 + $0x14] sm:$0xf]
      %v346 = vld [vmem:[%s339 + $0x18] sm:$0xf]
      %v347 = vld [vmem:[%s339 + $0x1c] sm:$0xf]
      %v348 = vld [vmem:[%s339 + $0x20] sm:$0xf]
      %v349 = vld [vmem:[%s339 + $0x24] sm:$0xf]
      %s350 = scalar_lea.vmem %s1, 64
      %v351 = vld [vmem:[%s350] sm:$0xf]
      %v352 = vld [vmem:[%s350 + $0x4] sm:$0xf]
      %v353 = vld [vmem:[%s350 + $0x8] sm:$0xf]
      %v354 = vld [vmem:[%s350 + $0xc] sm:$0xf]
      %v355 = vld [vmem:[%s350 + $0x10] sm:$0xf]
      %v356 = vld [vmem:[%s350 + $0x14] sm:$0xf]
      %v357 = vld [vmem:[%s350 + $0x18] sm:$0xf]
      %v358 = vld [vmem:[%s350 + $0x1c] sm:$0xf]
      %v359 = vld [vmem:[%s350 + $0x20] sm:$0xf]
      %v360 = vld [vmem:[%s350 + $0x24] sm:$0xf]
      %v361 = vld [vmem:[%s350 + $0x28] sm:$0xf]
      %v362 = vld [vmem:[%s350 + $0x2c] sm:$0xf]
      %v363 = vld [vmem:[%s350 + $0x30] sm:$0xf]
      %v364 = vld [vmem:[%s350 + $0x34] sm:$0xf]
      %v365 = vld [vmem:[%s350 + $0x38] sm:$0xf]
      %v366 = vld [vmem:[%s350 + $0x3c] sm:$0xf]
      %v377 = vunpack.c.l.b16 %v340
      %v378 = vunpack.c.l.b16 %v341
      %v379 = vunpack.c.l.b16 %v342
      %v380 = vunpack.c.l.b16 %v343
      %v381 = vunpack.c.l.b16 %v344
      %v382 = vunpack.c.l.b16 %v345
      %v383 = vunpack.c.l.b16 %v346
      %v384 = vunpack.c.l.b16 %v347
      %v385 = vunpack.c.l.b16 %v348
      %v386 = vunpack.c.l.b16 %v349
      %v387 = vpack.c.b16 %v378, %v377
      %v388 = vpack.c.b16 %v380, %v379
      %v389 = vpack.c.b16 %v382, %v381
      %v390 = vpack.c.b16 %v384, %v383
      %v391 = vpack.c.b16 %v386, %v385
      %v413 = vunpack.c.l.b16 %v351
      %v414 = vunpack.c.l.b16 %v352
      %v415 = vunpack.c.l.b16 %v353
      %v416 = vunpack.c.l.b16 %v354
      %v417 = vunpack.c.l.b16 %v355
      %v418 = vunpack.c.l.b16 %v356
      %v419 = vunpack.c.l.b16 %v357
      %v420 = vunpack.c.l.b16 %v358
      %v421 = vunpack.c.l.b16 %v359
      %v422 = vunpack.c.l.b16 %v360
      %v423 = vunpack.c.l.b16 %v361
      %v424 = vunpack.c.l.b16 %v362
      %v425 = vunpack.c.l.b16 %v363
      %v426 = vunpack.c.l.b16 %v364
      %v427 = vunpack.c.l.b16 %v365
      %v428 = vunpack.c.l.b16 %v366
      %v429 = vpack.c.b16 %v414, %v413
      %v430 = vpack.c.b16 %v416, %v415
      %v431 = vpack.c.b16 %v418, %v417
      %v432 = vpack.c.b16 %v420, %v419
      %v433 = vpack.c.b16 %v422, %v421
      %v434 = vpack.c.b16 %v424, %v423
      %v435 = vpack.c.b16 %v426, %v425
      %v436 = vpack.c.b16 %v428, %v427
      %445 = vmatprep.subr.bf16.mxu0 0
      %446 = vmatpush1.bf16.msra.mxu0 %v436
      %447 = vmatprep.subr.bf16.mxu0 0
      %448 = vmatpush1.bf16.msra.mxu0 %v435
      %449 = vmatprep.subr.bf16.mxu0 0
      %450 = vmatpush1.bf16.msra.mxu0 %v434
      %451 = vmatprep.subr.bf16.mxu0 0
      %452 = vmatpush1.bf16.msra.mxu0 %v433
      %453 = vmatprep.subr.bf16.mxu0 0
      %454 = vmatpush1.bf16.msra.mxu0 %v432
      %455 = vmatprep.subr.bf16.mxu0 0
      %456 = vmatpush1.bf16.msra.mxu0 %v431
      %457 = vmatprep.subr.bf16.mxu0 0
      %458 = vmatpush1.bf16.msra.mxu0 %v430
      %459 = vmatprep.subr.bf16.mxu0 0
      %460 = vmatpush1.bf16.msra.mxu0 %v429
      %461 = vmatprep.subr.bf16.mxu0 0
      %462 = vmatpush2.bf16.msra.mxu0 0
      %463 = vmatprep.subr.bf16.mxu0 0
      %464 = vmatpush2.bf16.msra.mxu0 0
      %465 = vmatprep.subr.bf16.mxu0 0
      %466 = vmatpush2.bf16.msra.mxu0 0
      %467 = vmatprep.subr.bf16.mxu0 0
      %468 = vmatpush2.bf16.msra.mxu0 0
      %469 = vmatprep.subr.bf16.mxu0 0
      %470 = vmatpush2.bf16.msra.mxu0 0
      %471 = vmatprep.subr.bf16.mxu0 0
      %472 = vmatpush2.bf16.msra.mxu0 0
      %473 = vmatprep.subr.bf16.mxu0 0
      %474 = vmatpush2.bf16.msra.mxu0 0
      %475 = vmatprep.subr.bf16.mxu0 0
      %476 = vmatpush2.bf16.msra.mxu0 0
      %477 = vmatprep.mubr.bf16.mxu0 0
      %478 = vmatmul.mubr.bf16.gmra.mxu0 %v387
      %v479 = vpop.f32.mrf.mxu0
      %v480 = vadd.f32 0.0, %v479
      %v481 = vpop.f32.mrf.mxu0
      %v482 = vpop.f32.mrf.mxu0
      %v483 = vadd.f32 0.0, %v482
      %v484 = vpop.f32.mrf.mxu0
      %485 = vmatprep.mubr.bf16.mxu0 0
      %486 = vmatmul.mubr.bf16.gmra.mxu0 %v388
      %v487 = vpop.f32.mrf.mxu0
      %v488 = vadd.f32 0.0, %v487
      %v489 = vpop.f32.mrf.mxu0
      %v490 = vpop.f32.mrf.mxu0
      %v491 = vadd.f32 0.0, %v490
      %v492 = vpop.f32.mrf.mxu0
      %493 = vmatprep.mubr.bf16.mxu0 0
      %494 = vmatmul.mubr.bf16.gmra.mxu0 %v389
      %v495 = vpop.f32.mrf.mxu0
      %v496 = vadd.f32 0.0, %v495
      %v497 = vpop.f32.mrf.mxu0
      %v498 = vpop.f32.mrf.mxu0
      %v499 = vadd.f32 0.0, %v498
      %v500 = vpop.f32.mrf.mxu0
      %501 = vmatprep.mubr.bf16.mxu0 0
      %502 = vmatmul.mubr.bf16.gmra.mxu0 %v390
      %v503 = vpop.f32.mrf.mxu0
      %v504 = vadd.f32 0.0, %v503
      %v505 = vpop.f32.mrf.mxu0
      %v506 = vpop.f32.mrf.mxu0
      %v507 = vadd.f32 0.0, %v506
      %v508 = vpop.f32.mrf.mxu0
      %509 = vmatprep.mubr.bf16.mxu0 0
      %510 = vmatmul.mubr.bf16.gmra.mxu0 %v391
      %v511 = vpop.f32.mrf.mxu0
      %v512 = vadd.f32 0.0, %v511
      %v513 = vpop.f32.mrf.mxu0
      %v514 = vpop.f32.mrf.mxu0
      %v515 = vadd.f32 0.0, %v514
      %v516 = vpop.f32.mrf.mxu0
      %517 = vdwg.mxu0
      %v528 = vunpack.c.l.b16 %v313
      %v529 = vunpack.c.l.b16 %v314
      %v530 = vunpack.c.l.b16 %v315
      %v531 = vunpack.c.l.b16 %v316
      %v532 = vunpack.c.l.b16 %v317
      %v533 = vunpack.c.l.b16 %v318
      %v534 = vunpack.c.l.b16 %v319
      %v535 = vunpack.c.l.b16 %v320
      %v536 = vunpack.c.l.b16 %v321
      %v537 = vunpack.c.l.b16 %v322
      %v538 = vpack.c.b16 %v529, %v528
      %v539 = vpack.c.b16 %v531, %v530
      %v540 = vpack.c.b16 %v533, %v532
      %v541 = vpack.c.b16 %v535, %v534
      %v542 = vpack.c.b16 %v537, %v536
      %v564 = vunpack.c.l.b16 %v323
      %v565 = vunpack.c.l.b16 %v324
      %v566 = vunpack.c.l.b16 %v325
      %v567 = vunpack.c.l.b16 %v326
      %v568 = vunpack.c.l.b16 %v327
      %v569 = vunpack.c.l.b16 %v328
      %v570 = vunpack.c.l.b16 %v329
      %v571 = vunpack.c.l.b16 %v330
      %v572 = vunpack.c.l.b16 %v331
      %v573 = vunpack.c.l.b16 %v332
      %v574 = vunpack.c.l.b16 %v333
      %v575 = vunpack.c.l.b16 %v334
      %v576 = vunpack.c.l.b16 %v335
      %v577 = vunpack.c.l.b16 %v336
      %v578 = vunpack.c.l.b16 %v337
      %v579 = vunpack.c.l.b16 %v338
      %v580 = vpack.c.b16 %v565, %v564
      %v581 = vpack.c.b16 %v567, %v566
      %v582 = vpack.c.b16 %v569, %v568
      %v583 = vpack.c.b16 %v571, %v570
      %v584 = vpack.c.b16 %v573, %v572
      %v585 = vpack.c.b16 %v575, %v574
      %v586 = vpack.c.b16 %v577, %v576
      %v587 = vpack.c.b16 %v579, %v578
      %596 = vmatprep.subr.bf16.mxu0 0
      %597 = vmatpush1.bf16.msra.mxu0 %v587
      %598 = vmatprep.subr.bf16.mxu0 0
      %599 = vmatpush1.bf16.msra.mxu0 %v586
      %600 = vmatprep.subr.bf16.mxu0 0
      %601 = vmatpush1.bf16.msra.mxu0 %v585
      %602 = vmatprep.subr.bf16.mxu0 0
      %603 = vmatpush1.bf16.msra.mxu0 %v584
      %604 = vmatprep.subr.bf16.mxu0 0
      %605 = vmatpush1.bf16.msra.mxu0 %v583
      %606 = vmatprep.subr.bf16.mxu0 0
      %607 = vmatpush1.bf16.msra.mxu0 %v582
      %608 = vmatprep.subr.bf16.mxu0 0
      %609 = vmatpush1.bf16.msra.mxu0 %v581
      %610 = vmatprep.subr.bf16.mxu0 0
      %611 = vmatpush1.bf16.msra.mxu0 %v580
      %612 = vmatprep.subr.bf16.mxu0 0
      %613 = vmatpush2.bf16.msra.mxu0 0
      %614 = vmatprep.subr.bf16.mxu0 0
      %615 = vmatpush2.bf16.msra.mxu0 0
      %616 = vmatprep.subr.bf16.mxu0 0
      %617 = vmatpush2.bf16.msra.mxu0 0
      %618 = vmatprep.subr.bf16.mxu0 0
      %619 = vmatpush2.bf16.msra.mxu0 0
      %620 = vmatprep.subr.bf16.mxu0 0
      %621 = vmatpush2.bf16.msra.mxu0 0
      %622 = vmatprep.subr.bf16.mxu0 0
      %623 = vmatpush2.bf16.msra.mxu0 0
      %624 = vmatprep.subr.bf16.mxu0 0
      %625 = vmatpush2.bf16.msra.mxu0 0
      %626 = vmatprep.subr.bf16.mxu0 0
      %627 = vmatpush2.bf16.msra.mxu0 0
      %628 = vmatprep.mubr.bf16.mxu0 0
      %629 = vmatmul.mubr.bf16.gmra.mxu0 %v538
      %v630 = vpop.f32.mrf.mxu0
      %v631 = vadd.f32 %v480, %v630
      %v632 = vpop.f32.mrf.mxu0
      %v633 = vpop.f32.mrf.mxu0
      %v634 = vadd.f32 %v483, %v633
      %v635 = vpop.f32.mrf.mxu0
      %636 = vmatprep.mubr.bf16.mxu0 0
      %637 = vmatmul.mubr.bf16.gmra.mxu0 %v539
      %v638 = vpop.f32.mrf.mxu0
      %v639 = vadd.f32 %v488, %v638
      %v640 = vpop.f32.mrf.mxu0
      %v641 = vpop.f32.mrf.mxu0
      %v642 = vadd.f32 %v491, %v641
      %v643 = vpop.f32.mrf.mxu0
      %644 = vmatprep.mubr.bf16.mxu0 0
      %645 = vmatmul.mubr.bf16.gmra.mxu0 %v540
      %v646 = vpop.f32.mrf.mxu0
      %v647 = vadd.f32 %v496, %v646
      %v648 = vpop.f32.mrf.mxu0
      %v649 = vpop.f32.mrf.mxu0
      %v650 = vadd.f32 %v499, %v649
      %v651 = vpop.f32.mrf.mxu0
      %652 = vmatprep.mubr.bf16.mxu0 0
      %653 = vmatmul.mubr.bf16.gmra.mxu0 %v541
      %v654 = vpop.f32.mrf.mxu0
      %v655 = vadd.f32 %v504, %v654
      %v656 = vpop.f32.mrf.mxu0
      %v657 = vpop.f32.mrf.mxu0
      %v658 = vadd.f32 %v507, %v657
      %v659 = vpop.f32.mrf.mxu0
      %660 = vmatprep.mubr.bf16.mxu0 0
      %661 = vmatmul.mubr.bf16.gmra.mxu0 %v542
      %v662 = vpop.f32.mrf.mxu0
      %v663 = vadd.f32 %v512, %v662
      %v664 = vpop.f32.mrf.mxu0
      %v665 = vpop.f32.mrf.mxu0
      %v666 = vadd.f32 %v515, %v665
      %v667 = vpop.f32.mrf.mxu0
      %668 = vdwg.mxu0
      %v669 = vld [vmem:[%s293] sm:$0xf]
      %v670 = vld [vmem:[%s293 + $0x4] sm:$0xf]
      %v671 = vld [vmem:[%s293 + $0x8] sm:$0xf]
      %v672 = vld [vmem:[%s293 + $0xc] sm:$0xf]
      %v673 = vld [vmem:[%s293 + $0x10] sm:$0xf]
      %v674 = vld [vmem:[%s293 + $0x14] sm:$0xf]
      %v675 = vld [vmem:[%s293 + $0x18] sm:$0xf]
      %v676 = vld [vmem:[%s293 + $0x1c] sm:$0xf]
      %v677 = vld [vmem:[%s293 + $0x20] sm:$0xf]
      %v678 = vld [vmem:[%s293 + $0x24] sm:$0xf]
      %v679 = vld [vmem:[%s293 + $0x28] sm:$0x1]
      %s680 = scalar_lea.vmem %s1, 128
      %v681 = vld [vmem:[%s680] sm:$0xf]
      %v682 = vld [vmem:[%s680 + $0x4] sm:$0xf]
      %v683 = vld [vmem:[%s680 + $0x8] sm:$0xf]
      %v684 = vld [vmem:[%s680 + $0xc] sm:$0xf]
      %v685 = vld [vmem:[%s680 + $0x10] sm:$0xf]
      %v686 = vld [vmem:[%s680 + $0x14] sm:$0xf]
      %v687 = vld [vmem:[%s680 + $0x18] sm:$0xf]
      %v688 = vld [vmem:[%s680 + $0x1c] sm:$0xf]
      %v689 = vld [vmem:[%s680 + $0x20] sm:$0xf]
      %v690 = vld [vmem:[%s680 + $0x24] sm:$0xf]
      %v691 = vld [vmem:[%s680 + $0x28] sm:$0xf]
      %v692 = vld [vmem:[%s680 + $0x2c] sm:$0xf]
      %v693 = vld [vmem:[%s680 + $0x30] sm:$0xf]
      %v694 = vld [vmem:[%s680 + $0x34] sm:$0xf]
      %v695 = vld [vmem:[%s680 + $0x38] sm:$0xf]
      %v696 = vld [vmem:[%s680 + $0x3c] sm:$0xf]
      %v708 = vunpack.c.l.b16 %v669
      %v709 = vunpack.c.l.b16 %v670
      %v710 = vunpack.c.l.b16 %v671
      %v711 = vunpack.c.l.b16 %v672
      %v712 = vunpack.c.l.b16 %v673
      %v713 = vunpack.c.l.b16 %v674
      %v714 = vunpack.c.l.b16 %v675
      %v715 = vunpack.c.l.b16 %v676
      %v716 = vunpack.c.l.b16 %v677
      %v717 = vunpack.c.l.b16 %v678
      %v718 = vunpack.c.l.b16 %v679
      %v719 = vpack.c.b16 %v709, %v708
      %v720 = vpack.c.b16 %v711, %v710
      %v721 = vpack.c.b16 %v713, %v712
      %v722 = vpack.c.b16 %v715, %v714
      %v723 = vpack.c.b16 %v717, %v716
      %v724 = vpack.c.b16 %v718, %v718
      %vm725 = vsmask.f32 7424
      %v727 = vshrl.u32 %v719, 16
      %v729 = vshll.u32 %v719, 16
      %v731 = vrot.slane %v729, 1
      %v732 = vor.u32 %v727, %v731
      %v734 = vshll.u32 %v720, 16
      %v736 = vrot.slane %v734, 1
      %v737 = vsel %vm725, %v732, %v736
      %v738 = vshrl.u32 %v720, 16
      %v740 = vor.u32 %v738, %v736
      %v742 = vshll.u32 %v721, 16
      %v744 = vrot.slane %v742, 1
      %v745 = vsel %vm725, %v740, %v744
      %v746 = vshrl.u32 %v721, 16
      %v748 = vor.u32 %v746, %v744
      %v750 = vshll.u32 %v722, 16
      %v752 = vrot.slane %v750, 1
      %v753 = vsel %vm725, %v748, %v752
      %v754 = vshrl.u32 %v722, 16
      %v756 = vor.u32 %v754, %v752
      %v758 = vshll.u32 %v723, 16
      %v760 = vrot.slane %v758, 1
      %v761 = vsel %vm725, %v756, %v760
      %v762 = vshrl.u32 %v723, 16
      %v764 = vor.u32 %v762, %v760
      %v766 = vshll.u32 %v724, 16
      %v768 = vrot.slane %v766, 1
      %v769 = vsel %vm725, %v764, %v768
      %v791 = vunpack.c.l.b16 %v681
      %v792 = vunpack.c.l.b16 %v682
      %v793 = vunpack.c.l.b16 %v683
      %v794 = vunpack.c.l.b16 %v684
      %v795 = vunpack.c.l.b16 %v685
      %v796 = vunpack.c.l.b16 %v686
      %v797 = vunpack.c.l.b16 %v687
      %v798 = vunpack.c.l.b16 %v688
      %v799 = vunpack.c.l.b16 %v689
      %v800 = vunpack.c.l.b16 %v690
      %v801 = vunpack.c.l.b16 %v691
      %v802 = vunpack.c.l.b16 %v692
      %v803 = vunpack.c.l.b16 %v693
      %v804 = vunpack.c.l.b16 %v694
      %v805 = vunpack.c.l.b16 %v695
      %v806 = vunpack.c.l.b16 %v696
      %v807 = vpack.c.b16 %v792, %v791
      %v808 = vpack.c.b16 %v794, %v793
      %v809 = vpack.c.b16 %v796, %v795
      %v810 = vpack.c.b16 %v798, %v797
      %v811 = vpack.c.b16 %v800, %v799
      %v812 = vpack.c.b16 %v802, %v801
      %v813 = vpack.c.b16 %v804, %v803
      %v814 = vpack.c.b16 %v806, %v805
      %823 = vmatprep.subr.bf16.mxu0 0
      %824 = vmatpush1.bf16.msra.mxu0 %v814
      %825 = vmatprep.subr.bf16.mxu0 0
      %826 = vmatpush1.bf16.msra.mxu0 %v813
      %827 = vmatprep.subr.bf16.mxu0 0
      %828 = vmatpush1.bf16.msra.mxu0 %v812
      %829 = vmatprep.subr.bf16.mxu0 0
      %830 = vmatpush1.bf16.msra.mxu0 %v811
      %831 = vmatprep.subr.bf16.mxu0 0
      %832 = vmatpush1.bf16.msra.mxu0 %v810
      %833 = vmatprep.subr.bf16.mxu0 0
      %834 = vmatpush1.bf16.msra.mxu0 %v809
      %835 = vmatprep.subr.bf16.mxu0 0
      %836 = vmatpush1.bf16.msra.mxu0 %v808
      %837 = vmatprep.subr.bf16.mxu0 0
      %838 = vmatpush1.bf16.msra.mxu0 %v807
      %839 = vmatprep.subr.bf16.mxu0 0
      %840 = vmatpush2.bf16.msra.mxu0 0
      %841 = vmatprep.subr.bf16.mxu0 0
      %842 = vmatpush2.bf16.msra.mxu0 0
      %843 = vmatprep.subr.bf16.mxu0 0
      %844 = vmatpush2.bf16.msra.mxu0 0
      %845 = vmatprep.subr.bf16.mxu0 0
      %846 = vmatpush2.bf16.msra.mxu0 0
      %847 = vmatprep.subr.bf16.mxu0 0
      %848 = vmatpush2.bf16.msra.mxu0 0
      %849 = vmatprep.subr.bf16.mxu0 0
      %850 = vmatpush2.bf16.msra.mxu0 0
      %851 = vmatprep.subr.bf16.mxu0 0
      %852 = vmatpush2.bf16.msra.mxu0 0
      %853 = vmatprep.subr.bf16.mxu0 0
      %854 = vmatpush2.bf16.msra.mxu0 0
      %855 = vmatprep.mubr.bf16.mxu0 0
      %856 = vmatmul.mubr.bf16.gmra.mxu0 %v737
      %v857 = vpop.f32.mrf.mxu0
      %v858 = vadd.f32 0.0, %v857
      %v859 = vpop.f32.mrf.mxu0
      %v860 = vpop.f32.mrf.mxu0
      %v861 = vadd.f32 0.0, %v860
      %v862 = vpop.f32.mrf.mxu0
      %863 = vmatprep.mubr.bf16.mxu0 0
      %864 = vmatmul.mubr.bf16.gmra.mxu0 %v745
      %v865 = vpop.f32.mrf.mxu0
      %v866 = vadd.f32 0.0, %v865
      %v867 = vpop.f32.mrf.mxu0
      %v868 = vpop.f32.mrf.mxu0
      %v869 = vadd.f32 0.0, %v868
      %v870 = vpop.f32.mrf.mxu0
      %871 = vmatprep.mubr.bf16.mxu0 0
      %872 = vmatmul.mubr.bf16.gmra.mxu0 %v753
      %v873 = vpop.f32.mrf.mxu0
      %v874 = vadd.f32 0.0, %v873
      %v875 = vpop.f32.mrf.mxu0
      %v876 = vpop.f32.mrf.mxu0
      %v877 = vadd.f32 0.0, %v876
      %v878 = vpop.f32.mrf.mxu0
      %879 = vmatprep.mubr.bf16.mxu0 0
      %880 = vmatmul.mubr.bf16.gmra.mxu0 %v761
      %v881 = vpop.f32.mrf.mxu0
      %v882 = vadd.f32 0.0, %v881
      %v883 = vpop.f32.mrf.mxu0
      %v884 = vpop.f32.mrf.mxu0
      %v885 = vadd.f32 0.0, %v884
      %v886 = vpop.f32.mrf.mxu0
      %887 = vmatprep.mubr.bf16.mxu0 0
      %888 = vmatmul.mubr.bf16.gmra.mxu0 %v769
      %v889 = vpop.f32.mrf.mxu0
      %v890 = vadd.f32 0.0, %v889
      %v891 = vpop.f32.mrf.mxu0
      %v892 = vpop.f32.mrf.mxu0
      %v893 = vadd.f32 0.0, %v892
      %v894 = vpop.f32.mrf.mxu0
      %895 = vdwg.mxu0
      %v896 = vadd.f32 %v631, %v858
      %v897 = vadd.f32 %v634, %v861
      %v898 = vadd.f32 %v639, %v866
      %v899 = vadd.f32 %v642, %v869
      %v900 = vadd.f32 %v647, %v874
      %v901 = vadd.f32 %v650, %v877
      %v902 = vadd.f32 %v655, %v882
      %v903 = vadd.f32 %v658, %v885
      %v904 = vadd.f32 %v663, %v890
      %v905 = vadd.f32 %v666, %v893
      %s906 = scalar_lea.vmem %s293, 104
      %v907 = vld [vmem:[%s906] sm:$0xf]
      %v908 = vld [vmem:[%s906 + $0x4] sm:$0xf]
      %v909 = vld [vmem:[%s906 + $0x8] sm:$0xf]
      %v910 = vld [vmem:[%s906 + $0xc] sm:$0xf]
      %v911 = vld [vmem:[%s906 + $0x10] sm:$0xf]
      %v912 = vld [vmem:[%s906 + $0x14] sm:$0xf]
      %v913 = vld [vmem:[%s906 + $0x18] sm:$0xf]
      %v914 = vld [vmem:[%s906 + $0x1c] sm:$0xf]
      %v915 = vld [vmem:[%s906 + $0x20] sm:$0xf]
      %v916 = vld [vmem:[%s906 + $0x24] sm:$0xf]
      %s917 = scalar_lea.vmem %s1, 192
      %v918 = vld [vmem:[%s917] sm:$0xf]
      %v919 = vld [vmem:[%s917 + $0x4] sm:$0xf]
      %v920 = vld [vmem:[%s917 + $0x8] sm:$0xf]
      %v921 = vld [vmem:[%s917 + $0xc] sm:$0xf]
      %v922 = vld [vmem:[%s917 + $0x10] sm:$0xf]
      %v923 = vld [vmem:[%s917 + $0x14] sm:$0xf]
      %v924 = vld [vmem:[%s917 + $0x18] sm:$0xf]
      %v925 = vld [vmem:[%s917 + $0x1c] sm:$0xf]
      %v926 = vld [vmem:[%s917 + $0x20] sm:$0xf]
      %v927 = vld [vmem:[%s917 + $0x24] sm:$0xf]
      %v928 = vld [vmem:[%s917 + $0x28] sm:$0xf]
      %v929 = vld [vmem:[%s917 + $0x2c] sm:$0xf]
      %v930 = vld [vmem:[%s917 + $0x30] sm:$0xf]
      %v931 = vld [vmem:[%s917 + $0x34] sm:$0xf]
      %v932 = vld [vmem:[%s917 + $0x38] sm:$0xf]
      %v933 = vld [vmem:[%s917 + $0x3c] sm:$0xf]
      %v944 = vunpack.c.l.b16 %v907
      %v945 = vunpack.c.l.b16 %v908
      %v946 = vunpack.c.l.b16 %v909
      %v947 = vunpack.c.l.b16 %v910
      %v948 = vunpack.c.l.b16 %v911
      %v949 = vunpack.c.l.b16 %v912
      %v950 = vunpack.c.l.b16 %v913
      %v951 = vunpack.c.l.b16 %v914
      %v952 = vunpack.c.l.b16 %v915
      %v953 = vunpack.c.l.b16 %v916
      %v954 = vpack.c.b16 %v945, %v944
      %v955 = vpack.c.b16 %v947, %v946
      %v956 = vpack.c.b16 %v949, %v948
      %v957 = vpack.c.b16 %v951, %v950
      %v958 = vpack.c.b16 %v953, %v952
      %v980 = vunpack.c.l.b16 %v918
      %v981 = vunpack.c.l.b16 %v919
      %v982 = vunpack.c.l.b16 %v920
      %v983 = vunpack.c.l.b16 %v921
      %v984 = vunpack.c.l.b16 %v922
      %v985 = vunpack.c.l.b16 %v923
      %v986 = vunpack.c.l.b16 %v924
      %v987 = vunpack.c.l.b16 %v925
      %v988 = vunpack.c.l.b16 %v926
      %v989 = vunpack.c.l.b16 %v927
      %v990 = vunpack.c.l.b16 %v928
      %v991 = vunpack.c.l.b16 %v929
      %v992 = vunpack.c.l.b16 %v930
      %v993 = vunpack.c.l.b16 %v931
      %v994 = vunpack.c.l.b16 %v932
      %v995 = vunpack.c.l.b16 %v933
      %v996 = vpack.c.b16 %v981, %v980
      %v997 = vpack.c.b16 %v983, %v982
      %v998 = vpack.c.b16 %v985, %v984
      %v999 = vpack.c.b16 %v987, %v986
      %v1000 = vpack.c.b16 %v989, %v988
      %v1001 = vpack.c.b16 %v991, %v990
      %v1002 = vpack.c.b16 %v993, %v992
      %v1003 = vpack.c.b16 %v995, %v994
      %1012 = vmatprep.subr.bf16.mxu0 0
      %1013 = vmatpush1.bf16.msra.mxu0 %v1003
      %1014 = vmatprep.subr.bf16.mxu0 0
      %1015 = vmatpush1.bf16.msra.mxu0 %v1002
      %1016 = vmatprep.subr.bf16.mxu0 0
      %1017 = vmatpush1.bf16.msra.mxu0 %v1001
      %1018 = vmatprep.subr.bf16.mxu0 0
      %1019 = vmatpush1.bf16.msra.mxu0 %v1000
      %1020 = vmatprep.subr.bf16.mxu0 0
      %1021 = vmatpush1.bf16.msra.mxu0 %v999
      %1022 = vmatprep.subr.bf16.mxu0 0
      %1023 = vmatpush1.bf16.msra.mxu0 %v998
      %1024 = vmatprep.subr.bf16.mxu0 0
      %1025 = vmatpush1.bf16.msra.mxu0 %v997
      %1026 = vmatprep.subr.bf16.mxu0 0
      %1027 = vmatpush1.bf16.msra.mxu0 %v996
      %1028 = vmatprep.subr.bf16.mxu0 0
      %1029 = vmatpush2.bf16.msra.mxu0 0
      %1030 = vmatprep.subr.bf16.mxu0 0
      %1031 = vmatpush2.bf16.msra.mxu0 0
      %1032 = vmatprep.subr.bf16.mxu0 0
      %1033 = vmatpush2.bf16.msra.mxu0 0
      %1034 = vmatprep.subr.bf16.mxu0 0
      %1035 = vmatpush2.bf16.msra.mxu0 0
      %1036 = vmatprep.subr.bf16.mxu0 0
      %1037 = vmatpush2.bf16.msra.mxu0 0
      %1038 = vmatprep.subr.bf16.mxu0 0
      %1039 = vmatpush2.bf16.msra.mxu0 0
      %1040 = vmatprep.subr.bf16.mxu0 0
      %1041 = vmatpush2.bf16.msra.mxu0 0
      %1042 = vmatprep.subr.bf16.mxu0 0
      %1043 = vmatpush2.bf16.msra.mxu0 0
      %1044 = vmatprep.mubr.bf16.mxu0 0
      %1045 = vmatmul.mubr.bf16.gmra.mxu0 %v954
      %v1046 = vpop.f32.mrf.mxu0
      %v1047 = vadd.f32 0.0, %v1046
      %v1048 = vpop.f32.mrf.mxu0
      %v1049 = vpop.f32.mrf.mxu0
      %v1050 = vadd.f32 0.0, %v1049
      %v1051 = vpop.f32.mrf.mxu0
      %1052 = vmatprep.mubr.bf16.mxu0 0
      %1053 = vmatmul.mubr.bf16.gmra.mxu0 %v955
      %v1054 = vpop.f32.mrf.mxu0
      %v1055 = vadd.f32 0.0, %v1054
      %v1056 = vpop.f32.mrf.mxu0
      %v1057 = vpop.f32.mrf.mxu0
      %v1058 = vadd.f32 0.0, %v1057
      %v1059 = vpop.f32.mrf.mxu0
      %1060 = vmatprep.mubr.bf16.mxu0 0
      %1061 = vmatmul.mubr.bf16.gmra.mxu0 %v956
      %v1062 = vpop.f32.mrf.mxu0
      %v1063 = vadd.f32 0.0, %v1062
      %v1064 = vpop.f32.mrf.mxu0
      %v1065 = vpop.f32.mrf.mxu0
      %v1066 = vadd.f32 0.0, %v1065
      %v1067 = vpop.f32.mrf.mxu0
      %1068 = vmatprep.mubr.bf16.mxu0 0
      %1069 = vmatmul.mubr.bf16.gmra.mxu0 %v957
      %v1070 = vpop.f32.mrf.mxu0
      %v1071 = vadd.f32 0.0, %v1070
      %v1072 = vpop.f32.mrf.mxu0
      %v1073 = vpop.f32.mrf.mxu0
      %v1074 = vadd.f32 0.0, %v1073
      %v1075 = vpop.f32.mrf.mxu0
      %1076 = vmatprep.mubr.bf16.mxu0 0
      %1077 = vmatmul.mubr.bf16.gmra.mxu0 %v958
      %v1078 = vpop.f32.mrf.mxu0
      %v1079 = vadd.f32 0.0, %v1078
      %v1080 = vpop.f32.mrf.mxu0
      %v1081 = vpop.f32.mrf.mxu0
      %v1082 = vadd.f32 0.0, %v1081
      %v1083 = vpop.f32.mrf.mxu0
      %1084 = vdwg.mxu0
      %v1085 = vadd.f32 %v896, %v1047
      %v1086 = vadd.f32 %v897, %v1050
      %v1087 = vadd.f32 %v898, %v1055
      %v1088 = vadd.f32 %v899, %v1058
      %v1089 = vadd.f32 %v900, %v1063
      %v1090 = vadd.f32 %v901, %v1066
      %v1091 = vadd.f32 %v902, %v1071
      %v1092 = vadd.f32 %v903, %v1074
      %v1093 = vadd.f32 %v904, %v1079
      %v1094 = vadd.f32 %v905, %v1082
      %s1095 = scalar_lea.vmem %s293, 156
      %v1096 = vld [vmem:[%s1095] sm:$0xf]
      %v1097 = vld [vmem:[%s1095 + $0x4] sm:$0xf]
      %v1098 = vld [vmem:[%s1095 + $0x8] sm:$0xf]
      %v1099 = vld [vmem:[%s1095 + $0xc] sm:$0xf]
      %v1100 = vld [vmem:[%s1095 + $0x10] sm:$0xf]
      %v1101 = vld [vmem:[%s1095 + $0x14] sm:$0xf]
      %v1102 = vld [vmem:[%s1095 + $0x18] sm:$0xf]
      %v1103 = vld [vmem:[%s1095 + $0x1c] sm:$0xf]
      %v1104 = vld [vmem:[%s1095 + $0x20] sm:$0xf]
      %v1105 = vld [vmem:[%s1095 + $0x24] sm:$0xf]
      %s1106 = scalar_lea.vmem %s1, 256
      %v1107 = vld [vmem:[%s1106] sm:$0xf]
      %v1108 = vld [vmem:[%s1106 + $0x4] sm:$0xf]
      %v1109 = vld [vmem:[%s1106 + $0x8] sm:$0xf]
      %v1110 = vld [vmem:[%s1106 + $0xc] sm:$0xf]
      %v1111 = vld [vmem:[%s1106 + $0x10] sm:$0xf]
      %v1112 = vld [vmem:[%s1106 + $0x14] sm:$0xf]
      %v1113 = vld [vmem:[%s1106 + $0x18] sm:$0xf]
      %v1114 = vld [vmem:[%s1106 + $0x1c] sm:$0xf]
      %v1115 = vld [vmem:[%s1106 + $0x20] sm:$0xf]
      %v1116 = vld [vmem:[%s1106 + $0x24] sm:$0xf]
      %v1117 = vld [vmem:[%s1106 + $0x28] sm:$0xf]
      %v1118 = vld [vmem:[%s1106 + $0x2c] sm:$0xf]
      %v1119 = vld [vmem:[%s1106 + $0x30] sm:$0xf]
      %v1120 = vld [vmem:[%s1106 + $0x34] sm:$0xf]
      %v1121 = vld [vmem:[%s1106 + $0x38] sm:$0xf]
      %v1122 = vld [vmem:[%s1106 + $0x3c] sm:$0xf]
      %v1133 = vunpack.c.l.b16 %v1096
      %v1134 = vunpack.c.l.b16 %v1097
      %v1135 = vunpack.c.l.b16 %v1098
      %v1136 = vunpack.c.l.b16 %v1099
      %v1137 = vunpack.c.l.b16 %v1100
      %v1138 = vunpack.c.l.b16 %v1101
      %v1139 = vunpack.c.l.b16 %v1102
      %v1140 = vunpack.c.l.b16 %v1103
      %v1141 = vunpack.c.l.b16 %v1104
      %v1142 = vunpack.c.l.b16 %v1105
      %v1143 = vpack.c.b16 %v1134, %v1133
      %v1144 = vpack.c.b16 %v1136, %v1135
      %v1145 = vpack.c.b16 %v1138, %v1137
      %v1146 = vpack.c.b16 %v1140, %v1139
      %v1147 = vpack.c.b16 %v1142, %v1141
      %v1169 = vunpack.c.l.b16 %v1107
      %v1170 = vunpack.c.l.b16 %v1108
      %v1171 = vunpack.c.l.b16 %v1109
      %v1172 = vunpack.c.l.b16 %v1110
      %v1173 = vunpack.c.l.b16 %v1111
      %v1174 = vunpack.c.l.b16 %v1112
      %v1175 = vunpack.c.l.b16 %v1113
      %v1176 = vunpack.c.l.b16 %v1114
      %v1177 = vunpack.c.l.b16 %v1115
      %v1178 = vunpack.c.l.b16 %v1116
      %v1179 = vunpack.c.l.b16 %v1117
      %v1180 = vunpack.c.l.b16 %v1118
      %v1181 = vunpack.c.l.b16 %v1119
      %v1182 = vunpack.c.l.b16 %v1120
      %v1183 = vunpack.c.l.b16 %v1121
      %v1184 = vunpack.c.l.b16 %v1122
      %v1185 = vpack.c.b16 %v1170, %v1169
      %v1186 = vpack.c.b16 %v1172, %v1171
      %v1187 = vpack.c.b16 %v1174, %v1173
      %v1188 = vpack.c.b16 %v1176, %v1175
      %v1189 = vpack.c.b16 %v1178, %v1177
      %v1190 = vpack.c.b16 %v1180, %v1179
      %v1191 = vpack.c.b16 %v1182, %v1181
      %v1192 = vpack.c.b16 %v1184, %v1183
      %1201 = vmatprep.subr.bf16.mxu0 0
      %1202 = vmatpush1.bf16.msra.mxu0 %v1192
      %1203 = vmatprep.subr.bf16.mxu0 0
      %1204 = vmatpush1.bf16.msra.mxu0 %v1191
      %1205 = vmatprep.subr.bf16.mxu0 0
      %1206 = vmatpush1.bf16.msra.mxu0 %v1190
      %1207 = vmatprep.subr.bf16.mxu0 0
      %1208 = vmatpush1.bf16.msra.mxu0 %v1189
      %1209 = vmatprep.subr.bf16.mxu0 0
      %1210 = vmatpush1.bf16.msra.mxu0 %v1188
      %1211 = vmatprep.subr.bf16.mxu0 0
      %1212 = vmatpush1.bf16.msra.mxu0 %v1187
      %1213 = vmatprep.subr.bf16.mxu0 0
      %1214 = vmatpush1.bf16.msra.mxu0 %v1186
      %1215 = vmatprep.subr.bf16.mxu0 0
      %1216 = vmatpush1.bf16.msra.mxu0 %v1185
      %1217 = vmatprep.subr.bf16.mxu0 0
      %1218 = vmatpush2.bf16.msra.mxu0 0
      %1219 = vmatprep.subr.bf16.mxu0 0
      %1220 = vmatpush2.bf16.msra.mxu0 0
      %1221 = vmatprep.subr.bf16.mxu0 0
      %1222 = vmatpush2.bf16.msra.mxu0 0
      %1223 = vmatprep.subr.bf16.mxu0 0
      %1224 = vmatpush2.bf16.msra.mxu0 0
      %1225 = vmatprep.subr.bf16.mxu0 0
      %1226 = vmatpush2.bf16.msra.mxu0 0
      %1227 = vmatprep.subr.bf16.mxu0 0
      %1228 = vmatpush2.bf16.msra.mxu0 0
      %1229 = vmatprep.subr.bf16.mxu0 0
      %1230 = vmatpush2.bf16.msra.mxu0 0
      %1231 = vmatprep.subr.bf16.mxu0 0
      %1232 = vmatpush2.bf16.msra.mxu0 0
      %1233 = vmatprep.mubr.bf16.mxu0 0
      %1234 = vmatmul.mubr.bf16.gmra.mxu0 %v1143
      %v1235 = vpop.f32.mrf.mxu0
      %v1236 = vadd.f32 0.0, %v1235
      %v1237 = vpop.f32.mrf.mxu0
      %v1238 = vpop.f32.mrf.mxu0
      %v1239 = vadd.f32 0.0, %v1238
      %v1240 = vpop.f32.mrf.mxu0
      %1241 = vmatprep.mubr.bf16.mxu0 0
      %1242 = vmatmul.mubr.bf16.gmra.mxu0 %v1144
      %v1243 = vpop.f32.mrf.mxu0
      %v1244 = vadd.f32 0.0, %v1243
      %v1245 = vpop.f32.mrf.mxu0
      %v1246 = vpop.f32.mrf.mxu0
      %v1247 = vadd.f32 0.0, %v1246
      %v1248 = vpop.f32.mrf.mxu0
      %1249 = vmatprep.mubr.bf16.mxu0 0
      %1250 = vmatmul.mubr.bf16.gmra.mxu0 %v1145
      %v1251 = vpop.f32.mrf.mxu0
      %v1252 = vadd.f32 0.0, %v1251
      %v1253 = vpop.f32.mrf.mxu0
      %v1254 = vpop.f32.mrf.mxu0
      %v1255 = vadd.f32 0.0, %v1254
      %v1256 = vpop.f32.mrf.mxu0
      %1257 = vmatprep.mubr.bf16.mxu0 0
      %1258 = vmatmul.mubr.bf16.gmra.mxu0 %v1146
      %v1259 = vpop.f32.mrf.mxu0
      %v1260 = vadd.f32 0.0, %v1259
      %v1261 = vpop.f32.mrf.mxu0
      %v1262 = vpop.f32.mrf.mxu0
      %v1263 = vadd.f32 0.0, %v1262
      %v1264 = vpop.f32.mrf.mxu0
      %1265 = vmatprep.mubr.bf16.mxu0 0
      %1266 = vmatmul.mubr.bf16.gmra.mxu0 %v1147
      %v1267 = vpop.f32.mrf.mxu0
      %v1268 = vadd.f32 0.0, %v1267
      %v1269 = vpop.f32.mrf.mxu0
      %v1270 = vpop.f32.mrf.mxu0
      %v1271 = vadd.f32 0.0, %v1270
      %v1272 = vpop.f32.mrf.mxu0
      %1273 = vdwg.mxu0
      %v1274 = vadd.f32 %v1085, %v1236
      %v1275 = vadd.f32 %v1086, %v1239
      %v1276 = vadd.f32 %v1087, %v1244
      %v1277 = vadd.f32 %v1088, %v1247
      %v1278 = vadd.f32 %v1089, %v1252
      %v1279 = vadd.f32 %v1090, %v1255
      %v1280 = vadd.f32 %v1091, %v1260
      %v1281 = vadd.f32 %v1092, %v1263
      %v1282 = vadd.f32 %v1093, %v1268
      %v1283 = vadd.f32 %v1094, %v1271
      %v1284 = vld [vmem:[%s906] sm:$0xf]
      %v1285 = vld [vmem:[%s906 + $0x4] sm:$0xf]
      %v1286 = vld [vmem:[%s906 + $0x8] sm:$0xf]
      %v1287 = vld [vmem:[%s906 + $0xc] sm:$0xf]
      %v1288 = vld [vmem:[%s906 + $0x10] sm:$0xf]
      %v1289 = vld [vmem:[%s906 + $0x14] sm:$0xf]
      %v1290 = vld [vmem:[%s906 + $0x18] sm:$0xf]
      %v1291 = vld [vmem:[%s906 + $0x1c] sm:$0xf]
      %v1292 = vld [vmem:[%s906 + $0x20] sm:$0xf]
      %v1293 = vld [vmem:[%s906 + $0x24] sm:$0xf]
      %v1294 = vld [vmem:[%s906 + $0x28] sm:$0x1]
      %s1295 = scalar_lea.vmem %s1, 320
      %v1296 = vld [vmem:[%s1295] sm:$0xf]
      %v1297 = vld [vmem:[%s1295 + $0x4] sm:$0xf]
      %v1298 = vld [vmem:[%s1295 + $0x8] sm:$0xf]
      %v1299 = vld [vmem:[%s1295 + $0xc] sm:$0xf]
      %v1300 = vld [vmem:[%s1295 + $0x10] sm:$0xf]
      %v1301 = vld [vmem:[%s1295 + $0x14] sm:$0xf]
      %v1302 = vld [vmem:[%s1295 + $0x18] sm:$0xf]
      %v1303 = vld [vmem:[%s1295 + $0x1c] sm:$0xf]
      %v1304 = vld [vmem:[%s1295 + $0x20] sm:$0xf]
      %v1305 = vld [vmem:[%s1295 + $0x24] sm:$0xf]
      %v1306 = vld [vmem:[%s1295 + $0x28] sm:$0xf]
      %v1307 = vld [vmem:[%s1295 + $0x2c] sm:$0xf]
      %v1308 = vld [vmem:[%s1295 + $0x30] sm:$0xf]
      %v1309 = vld [vmem:[%s1295 + $0x34] sm:$0xf]
      %v1310 = vld [vmem:[%s1295 + $0x38] sm:$0xf]
      %v1311 = vld [vmem:[%s1295 + $0x3c] sm:$0xf]
      %v1323 = vunpack.c.l.b16 %v1284
      %v1324 = vunpack.c.l.b16 %v1285
      %v1325 = vunpack.c.l.b16 %v1286
      %v1326 = vunpack.c.l.b16 %v1287
      %v1327 = vunpack.c.l.b16 %v1288
      %v1328 = vunpack.c.l.b16 %v1289
      %v1329 = vunpack.c.l.b16 %v1290
      %v1330 = vunpack.c.l.b16 %v1291
      %v1331 = vunpack.c.l.b16 %v1292
      %v1332 = vunpack.c.l.b16 %v1293
      %v1333 = vunpack.c.l.b16 %v1294
      %v1334 = vpack.c.b16 %v1324, %v1323
      %v1335 = vpack.c.b16 %v1326, %v1325
      %v1336 = vpack.c.b16 %v1328, %v1327
      %v1337 = vpack.c.b16 %v1330, %v1329
      %v1338 = vpack.c.b16 %v1332, %v1331
      %v1339 = vpack.c.b16 %v1333, %v1333
      %v1341 = vshrl.u32 %v1334, 16
      %v1343 = vshll.u32 %v1334, 16
      %v1345 = vrot.slane %v1343, 1
      %v1346 = vor.u32 %v1341, %v1345
      %v1348 = vshll.u32 %v1335, 16
      %v1350 = vrot.slane %v1348, 1
      %v1351 = vsel %vm725, %v1346, %v1350
      %v1352 = vshrl.u32 %v1335, 16
      %v1354 = vor.u32 %v1352, %v1350
      %v1356 = vshll.u32 %v1336, 16
      %v1358 = vrot.slane %v1356, 1
      %v1359 = vsel %vm725, %v1354, %v1358
      %v1360 = vshrl.u32 %v1336, 16
      %v1362 = vor.u32 %v1360, %v1358
      %v1364 = vshll.u32 %v1337, 16
      %v1366 = vrot.slane %v1364, 1
      %v1367 = vsel %vm725, %v1362, %v1366
      %v1368 = vshrl.u32 %v1337, 16
      %v1370 = vor.u32 %v1368, %v1366
      %v1372 = vshll.u32 %v1338, 16
      %v1374 = vrot.slane %v1372, 1
      %v1375 = vsel %vm725, %v1370, %v1374
      %v1376 = vshrl.u32 %v1338, 16
      %v1378 = vor.u32 %v1376, %v1374
      %v1380 = vshll.u32 %v1339, 16
      %v1382 = vrot.slane %v1380, 1
      %v1383 = vsel %vm725, %v1378, %v1382
      %v1405 = vunpack.c.l.b16 %v1296
      %v1406 = vunpack.c.l.b16 %v1297
      %v1407 = vunpack.c.l.b16 %v1298
      %v1408 = vunpack.c.l.b16 %v1299
      %v1409 = vunpack.c.l.b16 %v1300
      %v1410 = vunpack.c.l.b16 %v1301
      %v1411 = vunpack.c.l.b16 %v1302
      %v1412 = vunpack.c.l.b16 %v1303
      %v1413 = vunpack.c.l.b16 %v1304
      %v1414 = vunpack.c.l.b16 %v1305
      %v1415 = vunpack.c.l.b16 %v1306
      %v1416 = vunpack.c.l.b16 %v1307
      %v1417 = vunpack.c.l.b16 %v1308
      %v1418 = vunpack.c.l.b16 %v1309
      %v1419 = vunpack.c.l.b16 %v1310
      %v1420 = vunpack.c.l.b16 %v1311
      %v1421 = vpack.c.b16 %v1406, %v1405
      %v1422 = vpack.c.b16 %v1408, %v1407
      %v1423 = vpack.c.b16 %v1410, %v1409
      %v1424 = vpack.c.b16 %v1412, %v1411
      %v1425 = vpack.c.b16 %v1414, %v1413
      %v1426 = vpack.c.b16 %v1416, %v1415
      %v1427 = vpack.c.b16 %v1418, %v1417
      %v1428 = vpack.c.b16 %v1420, %v1419
      %1437 = vmatprep.subr.bf16.mxu0 0
      %1438 = vmatpush1.bf16.msra.mxu0 %v1428
      %1439 = vmatprep.subr.bf16.mxu0 0
      %1440 = vmatpush1.bf16.msra.mxu0 %v1427
      %1441 = vmatprep.subr.bf16.mxu0 0
      %1442 = vmatpush1.bf16.msra.mxu0 %v1426
      %1443 = vmatprep.subr.bf16.mxu0 0
      %1444 = vmatpush1.bf16.msra.mxu0 %v1425
      %1445 = vmatprep.subr.bf16.mxu0 0
      %1446 = vmatpush1.bf16.msra.mxu0 %v1424
      %1447 = vmatprep.subr.bf16.mxu0 0
      %1448 = vmatpush1.bf16.msra.mxu0 %v1423
      %1449 = vmatprep.subr.bf16.mxu0 0
      %1450 = vmatpush1.bf16.msra.mxu0 %v1422
      %1451 = vmatprep.subr.bf16.mxu0 0
      %1452 = vmatpush1.bf16.msra.mxu0 %v1421
      %1453 = vmatprep.subr.bf16.mxu0 0
      %1454 = vmatpush2.bf16.msra.mxu0 0
      %1455 = vmatprep.subr.bf16.mxu0 0
      %1456 = vmatpush2.bf16.msra.mxu0 0
      %1457 = vmatprep.subr.bf16.mxu0 0
      %1458 = vmatpush2.bf16.msra.mxu0 0
      %1459 = vmatprep.subr.bf16.mxu0 0
      %1460 = vmatpush2.bf16.msra.mxu0 0
      %1461 = vmatprep.subr.bf16.mxu0 0
      %1462 = vmatpush2.bf16.msra.mxu0 0
      %1463 = vmatprep.subr.bf16.mxu0 0
      %1464 = vmatpush2.bf16.msra.mxu0 0
      %1465 = vmatprep.subr.bf16.mxu0 0
      %1466 = vmatpush2.bf16.msra.mxu0 0
      %1467 = vmatprep.subr.bf16.mxu0 0
      %1468 = vmatpush2.bf16.msra.mxu0 0
      %1469 = vmatprep.mubr.bf16.mxu0 0
      %1470 = vmatmul.mubr.bf16.gmra.mxu0 %v1351
      %v1471 = vpop.f32.mrf.mxu0
      %v1472 = vadd.f32 0.0, %v1471
      %v1473 = vpop.f32.mrf.mxu0
      %v1474 = vpop.f32.mrf.mxu0
      %v1475 = vadd.f32 0.0, %v1474
      %v1476 = vpop.f32.mrf.mxu0
      %1477 = vmatprep.mubr.bf16.mxu0 0
      %1478 = vmatmul.mubr.bf16.gmra.mxu0 %v1359
      %v1479 = vpop.f32.mrf.mxu0
      %v1480 = vadd.f32 0.0, %v1479
      %v1481 = vpop.f32.mrf.mxu0
      %v1482 = vpop.f32.mrf.mxu0
      %v1483 = vadd.f32 0.0, %v1482
      %v1484 = vpop.f32.mrf.mxu0
      %1485 = vmatprep.mubr.bf16.mxu0 0
      %1486 = vmatmul.mubr.bf16.gmra.mxu0 %v1367
      %v1487 = vpop.f32.mrf.mxu0
      %v1488 = vadd.f32 0.0, %v1487
      %v1489 = vpop.f32.mrf.mxu0
      %v1490 = vpop.f32.mrf.mxu0
      %v1491 = vadd.f32 0.0, %v1490
      %v1492 = vpop.f32.mrf.mxu0
      %1493 = vmatprep.mubr.bf16.mxu0 0
      %1494 = vmatmul.mubr.bf16.gmra.mxu0 %v1375
      %v1495 = vpop.f32.mrf.mxu0
      %v1496 = vadd.f32 0.0, %v1495
      %v1497 = vpop.f32.mrf.mxu0
      %v1498 = vpop.f32.mrf.mxu0
      %v1499 = vadd.f32 0.0, %v1498
      %v1500 = vpop.f32.mrf.mxu0
      %1501 = vmatprep.mubr.bf16.mxu0 0
      %1502 = vmatmul.mubr.bf16.gmra.mxu0 %v1383
      %v1503 = vpop.f32.mrf.mxu0
      %v1504 = vadd.f32 0.0, %v1503
      %v1505 = vpop.f32.mrf.mxu0
      %v1506 = vpop.f32.mrf.mxu0
      %v1507 = vadd.f32 0.0, %v1506
      %v1508 = vpop.f32.mrf.mxu0
      %1509 = vdwg.mxu0
      %v1510 = vadd.f32 %v1274, %v1472
      %v1511 = vadd.f32 %v1275, %v1475
      %v1512 = vadd.f32 %v1276, %v1480
      %v1513 = vadd.f32 %v1277, %v1483
      %v1514 = vadd.f32 %v1278, %v1488
      %v1515 = vadd.f32 %v1279, %v1491
      %v1516 = vadd.f32 %v1280, %v1496
      %v1517 = vadd.f32 %v1281, %v1499
      %v1518 = vadd.f32 %v1282, %v1504
      %v1519 = vadd.f32 %v1283, %v1507
      %v1520 = vld [vmem:[%s293 + $0x4] sm:$0xe]
      %v1521 = vld [vmem:[%s293 + $0x8] sm:$0xf]
      %v1522 = vld [vmem:[%s293 + $0xc] sm:$0xf]
      %v1523 = vld [vmem:[%s293 + $0x10] sm:$0xf]
      %v1524 = vld [vmem:[%s293 + $0x14] sm:$0xf]
      %v1525 = vld [vmem:[%s293 + $0x18] sm:$0xf]
      %v1526 = vld [vmem:[%s293 + $0x1c] sm:$0xf]
      %v1527 = vld [vmem:[%s293 + $0x20] sm:$0xf]
      %v1528 = vld [vmem:[%s293 + $0x24] sm:$0xf]
      %v1529 = vld [vmem:[%s293 + $0x28] sm:$0xf]
      %v1530 = vld [vmem:[%s293 + $0x2c] sm:$0x1]
      %s1531 = scalar_lea.vmem %s1, 384
      %v1532 = vld [vmem:[%s1531] sm:$0xf]
      %v1533 = vld [vmem:[%s1531 + $0x4] sm:$0xf]
      %v1534 = vld [vmem:[%s1531 + $0x8] sm:$0xf]
      %v1535 = vld [vmem:[%s1531 + $0xc] sm:$0xf]
      %v1536 = vld [vmem:[%s1531 + $0x10] sm:$0xf]
      %v1537 = vld [vmem:[%s1531 + $0x14] sm:$0xf]
      %v1538 = vld [vmem:[%s1531 + $0x18] sm:$0xf]
      %v1539 = vld [vmem:[%s1531 + $0x1c] sm:$0xf]
      %v1540 = vld [vmem:[%s1531 + $0x20] sm:$0xf]
      %v1541 = vld [vmem:[%s1531 + $0x24] sm:$0xf]
      %v1542 = vld [vmem:[%s1531 + $0x28] sm:$0xf]
      %v1543 = vld [vmem:[%s1531 + $0x2c] sm:$0xf]
      %v1544 = vld [vmem:[%s1531 + $0x30] sm:$0xf]
      %v1545 = vld [vmem:[%s1531 + $0x34] sm:$0xf]
      %v1546 = vld [vmem:[%s1531 + $0x38] sm:$0xf]
      %v1547 = vld [vmem:[%s1531 + $0x3c] sm:$0xf]
      %v1559 = vunpack.c.l.b16 %v1520
      %v1560 = vunpack.c.l.b16 %v1521
      %v1561 = vunpack.c.l.b16 %v1522
      %v1562 = vunpack.c.l.b16 %v1523
      %v1563 = vunpack.c.l.b16 %v1524
      %v1564 = vunpack.c.l.b16 %v1525
      %v1565 = vunpack.c.l.b16 %v1526
      %v1566 = vunpack.c.l.b16 %v1527
      %v1567 = vunpack.c.l.b16 %v1528
      %v1568 = vunpack.c.l.b16 %v1529
      %v1569 = vunpack.c.l.b16 %v1530
      %v1570 = vpack.c.b16 %v1560, %v1559
      %v1571 = vpack.c.b16 %v1562, %v1561
      %v1572 = vpack.c.b16 %v1564, %v1563
      %v1573 = vpack.c.b16 %v1566, %v1565
      %v1574 = vpack.c.b16 %v1568, %v1567
      %v1575 = vpack.c.b16 %v1569, %v1569
      %vm1576 = vcmask 1046528
      %v1577 = vrot.slane %v1570, 1
      %v1578 = vrot.slane %v1571, 1
      %v1579 = vsel %vm1576, %v1577, %v1578
      %v1580 = vrot.slane %v1572, 1
      %v1581 = vsel %vm1576, %v1578, %v1580
      %v1582 = vrot.slane %v1573, 1
      %v1583 = vsel %vm1576, %v1580, %v1582
      %v1584 = vrot.slane %v1574, 1
      %v1585 = vsel %vm1576, %v1582, %v1584
      %v1586 = vrot.slane %v1575, 1
      %v1587 = vsel %vm1576, %v1584, %v1586
      %v1609 = vunpack.c.l.b16 %v1532
      %v1610 = vunpack.c.l.b16 %v1533
      %v1611 = vunpack.c.l.b16 %v1534
      %v1612 = vunpack.c.l.b16 %v1535
      %v1613 = vunpack.c.l.b16 %v1536
      %v1614 = vunpack.c.l.b16 %v1537
      %v1615 = vunpack.c.l.b16 %v1538
      %v1616 = vunpack.c.l.b16 %v1539
      %v1617 = vunpack.c.l.b16 %v1540
      %v1618 = vunpack.c.l.b16 %v1541
      %v1619 = vunpack.c.l.b16 %v1542
      %v1620 = vunpack.c.l.b16 %v1543
      %v1621 = vunpack.c.l.b16 %v1544
      %v1622 = vunpack.c.l.b16 %v1545
      %v1623 = vunpack.c.l.b16 %v1546
      %v1624 = vunpack.c.l.b16 %v1547
      %v1625 = vpack.c.b16 %v1610, %v1609
      %v1626 = vpack.c.b16 %v1612, %v1611
      %v1627 = vpack.c.b16 %v1614, %v1613
      %v1628 = vpack.c.b16 %v1616, %v1615
      %v1629 = vpack.c.b16 %v1618, %v1617
      %v1630 = vpack.c.b16 %v1620, %v1619
      %v1631 = vpack.c.b16 %v1622, %v1621
      %v1632 = vpack.c.b16 %v1624, %v1623
      %1641 = vmatprep.subr.bf16.mxu0 0
      %1642 = vmatpush1.bf16.msra.mxu0 %v1632
      %1643 = vmatprep.subr.bf16.mxu0 0
      %1644 = vmatpush1.bf16.msra.mxu0 %v1631
      %1645 = vmatprep.subr.bf16.mxu0 0
      %1646 = vmatpush1.bf16.msra.mxu0 %v1630
      %1647 = vmatprep.subr.bf16.mxu0 0
      %1648 = vmatpush1.bf16.msra.mxu0 %v1629
      %1649 = vmatprep.subr.bf16.mxu0 0
      %1650 = vmatpush1.bf16.msra.mxu0 %v1628
      %1651 = vmatprep.subr.bf16.mxu0 0
      %1652 = vmatpush1.bf16.msra.mxu0 %v1627
      %1653 = vmatprep.subr.bf16.mxu0 0
      %1654 = vmatpush1.bf16.msra.mxu0 %v1626
      %1655 = vmatprep.subr.bf16.mxu0 0
      %1656 = vmatpush1.bf16.msra.mxu0 %v1625
      %1657 = vmatprep.subr.bf16.mxu0 0
      %1658 = vmatpush2.bf16.msra.mxu0 0
      %1659 = vmatprep.subr.bf16.mxu0 0
      %1660 = vmatpush2.bf16.msra.mxu0 0
      %1661 = vmatprep.subr.bf16.mxu0 0
      %1662 = vmatpush2.bf16.msra.mxu0 0
      %1663 = vmatprep.subr.bf16.mxu0 0
      %1664 = vmatpush2.bf16.msra.mxu0 0
      %1665 = vmatprep.subr.bf16.mxu0 0
      %1666 = vmatpush2.bf16.msra.mxu0 0
      %1667 = vmatprep.subr.bf16.mxu0 0
      %1668 = vmatpush2.bf16.msra.mxu0 0
      %1669 = vmatprep.subr.bf16.mxu0 0
      %1670 = vmatpush2.bf16.msra.mxu0 0
      %1671 = vmatprep.subr.bf16.mxu0 0
      %1672 = vmatpush2.bf16.msra.mxu0 0
      %1673 = vmatprep.mubr.bf16.mxu0 0
      %1674 = vmatmul.mubr.bf16.gmra.mxu0 %v1579
      %v1675 = vpop.f32.mrf.mxu0
      %v1676 = vadd.f32 0.0, %v1675
      %v1677 = vpop.f32.mrf.mxu0
      %v1678 = vpop.f32.mrf.mxu0
      %v1679 = vadd.f32 0.0, %v1678
      %v1680 = vpop.f32.mrf.mxu0
      %1681 = vmatprep.mubr.bf16.mxu0 0
      %1682 = vmatmul.mubr.bf16.gmra.mxu0 %v1581
      %v1683 = vpop.f32.mrf.mxu0
      %v1684 = vadd.f32 0.0, %v1683
      %v1685 = vpop.f32.mrf.mxu0
      %v1686 = vpop.f32.mrf.mxu0
      %v1687 = vadd.f32 0.0, %v1686
      %v1688 = vpop.f32.mrf.mxu0
      %1689 = vmatprep.mubr.bf16.mxu0 0
      %1690 = vmatmul.mubr.bf16.gmra.mxu0 %v1583
      %v1691 = vpop.f32.mrf.mxu0
      %v1692 = vadd.f32 0.0, %v1691
      %v1693 = vpop.f32.mrf.mxu0
      %v1694 = vpop.f32.mrf.mxu0
      %v1695 = vadd.f32 0.0, %v1694
      %v1696 = vpop.f32.mrf.mxu0
      %1697 = vmatprep.mubr.bf16.mxu0 0
      %1698 = vmatmul.mubr.bf16.gmra.mxu0 %v1585
      %v1699 = vpop.f32.mrf.mxu0
      %v1700 = vadd.f32 0.0, %v1699
      %v1701 = vpop.f32.mrf.mxu0
      %v1702 = vpop.f32.mrf.mxu0
      %v1703 = vadd.f32 0.0, %v1702
      %v1704 = vpop.f32.mrf.mxu0
      %1705 = vmatprep.mubr.bf16.mxu0 0
      %1706 = vmatmul.mubr.bf16.gmra.mxu0 %v1587
      %v1707 = vpop.f32.mrf.mxu0
      %v1708 = vadd.f32 0.0, %v1707
      %v1709 = vpop.f32.mrf.mxu0
      %v1710 = vpop.f32.mrf.mxu0
      %v1711 = vadd.f32 0.0, %v1710
      %v1712 = vpop.f32.mrf.mxu0
      %1713 = vdwg.mxu0
      %v1714 = vadd.f32 %v1510, %v1676
      %v1715 = vadd.f32 %v1511, %v1679
      %v1716 = vadd.f32 %v1512, %v1684
      %v1717 = vadd.f32 %v1513, %v1687
      %v1718 = vadd.f32 %v1514, %v1692
      %v1719 = vadd.f32 %v1515, %v1695
      %v1720 = vadd.f32 %v1516, %v1700
      %v1721 = vadd.f32 %v1517, %v1703
      %v1722 = vadd.f32 %v1518, %v1708
      %v1723 = vadd.f32 %v1519, %v1711
      %v1724 = vld [vmem:[%s339 + $0x4] sm:$0xe]
      %v1725 = vld [vmem:[%s339 + $0x8] sm:$0xf]
      %v1726 = vld [vmem:[%s339 + $0xc] sm:$0xf]
      %v1727 = vld [vmem:[%s339 + $0x10] sm:$0xf]
      %v1728 = vld [vmem:[%s339 + $0x14] sm:$0xf]
      %v1729 = vld [vmem:[%s339 + $0x18] sm:$0xf]
      %v1730 = vld [vmem:[%s339 + $0x1c] sm:$0xf]
      %v1731 = vld [vmem:[%s339 + $0x20] sm:$0xf]
      %v1732 = vld [vmem:[%s339 + $0x24] sm:$0xf]
      %v1733 = vld [vmem:[%s339 + $0x28] sm:$0xf]
      %v1734 = vld [vmem:[%s339 + $0x2c] sm:$0x1]
      %s1735 = scalar_lea.vmem %s1, 448
      %v1736 = vld [vmem:[%s1735] sm:$0xf]
      %v1737 = vld [vmem:[%s1735 + $0x4] sm:$0xf]
      %v1738 = vld [vmem:[%s1735 + $0x8] sm:$0xf]
      %v1739 = vld [vmem:[%s1735 + $0xc] sm:$0xf]
      %v1740 = vld [vmem:[%s1735 + $0x10] sm:$0xf]
      %v1741 = vld [vmem:[%s1735 + $0x14] sm:$0xf]
      %v1742 = vld [vmem:[%s1735 + $0x18] sm:$0xf]
      %v1743 = vld [vmem:[%s1735 + $0x1c] sm:$0xf]
      %v1744 = vld [vmem:[%s1735 + $0x20] sm:$0xf]
      %v1745 = vld [vmem:[%s1735 + $0x24] sm:$0xf]
      %v1746 = vld [vmem:[%s1735 + $0x28] sm:$0xf]
      %v1747 = vld [vmem:[%s1735 + $0x2c] sm:$0xf]
      %v1748 = vld [vmem:[%s1735 + $0x30] sm:$0xf]
      %v1749 = vld [vmem:[%s1735 + $0x34] sm:$0xf]
      %v1750 = vld [vmem:[%s1735 + $0x38] sm:$0xf]
      %v1751 = vld [vmem:[%s1735 + $0x3c] sm:$0xf]
      %v1763 = vunpack.c.l.b16 %v1724
      %v1764 = vunpack.c.l.b16 %v1725
      %v1765 = vunpack.c.l.b16 %v1726
      %v1766 = vunpack.c.l.b16 %v1727
      %v1767 = vunpack.c.l.b16 %v1728
      %v1768 = vunpack.c.l.b16 %v1729
      %v1769 = vunpack.c.l.b16 %v1730
      %v1770 = vunpack.c.l.b16 %v1731
      %v1771 = vunpack.c.l.b16 %v1732
      %v1772 = vunpack.c.l.b16 %v1733
      %v1773 = vunpack.c.l.b16 %v1734
      %v1774 = vpack.c.b16 %v1764, %v1763
      %v1775 = vpack.c.b16 %v1766, %v1765
      %v1776 = vpack.c.b16 %v1768, %v1767
      %v1777 = vpack.c.b16 %v1770, %v1769
      %v1778 = vpack.c.b16 %v1772, %v1771
      %v1779 = vpack.c.b16 %v1773, %v1773
      %v1780 = vrot.slane %v1774, 1
      %v1781 = vrot.slane %v1775, 1
      %v1782 = vsel %vm1576, %v1780, %v1781
      %v1783 = vrot.slane %v1776, 1
      %v1784 = vsel %vm1576, %v1781, %v1783
      %v1785 = vrot.slane %v1777, 1
      %v1786 = vsel %vm1576, %v1783, %v1785
      %v1787 = vrot.slane %v1778, 1
      %v1788 = vsel %vm1576, %v1785, %v1787
      %v1789 = vrot.slane %v1779, 1
      %v1790 = vsel %vm1576, %v1787, %v1789
      %v1812 = vunpack.c.l.b16 %v1736
      %v1813 = vunpack.c.l.b16 %v1737
      %v1814 = vunpack.c.l.b16 %v1738
      %v1815 = vunpack.c.l.b16 %v1739
      %v1816 = vunpack.c.l.b16 %v1740
      %v1817 = vunpack.c.l.b16 %v1741
      %v1818 = vunpack.c.l.b16 %v1742
      %v1819 = vunpack.c.l.b16 %v1743
      %v1820 = vunpack.c.l.b16 %v1744
      %v1821 = vunpack.c.l.b16 %v1745
      %v1822 = vunpack.c.l.b16 %v1746
      %v1823 = vunpack.c.l.b16 %v1747
      %v1824 = vunpack.c.l.b16 %v1748
      %v1825 = vunpack.c.l.b16 %v1749
      %v1826 = vunpack.c.l.b16 %v1750
      %v1827 = vunpack.c.l.b16 %v1751
      %v1828 = vpack.c.b16 %v1813, %v1812
      %v1829 = vpack.c.b16 %v1815, %v1814
      %v1830 = vpack.c.b16 %v1817, %v1816
      %v1831 = vpack.c.b16 %v1819, %v1818
      %v1832 = vpack.c.b16 %v1821, %v1820
      %v1833 = vpack.c.b16 %v1823, %v1822
      %v1834 = vpack.c.b16 %v1825, %v1824
      %v1835 = vpack.c.b16 %v1827, %v1826
      %1844 = vmatprep.subr.bf16.mxu0 0
      %1845 = vmatpush1.bf16.msra.mxu0 %v1835
      %1846 = vmatprep.subr.bf16.mxu0 0
      %1847 = vmatpush1.bf16.msra.mxu0 %v1834
      %1848 = vmatprep.subr.bf16.mxu0 0
      %1849 = vmatpush1.bf16.msra.mxu0 %v1833
      %1850 = vmatprep.subr.bf16.mxu0 0
      %1851 = vmatpush1.bf16.msra.mxu0 %v1832
      %1852 = vmatprep.subr.bf16.mxu0 0
      %1853 = vmatpush1.bf16.msra.mxu0 %v1831
      %1854 = vmatprep.subr.bf16.mxu0 0
      %1855 = vmatpush1.bf16.msra.mxu0 %v1830
      %1856 = vmatprep.subr.bf16.mxu0 0
      %1857 = vmatpush1.bf16.msra.mxu0 %v1829
      %1858 = vmatprep.subr.bf16.mxu0 0
      %1859 = vmatpush1.bf16.msra.mxu0 %v1828
      %1860 = vmatprep.subr.bf16.mxu0 0
      %1861 = vmatpush2.bf16.msra.mxu0 0
      %1862 = vmatprep.subr.bf16.mxu0 0
      %1863 = vmatpush2.bf16.msra.mxu0 0
      %1864 = vmatprep.subr.bf16.mxu0 0
      %1865 = vmatpush2.bf16.msra.mxu0 0
      %1866 = vmatprep.subr.bf16.mxu0 0
      %1867 = vmatpush2.bf16.msra.mxu0 0
      %1868 = vmatprep.subr.bf16.mxu0 0
      %1869 = vmatpush2.bf16.msra.mxu0 0
      %1870 = vmatprep.subr.bf16.mxu0 0
      %1871 = vmatpush2.bf16.msra.mxu0 0
      %1872 = vmatprep.subr.bf16.mxu0 0
      %1873 = vmatpush2.bf16.msra.mxu0 0
      %1874 = vmatprep.subr.bf16.mxu0 0
      %1875 = vmatpush2.bf16.msra.mxu0 0
      %1876 = vmatprep.mubr.bf16.mxu0 0
      %1877 = vmatmul.mubr.bf16.gmra.mxu0 %v1782
      %v1878 = vpop.f32.mrf.mxu0
      %v1879 = vadd.f32 0.0, %v1878
      %v1880 = vpop.f32.mrf.mxu0
      %v1881 = vpop.f32.mrf.mxu0
      %v1882 = vadd.f32 0.0, %v1881
      %v1883 = vpop.f32.mrf.mxu0
      %1884 = vmatprep.mubr.bf16.mxu0 0
      %1885 = vmatmul.mubr.bf16.gmra.mxu0 %v1784
      %v1886 = vpop.f32.mrf.mxu0
      %v1887 = vadd.f32 0.0, %v1886
      %v1888 = vpop.f32.mrf.mxu0
      %v1889 = vpop.f32.mrf.mxu0
      %v1890 = vadd.f32 0.0, %v1889
      %v1891 = vpop.f32.mrf.mxu0
      %1892 = vmatprep.mubr.bf16.mxu0 0
      %1893 = vmatmul.mubr.bf16.gmra.mxu0 %v1786
      %v1894 = vpop.f32.mrf.mxu0
      %v1895 = vadd.f32 0.0, %v1894
      %v1896 = vpop.f32.mrf.mxu0
      %v1897 = vpop.f32.mrf.mxu0
      %v1898 = vadd.f32 0.0, %v1897
      %v1899 = vpop.f32.mrf.mxu0
      %1900 = vmatprep.mubr.bf16.mxu0 0
      %1901 = vmatmul.mubr.bf16.gmra.mxu0 %v1788
      %v1902 = vpop.f32.mrf.mxu0
      %v1903 = vadd.f32 0.0, %v1902
      %v1904 = vpop.f32.mrf.mxu0
      %v1905 = vpop.f32.mrf.mxu0
      %v1906 = vadd.f32 0.0, %v1905
      %v1907 = vpop.f32.mrf.mxu0
      %1908 = vmatprep.mubr.bf16.mxu0 0
      %1909 = vmatmul.mubr.bf16.gmra.mxu0 %v1790
      %v1910 = vpop.f32.mrf.mxu0
      %v1911 = vadd.f32 0.0, %v1910
      %v1912 = vpop.f32.mrf.mxu0
      %v1913 = vpop.f32.mrf.mxu0
      %v1914 = vadd.f32 0.0, %v1913
      %v1915 = vpop.f32.mrf.mxu0
      %1916 = vdwg.mxu0
      %v1917 = vadd.f32 %v1714, %v1879
      %v1918 = vadd.f32 %v1715, %v1882
      %v1919 = vadd.f32 %v1716, %v1887
      %v1920 = vadd.f32 %v1717, %v1890
      %v1921 = vadd.f32 %v1718, %v1895
      %v1922 = vadd.f32 %v1719, %v1898
      %v1923 = vadd.f32 %v1720, %v1903
      %v1924 = vadd.f32 %v1721, %v1906
      %v1925 = vadd.f32 %v1722, %v1911
      %v1926 = vadd.f32 %v1723, %v1914
      %v1927 = vld [vmem:[%s293 + $0x2c] sm:$0x3]
      %s1928 = scalar_lea.vmem %s1, 512
      %v1929 = vld [vmem:[%s1928] sm:$0xf]
      %v1930 = vld [vmem:[%s1928 + $0x4] sm:$0xf]
      %v1931 = vld [vmem:[%s1928 + $0x8] sm:$0xf]
      %v1932 = vld [vmem:[%s1928 + $0xc] sm:$0xf]
      %v1933 = vld [vmem:[%s1928 + $0x10] sm:$0xf]
      %v1934 = vld [vmem:[%s1928 + $0x14] sm:$0xf]
      %v1935 = vld [vmem:[%s1928 + $0x18] sm:$0xf]
      %v1936 = vld [vmem:[%s1928 + $0x1c] sm:$0xf]
      %v1937 = vld [vmem:[%s1928 + $0x20] sm:$0xf]
      %v1938 = vld [vmem:[%s1928 + $0x24] sm:$0xf]
      %v1939 = vld [vmem:[%s1928 + $0x28] sm:$0xf]
      %v1940 = vld [vmem:[%s1928 + $0x2c] sm:$0xf]
      %v1941 = vld [vmem:[%s1928 + $0x30] sm:$0xf]
      %v1942 = vld [vmem:[%s1928 + $0x34] sm:$0xf]
      %v1943 = vld [vmem:[%s1928 + $0x38] sm:$0xf]
      %v1944 = vld [vmem:[%s1928 + $0x3c] sm:$0xf]
      %v1946 = vunpack.c.l.b16 %v1927
      %v1947 = vpack.c.b16 %v1946, %v1946
      %vm1948 = vsmask.f32 6400
      %v1950 = vshrl.u32 %v1570, 16
      %v1952 = vrot.slane %v1950, 1
      %v1953 = vshll.u32 %v1570, 16
      %v1955 = vrot.slane %v1953, 2
      %v1956 = vor.u32 %v1952, %v1955
      %v1958 = vshrl.u32 %v1571, 16
      %v1960 = vrot.slane %v1958, 1
      %v1961 = vshll.u32 %v1571, 16
      %v1963 = vrot.slane %v1961, 2
      %v1964 = vor.u32 %v1960, %v1963
      %v1965 = vsel %vm1948, %v1956, %v1964
      %v1967 = vshrl.u32 %v1572, 16
      %v1969 = vrot.slane %v1967, 1
      %v1970 = vshll.u32 %v1572, 16
      %v1972 = vrot.slane %v1970, 2
      %v1973 = vor.u32 %v1969, %v1972
      %v1974 = vsel %vm1948, %v1964, %v1973
      %v1976 = vshrl.u32 %v1573, 16
      %v1978 = vrot.slane %v1976, 1
      %v1979 = vshll.u32 %v1573, 16
      %v1981 = vrot.slane %v1979, 2
      %v1982 = vor.u32 %v1978, %v1981
      %v1983 = vsel %vm1948, %v1973, %v1982
      %v1985 = vshrl.u32 %v1574, 16
      %v1987 = vrot.slane %v1985, 1
      %v1988 = vshll.u32 %v1574, 16
      %v1990 = vrot.slane %v1988, 2
      %v1991 = vor.u32 %v1987, %v1990
      %v1992 = vsel %vm1948, %v1982, %v1991
      %v1994 = vshrl.u32 %v1947, 16
      %v1996 = vrot.slane %v1994, 1
      %v1997 = vshll.u32 %v1947, 16
      %v1999 = vrot.slane %v1997, 2
      %v2000 = vor.u32 %v1996, %v1999
      %v2001 = vsel %vm1948, %v1991, %v2000
      %v2023 = vunpack.c.l.b16 %v1929
      %v2024 = vunpack.c.l.b16 %v1930
      %v2025 = vunpack.c.l.b16 %v1931
      %v2026 = vunpack.c.l.b16 %v1932
      %v2027 = vunpack.c.l.b16 %v1933
      %v2028 = vunpack.c.l.b16 %v1934
      %v2029 = vunpack.c.l.b16 %v1935
      %v2030 = vunpack.c.l.b16 %v1936
      %v2031 = vunpack.c.l.b16 %v1937
      %v2032 = vunpack.c.l.b16 %v1938
      %v2033 = vunpack.c.l.b16 %v1939
      %v2034 = vunpack.c.l.b16 %v1940
      %v2035 = vunpack.c.l.b16 %v1941
      %v2036 = vunpack.c.l.b16 %v1942
      %v2037 = vunpack.c.l.b16 %v1943
      %v2038 = vunpack.c.l.b16 %v1944
      %v2039 = vpack.c.b16 %v2024, %v2023
      %v2040 = vpack.c.b16 %v2026, %v2025
      %v2041 = vpack.c.b16 %v2028, %v2027
      %v2042 = vpack.c.b16 %v2030, %v2029
      %v2043 = vpack.c.b16 %v2032, %v2031
      %v2044 = vpack.c.b16 %v2034, %v2033
      %v2045 = vpack.c.b16 %v2036, %v2035
      %v2046 = vpack.c.b16 %v2038, %v2037
      %2055 = vmatprep.subr.bf16.mxu0 0
      %2056 = vmatpush1.bf16.msra.mxu0 %v2046
      %2057 = vmatprep.subr.bf16.mxu0 0
      %2058 = vmatpush1.bf16.msra.mxu0 %v2045
      %2059 = vmatprep.subr.bf16.mxu0 0
      %2060 = vmatpush1.bf16.msra.mxu0 %v2044
      %2061 = vmatprep.subr.bf16.mxu0 0
      %2062 = vmatpush1.bf16.msra.mxu0 %v2043
      %2063 = vmatprep.subr.bf16.mxu0 0
      %2064 = vmatpush1.bf16.msra.mxu0 %v2042
      %2065 = vmatprep.subr.bf16.mxu0 0
      %2066 = vmatpush1.bf16.msra.mxu0 %v2041
      %2067 = vmatprep.subr.bf16.mxu0 0
      %2068 = vmatpush1.bf16.msra.mxu0 %v2040
      %2069 = vmatprep.subr.bf16.mxu0 0
      %2070 = vmatpush1.bf16.msra.mxu0 %v2039
      %2071 = vmatprep.subr.bf16.mxu0 0
      %2072 = vmatpush2.bf16.msra.mxu0 0
      %2073 = vmatprep.subr.bf16.mxu0 0
      %2074 = vmatpush2.bf16.msra.mxu0 0
      %2075 = vmatprep.subr.bf16.mxu0 0
      %2076 = vmatpush2.bf16.msra.mxu0 0
      %2077 = vmatprep.subr.bf16.mxu0 0
      %2078 = vmatpush2.bf16.msra.mxu0 0
      %2079 = vmatprep.subr.bf16.mxu0 0
      %2080 = vmatpush2.bf16.msra.mxu0 0
      %2081 = vmatprep.subr.bf16.mxu0 0
      %2082 = vmatpush2.bf16.msra.mxu0 0
      %2083 = vmatprep.subr.bf16.mxu0 0
      %2084 = vmatpush2.bf16.msra.mxu0 0
      %2085 = vmatprep.subr.bf16.mxu0 0
      %2086 = vmatpush2.bf16.msra.mxu0 0
      %2087 = vmatprep.mubr.bf16.mxu0 0
      %2088 = vmatmul.mubr.bf16.gmra.mxu0 %v1965
      %v2089 = vpop.f32.mrf.mxu0
      %v2090 = vadd.f32 0.0, %v2089
      %v2091 = vpop.f32.mrf.mxu0
      %v2092 = vpop.f32.mrf.mxu0
      %v2093 = vadd.f32 0.0, %v2092
      %v2094 = vpop.f32.mrf.mxu0
      %2095 = vmatprep.mubr.bf16.mxu0 0
      %2096 = vmatmul.mubr.bf16.gmra.mxu0 %v1974
      %v2097 = vpop.f32.mrf.mxu0
      %v2098 = vadd.f32 0.0, %v2097
      %v2099 = vpop.f32.mrf.mxu0
      %v2100 = vpop.f32.mrf.mxu0
      %v2101 = vadd.f32 0.0, %v2100
      %v2102 = vpop.f32.mrf.mxu0
      %2103 = vmatprep.mubr.bf16.mxu0 0
      %2104 = vmatmul.mubr.bf16.gmra.mxu0 %v1983
      %v2105 = vpop.f32.mrf.mxu0
      %v2106 = vadd.f32 0.0, %v2105
      %v2107 = vpop.f32.mrf.mxu0
      %v2108 = vpop.f32.mrf.mxu0
      %v2109 = vadd.f32 0.0, %v2108
      %v2110 = vpop.f32.mrf.mxu0
      %2111 = vmatprep.mubr.bf16.mxu0 0
      %2112 = vmatmul.mubr.bf16.gmra.mxu0 %v1992
      %v2113 = vpop.f32.mrf.mxu0
      %v2114 = vadd.f32 0.0, %v2113
      %v2115 = vpop.f32.mrf.mxu0
      %v2116 = vpop.f32.mrf.mxu0
      %v2117 = vadd.f32 0.0, %v2116
      %v2118 = vpop.f32.mrf.mxu0
      %2119 = vmatprep.mubr.bf16.mxu0 0
      %2120 = vmatmul.mubr.bf16.gmra.mxu0 %v2001
      %v2121 = vpop.f32.mrf.mxu0
      %v2122 = vadd.f32 0.0, %v2121
      %v2123 = vpop.f32.mrf.mxu0
      %v2124 = vpop.f32.mrf.mxu0
      %v2125 = vadd.f32 0.0, %v2124
      %v2126 = vpop.f32.mrf.mxu0
      %2127 = vdwg.mxu0
      %v2128 = vadd.f32 %v1917, %v2090
      %v2129 = vadd.f32 %v1918, %v2093
      %v2130 = vadd.f32 %v1919, %v2098
      %v2131 = vadd.f32 %v1920, %v2101
      %v2132 = vadd.f32 %v1921, %v2106
      %v2133 = vadd.f32 %v1922, %v2109
      %v2134 = vadd.f32 %v1923, %v2114
      %v2135 = vadd.f32 %v1924, %v2117
      %v2136 = vadd.f32 %v1925, %v2122
      %v2137 = vadd.f32 %v1926, %v2125
      %v2138 = vld [vmem:[%s2] sm:$0xff]
      %v2139 = vld [vmem:[%s2 + $0x8] sm:$0xff]
      %v2140 = vld [vmem:[%s2 + $0x10] sm:$0xff]
      %v2141 = vld [vmem:[%s2 + $0x18] sm:$0xff]
      %v2142 = vld [vmem:[%s2 + $0x20] sm:$0xff]
      %v2143 = vld [vmem:[%s2 + $0x28] sm:$0xff]
      %v2144 = vld [vmem:[%s2 + $0x30] sm:$0xff]
      %v2145 = vld [vmem:[%s2 + $0x38] sm:$0xff]
      %v2146 = vld [vmem:[%s2 + $0x40] sm:$0xff]
      %v2147 = vld [vmem:[%s2 + $0x48] sm:$0xff]
      %2149 = vset.pattern.permute.xlu0 0
      %2150 = vperm.xlu0 %2149, %v2138
      %v2151 = vpop.permute.xlu0 %2150
      %2154 = vset.pattern.permute.xlu0 0
      %2155 = vperm.xlu0 %2154, %v2139
      %v2156 = vpop.permute.xlu0 %2155
      %2159 = vset.pattern.permute.xlu0 0
      %2160 = vperm.xlu0 %2159, %v2140
      %v2161 = vpop.permute.xlu0 %2160
      %2164 = vset.pattern.permute.xlu0 0
      %2165 = vperm.xlu0 %2164, %v2141
      %v2166 = vpop.permute.xlu0 %2165
      %2169 = vset.pattern.permute.xlu0 0
      %2170 = vperm.xlu0 %2169, %v2142
      %v2171 = vpop.permute.xlu0 %2170
      %2174 = vset.pattern.permute.xlu0 0
      %2175 = vperm.xlu0 %2174, %v2143
      %v2176 = vpop.permute.xlu0 %2175
      %2179 = vset.pattern.permute.xlu0 0
      %2180 = vperm.xlu0 %2179, %v2144
      %v2181 = vpop.permute.xlu0 %2180
      %2184 = vset.pattern.permute.xlu0 0
      %2185 = vperm.xlu0 %2184, %v2145
      %v2186 = vpop.permute.xlu0 %2185
      %2189 = vset.pattern.permute.xlu0 0
      %2190 = vperm.xlu0 %2189, %v2146
      %v2191 = vpop.permute.xlu0 %2190
      %2194 = vset.pattern.permute.xlu0 0
      %2195 = vperm.xlu0 %2194, %v2147
      %v2196 = vpop.permute.xlu0 %2195
      %v2198 = vmul.f32 %v2128, %v2151
      %v2199 = vmul.f32 %v2129, %v2156
      %v2200 = vmul.f32 %v2130, %v2161
      %v2201 = vmul.f32 %v2131, %v2166
      %v2202 = vmul.f32 %v2132, %v2171
      %v2203 = vmul.f32 %v2133, %v2176
      %v2204 = vmul.f32 %v2134, %v2181
      %v2205 = vmul.f32 %v2135, %v2186
      %v2206 = vmul.f32 %v2136, %v2191
      %v2207 = vmul.f32 %v2137, %v2196
      %v2208 = vadd.f32 %v2198, %v2199
      %v2209 = vadd.f32 %v2208, %v2200
      %v2210 = vadd.f32 %v2209, %v2201
      %v2211 = vadd.f32 %v2210, %v2202
      %v2212 = vadd.f32 %v2211, %v2203
      %v2213 = vadd.f32 %v2212, %v2204
      %v2214 = vadd.f32 %v2213, %v2205
      %v2215 = vadd.f32 %v2214, %v2206
      %v2216 = vadd.f32 %v2215, %v2207
      %v2217 = vrot.slane %v2216, 4
      %v2218 = vadd.f32 %v2216, %v2217
      %v2219 = vrot.slane %v2218, 2
      %v2220 = vadd.f32 %v2218, %v2219
      %v2221 = vrot.slane %v2220, 1
      %v2222 = vadd.f32 %v2220, %v2221
      %2223 = vst [vmem:[%s302] sm:$0x1] %v2222
      %v2224 = vmul.f32 %v2198, %v2128
      %v2225 = vmul.f32 %v2199, %v2129
      %v2226 = vmul.f32 %v2200, %v2130
      %v2227 = vmul.f32 %v2201, %v2131
      %v2228 = vmul.f32 %v2202, %v2132
      %v2229 = vmul.f32 %v2203, %v2133
      %v2230 = vmul.f32 %v2204, %v2134
      %v2231 = vmul.f32 %v2205, %v2135
      %v2232 = vmul.f32 %v2206, %v2136
      %v2233 = vmul.f32 %v2207, %v2137
      %v2234 = vadd.f32 %v2224, %v2225
      %v2235 = vadd.f32 %v2234, %v2226
      %v2236 = vadd.f32 %v2235, %v2227
      %v2237 = vadd.f32 %v2236, %v2228
      %v2238 = vadd.f32 %v2237, %v2229
      %v2239 = vadd.f32 %v2238, %v2230
      %v2240 = vadd.f32 %v2239, %v2231
      %v2241 = vadd.f32 %v2240, %v2232
      %v2242 = vadd.f32 %v2241, %v2233
      %v2243 = vrot.slane %v2242, 4
      %v2244 = vadd.f32 %v2242, %v2243
      %v2245 = vrot.slane %v2244, 2
      %v2246 = vadd.f32 %v2244, %v2245
      %v2247 = vrot.slane %v2246, 1
      %v2248 = vadd.f32 %v2246, %v2247
      %2249 = vst [vmem:[%s302 + $0x1] sm:$0x1] %v2248
      %2250 = vst [vmem:[%s298] sm:$0xf] 0
      %vm2251 = vcmask 1041408
      %vm2252 = vsmask.f32 1280
      %vm2253 = vmand %vm2251, %vm2252
      %v2254 = vld [vmem:[%s298 + $0x4] sm:$0x3]
      %v2255 = vsel %vm2253, 0, %v2254
      %2256 = vst [vmem:[%s298 + $0x4] sm:$0x3] %v2255
      %vm2257 = vcmask 1043457
      %vm2258 = vsmask.f32 7942
      %vm2259 = vmand %vm2257, %vm2258
      %v2260 = vld [vmem:[%s298 + $0x2c] sm:$0xe]
      %v2261 = vsel %vm2259, 0, %v2260
      %2262 = vst [vmem:[%s298 + $0x2c] sm:$0xe] %v2261
      %2263 = vst [vmem:[%s298 + $0x30] sm:$0xf] 0
      %2264 = vst [vmem:[%s298 + $0x34] sm:$0x7] 0
      %v2265 = vpack.c.bf16 %v2129, %v2128
      %v2266 = vpack.c.bf16 %v2131, %v2130
      %v2267 = vpack.c.bf16 %v2133, %v2132
      %v2268 = vpack.c.bf16 %v2135, %v2134
      %v2269 = vpack.c.bf16 %v2137, %v2136
      %v2275 = vunpack.c.l.b16 %v2265
      %v2276 = vunpack.c.h.b16 %v2265
      %v2277 = vunpack.c.l.b16 %v2266
      %v2278 = vunpack.c.h.b16 %v2266
      %v2279 = vunpack.c.l.b16 %v2267
      %v2280 = vunpack.c.h.b16 %v2267
      %v2281 = vunpack.c.l.b16 %v2268
      %v2282 = vunpack.c.h.b16 %v2268
      %v2283 = vunpack.c.l.b16 %v2269
      %v2284 = vunpack.c.h.b16 %v2269
      %v2285 = vpack.c.b16 %v2275, %v2275
      %v2286 = vpack.c.b16 %v2276, %v2276
      %v2287 = vpack.c.b16 %v2277, %v2277
      %v2288 = vpack.c.b16 %v2278, %v2278
      %v2289 = vpack.c.b16 %v2279, %v2279
      %v2290 = vpack.c.b16 %v2280, %v2280
      %v2291 = vpack.c.b16 %v2281, %v2281
      %v2292 = vpack.c.b16 %v2282, %v2282
      %v2293 = vpack.c.b16 %v2283, %v2283
      %v2294 = vpack.c.b16 %v2284, %v2284
      %vm2295 = vsmask.f32 5392
      %vm2296 = vmor %vm2252, %vm2295
      %v2298 = vshrl.u32 %v2285, 16
      %v2300 = vrot.slane %v2298, 6
      %v2301 = vshll.u32 %v2285, 16
      %v2303 = vrot.slane %v2301, 7
      %v2304 = vor.u32 %v2300, %v2303
      %v2305 = vrot.slane %v2304, 4
      %v2307 = vshrl.u32 %v2286, 16
      %v2309 = vrot.slane %v2307, 6
      %v2310 = vshll.u32 %v2286, 16
      %v2312 = vrot.slane %v2310, 7
      %v2313 = vor.u32 %v2309, %v2312
      %v2314 = vsel %vm2296, %v2305, %v2313
      %v2315 = vrot.slane %v2313, 4
      %v2317 = vshrl.u32 %v2287, 16
      %v2319 = vrot.slane %v2317, 6
      %v2320 = vshll.u32 %v2287, 16
      %v2322 = vrot.slane %v2320, 7
      %v2323 = vor.u32 %v2319, %v2322
      %v2324 = vsel %vm2296, %v2315, %v2323
      %v2325 = vrot.slane %v2323, 4
      %v2327 = vshrl.u32 %v2288, 16
      %v2329 = vrot.slane %v2327, 6
      %v2330 = vshll.u32 %v2288, 16
      %v2332 = vrot.slane %v2330, 7
      %v2333 = vor.u32 %v2329, %v2332
      %v2334 = vsel %vm2296, %v2325, %v2333
      %v2335 = vrot.slane %v2333, 4
      %v2337 = vshrl.u32 %v2289, 16
      %v2339 = vrot.slane %v2337, 6
      %v2340 = vshll.u32 %v2289, 16
      %v2342 = vrot.slane %v2340, 7
      %v2343 = vor.u32 %v2339, %v2342
      %v2344 = vsel %vm2296, %v2335, %v2343
      %v2345 = vrot.slane %v2343, 4
      %v2347 = vshrl.u32 %v2290, 16
      %v2349 = vrot.slane %v2347, 6
      %v2350 = vshll.u32 %v2290, 16
      %v2352 = vrot.slane %v2350, 7
      %v2353 = vor.u32 %v2349, %v2352
      %v2354 = vsel %vm2296, %v2345, %v2353
      %v2355 = vrot.slane %v2353, 4
      %v2357 = vshrl.u32 %v2291, 16
      %v2359 = vrot.slane %v2357, 6
      %v2360 = vshll.u32 %v2291, 16
      %v2362 = vrot.slane %v2360, 7
      %v2363 = vor.u32 %v2359, %v2362
      %v2364 = vsel %vm2296, %v2355, %v2363
      %v2365 = vrot.slane %v2363, 4
      %v2367 = vshrl.u32 %v2292, 16
      %v2369 = vrot.slane %v2367, 6
      %v2370 = vshll.u32 %v2292, 16
      %v2372 = vrot.slane %v2370, 7
      %v2373 = vor.u32 %v2369, %v2372
      %v2374 = vsel %vm2296, %v2365, %v2373
      %v2375 = vrot.slane %v2373, 4
      %v2377 = vshrl.u32 %v2293, 16
      %v2379 = vrot.slane %v2377, 6
      %v2380 = vshll.u32 %v2293, 16
      %v2382 = vrot.slane %v2380, 7
      %v2383 = vor.u32 %v2379, %v2382
      %v2384 = vsel %vm2296, %v2375, %v2383
      %v2385 = vrot.slane %v2383, 4
      %v2387 = vshrl.u32 %v2294, 16
      %v2389 = vrot.slane %v2387, 6
      %v2390 = vshll.u32 %v2294, 16
      %v2392 = vrot.slane %v2390, 7
      %v2393 = vor.u32 %v2389, %v2392
      %v2394 = vsel %vm2296, %v2385, %v2393
      %v2395 = vrot.slane %v2393, 4
      %v2407 = vld [vmem:[%s298 + $0x4] sm:$0xe]
      %v2408 = vsel %vm2259, %v2304, %v2407
      %2409 = vst [vmem:[%s298 + $0x4] sm:$0xe] %v2408
      %2410 = vst [vmem:[%s298 + $0x8] sm:$0xf] %v2314
      %2411 = vst [vmem:[%s298 + $0xc] sm:$0xf] %v2324
      %2412 = vst [vmem:[%s298 + $0x10] sm:$0xf] %v2334
      %2413 = vst [vmem:[%s298 + $0x14] sm:$0xf] %v2344
      %2414 = vst [vmem:[%s298 + $0x18] sm:$0xf] %v2354
      %2415 = vst [vmem:[%s298 + $0x1c] sm:$0xf] %v2364
      %2416 = vst [vmem:[%s298 + $0x20] sm:$0xf] %v2374
      %2417 = vst [vmem:[%s298 + $0x24] sm:$0xf] %v2384
      %2418 = vst [vmem:[%s298 + $0x28] sm:$0xf] %v2394
      %v2419 = vld [vmem:[%s298 + $0x2c] sm:$0x3]
      %v2420 = vsel %vm2253, %v2395, %v2419
      %2421 = vst [vmem:[%s298 + $0x2c] sm:$0x3] %v2420
      %v2422 = vld [vmem:[%s1095] sm:$0xf]
      %v2423 = vld [vmem:[%s1095 + $0x4] sm:$0xf]
      %v2424 = vld [vmem:[%s1095 + $0x8] sm:$0xf]
      %v2425 = vld [vmem:[%s1095 + $0xc] sm:$0xf]
      %v2426 = vld [vmem:[%s1095 + $0x10] sm:$0xf]
      %v2427 = vld [vmem:[%s1095 + $0x14] sm:$0xf]
      %v2428 = vld [vmem:[%s1095 + $0x18] sm:$0xf]
      %v2429 = vld [vmem:[%s1095 + $0x1c] sm:$0xf]
      %v2430 = vld [vmem:[%s1095 + $0x20] sm:$0xf]
      %v2431 = vld [vmem:[%s1095 + $0x24] sm:$0xf]
      %v2432 = vld [vmem:[%s3] sm:$0xf]
      %v2433 = vld [vmem:[%s3 + $0x4] sm:$0xf]
      %v2434 = vld [vmem:[%s3 + $0x8] sm:$0xf]
      %v2435 = vld [vmem:[%s3 + $0xc] sm:$0xf]
      %v2436 = vld [vmem:[%s3 + $0x10] sm:$0xf]
      %v2437 = vld [vmem:[%s3 + $0x14] sm:$0xf]
      %v2438 = vld [vmem:[%s3 + $0x18] sm:$0xf]
      %v2439 = vld [vmem:[%s3 + $0x1c] sm:$0xf]
      %v2440 = vld [vmem:[%s3 + $0x20] sm:$0xf]
      %v2441 = vld [vmem:[%s3 + $0x24] sm:$0xf]
      %v2442 = vld [vmem:[%s3 + $0x28] sm:$0xf]
      %v2443 = vld [vmem:[%s3 + $0x2c] sm:$0xf]
      %v2444 = vld [vmem:[%s3 + $0x30] sm:$0xf]
      %v2445 = vld [vmem:[%s3 + $0x34] sm:$0xf]
      %v2446 = vld [vmem:[%s3 + $0x38] sm:$0xf]
      %v2447 = vld [vmem:[%s3 + $0x3c] sm:$0xf]
      %v2458 = vunpack.c.l.b16 %v2422
      %v2459 = vunpack.c.l.b16 %v2423
      %v2460 = vunpack.c.l.b16 %v2424
      %v2461 = vunpack.c.l.b16 %v2425
      %v2462 = vunpack.c.l.b16 %v2426
      %v2463 = vunpack.c.l.b16 %v2427
      %v2464 = vunpack.c.l.b16 %v2428
      %v2465 = vunpack.c.l.b16 %v2429
      %v2466 = vunpack.c.l.b16 %v2430
      %v2467 = vunpack.c.l.b16 %v2431
      %v2468 = vpack.c.b16 %v2459, %v2458
      %v2469 = vpack.c.b16 %v2461, %v2460
      %v2470 = vpack.c.b16 %v2463, %v2462
      %v2471 = vpack.c.b16 %v2465, %v2464
      %v2472 = vpack.c.b16 %v2467, %v2466
      %v2494 = vunpack.c.l.b16 %v2432
      %v2495 = vunpack.c.l.b16 %v2433
      %v2496 = vunpack.c.l.b16 %v2434
      %v2497 = vunpack.c.l.b16 %v2435
      %v2498 = vunpack.c.l.b16 %v2436
      %v2499 = vunpack.c.l.b16 %v2437
      %v2500 = vunpack.c.l.b16 %v2438
      %v2501 = vunpack.c.l.b16 %v2439
      %v2502 = vunpack.c.l.b16 %v2440
      %v2503 = vunpack.c.l.b16 %v2441
      %v2504 = vunpack.c.l.b16 %v2442
      %v2505 = vunpack.c.l.b16 %v2443
      %v2506 = vunpack.c.l.b16 %v2444
      %v2507 = vunpack.c.l.b16 %v2445
      %v2508 = vunpack.c.l.b16 %v2446
      %v2509 = vunpack.c.l.b16 %v2447
      %v2510 = vpack.c.b16 %v2495, %v2494
      %v2511 = vpack.c.b16 %v2497, %v2496
      %v2512 = vpack.c.b16 %v2499, %v2498
      %v2513 = vpack.c.b16 %v2501, %v2500
      %v2514 = vpack.c.b16 %v2503, %v2502
      %v2515 = vpack.c.b16 %v2505, %v2504
      %v2516 = vpack.c.b16 %v2507, %v2506
      %v2517 = vpack.c.b16 %v2509, %v2508
      %2526 = vmatprep.subr.bf16.mxu0 0
      %2527 = vmatpush1.bf16.msra.mxu0 %v2517
      %2528 = vmatprep.subr.bf16.mxu0 0
      %2529 = vmatpush1.bf16.msra.mxu0 %v2516
      %2530 = vmatprep.subr.bf16.mxu0 0
      %2531 = vmatpush1.bf16.msra.mxu0 %v2515
      %2532 = vmatprep.subr.bf16.mxu0 0
      %2533 = vmatpush1.bf16.msra.mxu0 %v2514
      %2534 = vmatprep.subr.bf16.mxu0 0
      %2535 = vmatpush1.bf16.msra.mxu0 %v2513
      %2536 = vmatprep.subr.bf16.mxu0 0
      %2537 = vmatpush1.bf16.msra.mxu0 %v2512
      %2538 = vmatprep.subr.bf16.mxu0 0
      %2539 = vmatpush1.bf16.msra.mxu0 %v2511
      %2540 = vmatprep.subr.bf16.mxu0 0
      %2541 = vmatpush1.bf16.msra.mxu0 %v2510
      %2542 = vmatprep.subr.bf16.mxu0 0
      %2543 = vmatpush2.bf16.msra.mxu0 0
      %2544 = vmatprep.subr.bf16.mxu0 0
      %2545 = vmatpush2.bf16.msra.mxu0 0
      %2546 = vmatprep.subr.bf16.mxu0 0
      %2547 = vmatpush2.bf16.msra.mxu0 0
      %2548 = vmatprep.subr.bf16.mxu0 0
      %2549 = vmatpush2.bf16.msra.mxu0 0
      %2550 = vmatprep.subr.bf16.mxu0 0
      %2551 = vmatpush2.bf16.msra.mxu0 0
      %2552 = vmatprep.subr.bf16.mxu0 0
      %2553 = vmatpush2.bf16.msra.mxu0 0
      %2554 = vmatprep.subr.bf16.mxu0 0
      %2555 = vmatpush2.bf16.msra.mxu0 0
      %2556 = vmatprep.subr.bf16.mxu0 0
      %2557 = vmatpush2.bf16.msra.mxu0 0
      %2558 = vmatprep.mubr.bf16.mxu0 0
      %2559 = vmatmul.mubr.bf16.gmra.mxu0 %v2468
      %v2560 = vpop.f32.mrf.mxu0
      %v2561 = vadd.f32 0.0, %v2560
      %v2562 = vpop.f32.mrf.mxu0
      %v2563 = vpop.f32.mrf.mxu0
      %v2564 = vadd.f32 0.0, %v2563
      %v2565 = vpop.f32.mrf.mxu0
      %2566 = vmatprep.mubr.bf16.mxu0 0
      %2567 = vmatmul.mubr.bf16.gmra.mxu0 %v2469
      %v2568 = vpop.f32.mrf.mxu0
      %v2569 = vadd.f32 0.0, %v2568
      %v2570 = vpop.f32.mrf.mxu0
      %v2571 = vpop.f32.mrf.mxu0
      %v2572 = vadd.f32 0.0, %v2571
      %v2573 = vpop.f32.mrf.mxu0
      %2574 = vmatprep.mubr.bf16.mxu0 0
      %2575 = vmatmul.mubr.bf16.gmra.mxu0 %v2470
      %v2576 = vpop.f32.mrf.mxu0
      %v2577 = vadd.f32 0.0, %v2576
      %v2578 = vpop.f32.mrf.mxu0
      %v2579 = vpop.f32.mrf.mxu0
      %v2580 = vadd.f32 0.0, %v2579
      %v2581 = vpop.f32.mrf.mxu0
      %2582 = vmatprep.mubr.bf16.mxu0 0
      %2583 = vmatmul.mubr.bf16.gmra.mxu0 %v2471
      %v2584 = vpop.f32.mrf.mxu0
      %v2585 = vadd.f32 0.0, %v2584
      %v2586 = vpop.f32.mrf.mxu0
      %v2587 = vpop.f32.mrf.mxu0
      %v2588 = vadd.f32 0.0, %v2587
      %v2589 = vpop.f32.mrf.mxu0
      %2590 = vmatprep.mubr.bf16.mxu0 0
      %2591 = vmatmul.mubr.bf16.gmra.mxu0 %v2472
      %v2592 = vpop.f32.mrf.mxu0
      %v2593 = vadd.f32 0.0, %v2592
      %v2594 = vpop.f32.mrf.mxu0
      %v2595 = vpop.f32.mrf.mxu0
      %v2596 = vadd.f32 0.0, %v2595
      %v2597 = vpop.f32.mrf.mxu0
      %2598 = vdwg.mxu0
      %v2599 = vmul.f32 %v2561, %v2151
      %v2600 = vmul.f32 %v2564, %v2156
      %v2601 = vmul.f32 %v2569, %v2161
      %v2602 = vmul.f32 %v2572, %v2166
      %v2603 = vmul.f32 %v2577, %v2171
      %v2604 = vmul.f32 %v2580, %v2176
      %v2605 = vmul.f32 %v2585, %v2181
      %v2606 = vmul.f32 %v2588, %v2186
      %v2607 = vmul.f32 %v2593, %v2191
      %v2608 = vmul.f32 %v2596, %v2196
      %v2609 = vadd.f32 %v2599, %v2600
      %v2610 = vadd.f32 %v2609, %v2601
      %v2611 = vadd.f32 %v2610, %v2602
      %v2612 = vadd.f32 %v2611, %v2603
      %v2613 = vadd.f32 %v2612, %v2604
      %v2614 = vadd.f32 %v2613, %v2605
      %v2615 = vadd.f32 %v2614, %v2606
      %v2616 = vadd.f32 %v2615, %v2607
      %v2617 = vadd.f32 %v2616, %v2608
      %v2618 = vrot.slane %v2617, 4
      %v2619 = vadd.f32 %v2617, %v2618
      %v2620 = vrot.slane %v2619, 2
      %v2621 = vadd.f32 %v2619, %v2620
      %v2622 = vrot.slane %v2621, 1
      %v2623 = vadd.f32 %v2621, %v2622
      %2624 = vst [vmem:[%s311] sm:$0x1] %v2623
      %v2625 = vmul.f32 %v2599, %v2561
      %v2626 = vmul.f32 %v2600, %v2564
      %v2627 = vmul.f32 %v2601, %v2569
      %v2628 = vmul.f32 %v2602, %v2572
      %v2629 = vmul.f32 %v2603, %v2577
      %v2630 = vmul.f32 %v2604, %v2580
      %v2631 = vmul.f32 %v2605, %v2585
      %v2632 = vmul.f32 %v2606, %v2588
      %v2633 = vmul.f32 %v2607, %v2593
      %v2634 = vmul.f32 %v2608, %v2596
      %v2635 = vadd.f32 %v2625, %v2626
      %v2636 = vadd.f32 %v2635, %v2627
      %v2637 = vadd.f32 %v2636, %v2628
      %v2638 = vadd.f32 %v2637, %v2629
      %v2639 = vadd.f32 %v2638, %v2630
      %v2640 = vadd.f32 %v2639, %v2631
      %v2641 = vadd.f32 %v2640, %v2632
      %v2642 = vadd.f32 %v2641, %v2633
      %v2643 = vadd.f32 %v2642, %v2634
      %v2644 = vrot.slane %v2643, 4
      %v2645 = vadd.f32 %v2643, %v2644
      %v2646 = vrot.slane %v2645, 2
      %v2647 = vadd.f32 %v2645, %v2646
      %v2648 = vrot.slane %v2647, 1
      %v2649 = vadd.f32 %v2647, %v2648
      %2650 = vst [vmem:[%s311 + $0x1] sm:$0x1] %v2649
      %v2651 = vpack.c.bf16 %v2564, %v2561
      %v2652 = vpack.c.bf16 %v2572, %v2569
      %v2653 = vpack.c.bf16 %v2580, %v2577
      %v2654 = vpack.c.bf16 %v2588, %v2585
      %v2655 = vpack.c.bf16 %v2596, %v2593
      %v2661 = vunpack.c.l.b16 %v2651
      %v2662 = vunpack.c.h.b16 %v2651
      %v2663 = vunpack.c.l.b16 %v2652
      %v2664 = vunpack.c.h.b16 %v2652
      %v2665 = vunpack.c.l.b16 %v2653
      %v2666 = vunpack.c.h.b16 %v2653
      %v2667 = vunpack.c.l.b16 %v2654
      %v2668 = vunpack.c.h.b16 %v2654
      %v2669 = vunpack.c.l.b16 %v2655
      %v2670 = vunpack.c.h.b16 %v2655
      %v2671 = vpack.c.b16 %v2661, %v2661
      %v2672 = vpack.c.b16 %v2662, %v2662
      %v2673 = vpack.c.b16 %v2663, %v2663
      %v2674 = vpack.c.b16 %v2664, %v2664
      %v2675 = vpack.c.b16 %v2665, %v2665
      %v2676 = vpack.c.b16 %v2666, %v2666
      %v2677 = vpack.c.b16 %v2667, %v2667
      %v2678 = vpack.c.b16 %v2668, %v2668
      %v2679 = vpack.c.b16 %v2669, %v2669
      %v2680 = vpack.c.b16 %v2670, %v2670
      %2691 = vst [vmem:[%s307] sm:$0xf] %v2671
      %2692 = vst [vmem:[%s307 + $0x4] sm:$0xf] %v2672
      %2693 = vst [vmem:[%s307 + $0x8] sm:$0xf] %v2673
      %2694 = vst [vmem:[%s307 + $0xc] sm:$0xf] %v2674
      %2695 = vst [vmem:[%s307 + $0x10] sm:$0xf] %v2675
      %2696 = vst [vmem:[%s307 + $0x14] sm:$0xf] %v2676
      %2697 = vst [vmem:[%s307 + $0x18] sm:$0xf] %v2677
      %2698 = vst [vmem:[%s307 + $0x1c] sm:$0xf] %v2678
      %2699 = vst [vmem:[%s307 + $0x20] sm:$0xf] %v2679
      %2700 = vst [vmem:[%s307 + $0x24] sm:$0xf] %v2680
      %p2701 = scmp.lt.s32.totalorder %s19, 1
      %s2702 = scalar_select %p2701, %s19, 1
      %s2703 = smul.addr %s2702, 14
      %s2704 = smul.addr %s2703, 4
      %s2705 = scalar_lea.vmem %s4, %s2704
      %p2706 = scmp.lt.s32.totalorder %s19, 1
      %s2707 = scalar_select %p2706, %s19, 1
      %s2708 = smul.addr %s2707, 2
      %s2709 = scalar_lea.vmem %s5, %s2708
      %p2710 = scmp.lt.s32.totalorder %s19, 1
      %s2711 = scalar_select %p2710, %s19, 1
      %s2712 = smul.addr %s2711, 10
      %s2713 = smul.addr %s2712, 4
      %s2714 = scalar_lea.vmem %s6, %s2713
      %p2715 = scmp.lt.s32.totalorder %s19, 1
      %s2716 = scalar_select %p2715, %s19, 1
      %s2717 = smul.addr %s2716, 2
      %s2718 = scalar_lea.vmem %s7, %s2717
      // Predicated region
      $region37: #{basic_block_forward.3} parent=35 // pred_check
        %p2719 = pneg %p126
      $region38: #{basic_block_forward.3} parent=35 // pred_check_branch
        %2721 = sbr.rel (%p2719) target = $region40
      $region39: #{basic_block_forward.3} parent=35 // pred_region
        _
      $region40: #{basic_block_forward.3} parent=35 // pred_fallthru
        _
      // Predicated region
      $region41: #{basic_block_forward.3} parent=35 // pred_check
        %p2722 = pneg %p152
      $region42: #{basic_block_forward.3} parent=35 // pred_check_branch
        %2724 = sbr.rel (%p2722) target = $region44
      $region43: #{basic_block_forward.3} parent=35 // pred_region
        _
      $region44: #{basic_block_forward.3} parent=35 // pred_fallthru
        _
      // Predicated region
      $region45: #{basic_block_forward.3} parent=35 // pred_check
        %p2725 = pneg %p178
      $region46: #{basic_block_forward.3} parent=35 // pred_check_branch
        %2727 = sbr.rel (%p2725) target = $region48
      $region47: #{basic_block_forward.3} parent=35 // pred_region
        _
      $region48: #{basic_block_forward.3} parent=35 // pred_fallthru
        _
      // Predicated region
      $region49: #{basic_block_forward.3} parent=35 // pred_check
        %p2728 = pneg %p204
      $region50: #{basic_block_forward.3} parent=35 // pred_check_branch
        %2730 = sbr.rel (%p2728) target = $region52
      $region51: #{basic_block_forward.3} parent=35 // pred_region
        _
      $region52: #{basic_block_forward.3} parent=35 // pred_fallthru
        _
    $region36: #{basic_block_forward.3} parent=5 // pred_fallthru
      _
    %p2731 = scmp.le.s32.totalorder 2, %s14
    // Predicated region
    $region53: #{basic_block_forward.3} parent=5 // pred_check
      %p2732 = pneg %p2731
    $region54: #{basic_block_forward.3} parent=5 // pred_check_branch
      %2734 = sbr.rel (%p2732) target = $region56
    $region55: #{basic_block_forward.3} parent=5 // pred_region
      %s2735 = ssub.s32 %s14, 2
      // Predicated region
      $region57: #{basic_block_forward.3} parent=55 // pred_check
        %p2736 = pneg %p132
      $region58: #{basic_block_forward.3} parent=55 // pred_check_branch
        %2738 = sbr.rel (%p2736) target = $region60
      $region59: #{basic_block_forward.3} parent=55 // pred_region
        %p2739 = scmp.lt.s32.totalorder %s20, 1
        %s2740 = scalar_select %p2739, %s20, 1
        %s2741 = smul.addr %s2740, 14
        %s2742 = smul.addr %s2741, 4
        %s2743 = scalar_lea.vmem %s4, %s2742
      $region60: #{basic_block_forward.3} parent=55 // pred_fallthru
        _
      // Predicated region
      $region61: #{basic_block_forward.3} parent=55 // pred_check
        %p2744 = pneg %p158
      $region62: #{basic_block_forward.3} parent=55 // pred_check_branch
        %2746 = sbr.rel (%p2744) target = $region64
      $region63: #{basic_block_forward.3} parent=55 // pred_region
        %p2747 = scmp.lt.s32.totalorder %s20, 1
        %s2748 = scalar_select %p2747, %s20, 1
        %s2749 = smul.addr %s2748, 2
        %s2750 = scalar_lea.vmem %s5, %s2749
      $region64: #{basic_block_forward.3} parent=55 // pred_fallthru
        _
      // Predicated region
      $region65: #{basic_block_forward.3} parent=55 // pred_check
        %p2751 = pneg %p184
      $region66: #{basic_block_forward.3} parent=55 // pred_check_branch
        %2753 = sbr.rel (%p2751) target = $region68
      $region67: #{basic_block_forward.3} parent=55 // pred_region
        %p2754 = scmp.lt.s32.totalorder %s20, 1
        %s2755 = scalar_select %p2754, %s20, 1
        %s2756 = smul.addr %s2755, 10
        %s2757 = smul.addr %s2756, 4
        %s2758 = scalar_lea.vmem %s6, %s2757
      $region68: #{basic_block_forward.3} parent=55 // pred_fallthru
        _
      // Predicated region
      $region69: #{basic_block_forward.3} parent=55 // pred_check
        %p2759 = pneg %p210
      $region70: #{basic_block_forward.3} parent=55 // pred_check_branch
        %2761 = sbr.rel (%p2759) target = $region72
      $region71: #{basic_block_forward.3} parent=55 // pred_region
        %p2762 = scmp.lt.s32.totalorder %s20, 1
        %s2763 = scalar_select %p2762, %s20, 1
        %s2764 = smul.addr %s2763, 2
        %s2765 = scalar_lea.vmem %s7, %s2764
      $region72: #{basic_block_forward.3} parent=55 // pred_fallthru
        _
    $region56: #{basic_block_forward.3} parent=5 // pred_fallthru
      _
  $region6: #{basic_block_forward.3} parent=0 // loop_footer
    %s18 = sadd.s32 1, %s14
  $region7: #{basic_block_forward.3} parent=0 // loop_footer_branch
    %13 = sbr.rel target = $region3
  $region8: #{basic_block_forward.3} parent=0 // loop_exit
    _

</llo_original>
